<compile_context>
chip_gen: v6e
topology: v6e:2x2x1
jax: 0.10.0
libtpu: 0.0.40
codegen_flags: <defaults>
</compile_context>

<pallas_src>
import functools

import jax
import jax.numpy as jnp
from jax.experimental import pallas as pl
from jax.experimental.pallas import tpu as pltpu

BN_EPS = 1e-5
MATMUL_DTYPE = jnp.bfloat16   # MXU-native operand dtype; accumulation is f32.

# Sub-pixel taps for ConvTranspose2d(K=4, stride=2, padding=1).
# out[2m+ph] = sum over (off, k) in _PHASE_TAPS[ph] of x_pad[m+off] . w[..., k]
# (x_pad = input zero-padded by 1 on each spatial side).  Same table for cols.
_PHASE_TAPS = (((0, 3), (1, 1)),   # phase 0 (even output rows/cols)
               ((1, 2), (2, 0)))   # phase 1 (odd  output rows/cols)


def _round_up(x, m):
    return (x + m - 1) // m * m


def _pick_row_tile(dim, cap=256):
    """Largest tile <= cap dividing dim (dim is pre-padded to a multiple of 8)."""
    for c in (256, 128, 64, 32, 16, 8):
        if c <= cap and dim % c == 0:
            return c
    return dim


def _pick_lane_tile(dim):
    """Lane (last-dim) tile: multiple of 128, else the full dim."""
    for c in (256, 128):
        if dim % c == 0:
            return c
    return dim


# --------------------------- Pallas kernels ---------------------------------

def _matmul_bias_kernel(a_ref, b_ref, bias_ref, o_ref, *, activation):
    """One (tm, K) x (K, tn) MXU matmul tile, f32 accumulation, fused epilogue."""
    acc = jnp.dot(a_ref[...], b_ref[...], preferred_element_type=jnp.float32)
    acc = acc + bias_ref[...]
    if activation == "tanh":
        acc = jnp.tanh(acc)          # EUP; fused so no extra HBM round trip
    o_ref[...] = acc.astype(o_ref.dtype)


def batched_matmul_bias(a, b, bias, *, activation=None):
    """out[p] = act(a[p] @ b[p] + bias).  a:(P,M,K)  b:(P,K,N)  bias:(N,)."""
    P, M, K = a.shape
    Pb, Kb, N = b.shape
    assert P == Pb and K == Kb

    a = a.astype(MATMUL_DTYPE)
    b = b.astype(MATMUL_DTYPE)
    bias2 = bias.reshape(1, N).astype(jnp.float32)

    # Minimal padding only (sublane alignment); never a full re-copy for the
    # big activation matrices (their M/K are already multiples of 8 here).
    Mp = _round_up(M, 8)
    Kp = _round_up(K, 8)
    if Mp != M or Kp != K:
        a = jnp.pad(a, ((0, 0), (0, Mp - M), (0, Kp - K)))
    if Kp != K:
        b = jnp.pad(b, ((0, 0), (0, Kp - K), (0, 0)))

    tm = _pick_row_tile(Mp, cap=256)
    tn = _pick_lane_tile(N)
    # K is small enough (<= ~2.1K) to keep as a single full-depth block:
    # no K grid axis, no accumulator scratch, bias/activation applied in-place.

    cost = pl.CostEstimate(
        flops=2 * P * Mp * Kp * N,
        transcendentals=(P * Mp * N) if activation == "tanh" else 0,
        bytes_accessed=int(a.size) * 2 + int(b.size) * 2
        + 4 * P * Mp * N + int(bias2.size) * 4,
    )

    out = pl.pallas_call(
        functools.partial(_matmul_bias_kernel, activation=activation),
        out_shape=jax.ShapeDtypeStruct((P, Mp, N), jnp.float32),
        grid_spec=pltpu.PrefetchScalarGridSpec(
            num_scalar_prefetch=0,
            grid=(P, Mp // tm, N // tn),
            in_specs=[
                pl.BlockSpec((None, tm, Kp), lambda p, i, j: (p, i, 0)),
                pl.BlockSpec((None, Kp, tn), lambda p, i, j: (p, 0, j)),
                pl.BlockSpec((1, tn), lambda p, i, j: (0, j)),
            ],
            out_specs=pl.BlockSpec((None, tm, tn), lambda p, i, j: (p, i, j)),
        ),
        compiler_params=pltpu.CompilerParams(
            dimension_semantics=("parallel", "parallel", "parallel")),
        cost_estimate=cost,
    )(a, b, bias2)
    return out[:, :M, :]


def _bn_stats_kernel(x_ref, sum_ref, sq_ref, sacc, qacc):
    @pl.when(pl.program_id(0) == 0)
    def _():
        sacc[...] = jnp.zeros_like(sacc)
        qacc[...] = jnp.zeros_like(qacc)

    x = x_ref[...]
    sacc[...] += jnp.sum(x, axis=0, keepdims=True)
    qacc[...] += jnp.sum(x * x, axis=0, keepdims=True)

    @pl.when(pl.program_id(0) == pl.num_programs(0) - 1)
    def _():
        sum_ref[...] = sacc[...]
        sq_ref[...] = qacc[...]


def _bn_apply_relu_kernel(x_ref, scale_ref, shift_ref, o_ref):
    o_ref[...] = jnp.maximum(x_ref[...] * scale_ref[...] + shift_ref[...], 0.0)


def bn_relu(x2d, gamma, beta, *, row_tile=512):
    """Training-mode BatchNorm (batch stats over rows, biased var) + ReLU on
    (M, C).  Tiled two-pass: stats reduction, then a parallel apply pass."""
    M, C = x2d.shape
    x2d = x2d.astype(jnp.float32)
    Mp = _round_up(M, 8)
    if Mp != M:
        x2d = jnp.pad(x2d, ((0, Mp - M), (0, 0)))   # zero rows: sums unaffected
    tm = _pick_row_tile(Mp, cap=row_tile)
    grid = (Mp // tm,)

    sums, sqs = pl.pallas_call(
        _bn_stats_kernel,
        out_shape=(jax.ShapeDtypeStruct((1, C), jnp.float32),
                   jax.ShapeDtypeStruct((1, C), jnp.float32)),
        grid_spec=pltpu.PrefetchScalarGridSpec(
            num_scalar_prefetch=0,
            grid=grid,
            in_specs=[pl.BlockSpec((tm, C), lambda i: (i, 0))],
            out_specs=(pl.BlockSpec((1, C), lambda i: (0, 0)),
                       pl.BlockSpec((1, C), lambda i: (0, 0))),
            scratch_shapes=[pltpu.VMEM((1, C), jnp.float32),
                            pltpu.VMEM((1, C), jnp.float32)],
        ),
        compiler_params=pltpu.CompilerParams(
            dimension_semantics=("arbitrary",)),
    )(x2d)

    cnt = jnp.float32(M)
    mean = sums / cnt
    var = jnp.maximum(sqs / cnt - mean * mean, 0.0)
    scale = gamma.reshape(1, C) * jax.lax.rsqrt(var + BN_EPS)
    shift = beta.reshape(1, C) - mean * scale

    y = pl.pallas_call(
        _bn_apply_relu_kernel,
        out_shape=jax.ShapeDtypeStruct((Mp, C), jnp.float32),
        grid_spec=pltpu.PrefetchScalarGridSpec(
            num_scalar_prefetch=0,
            grid=grid,
            in_specs=[pl.BlockSpec((tm, C), lambda i: (i, 0)),
                      pl.BlockSpec((1, C), lambda i: (0, 0)),
                      pl.BlockSpec((1, C), lambda i: (0, 0))],
            out_specs=pl.BlockSpec((tm, C), lambda i: (i, 0)),
        ),
        compiler_params=pltpu.CompilerParams(
            dimension_semantics=("parallel",)),
    )(x2d, scale, shift)
    return y[:M]


# ----------------------- ConvTranspose2d lowering ----------------------------

def deconv_s2(x_nhwc, w_phases, bias, *, activation=None):
    """ConvTranspose2d(K=4, stride=2, pad=1) via sub-pixel phase decomposition.
    x:(N,H,W,Cin) -> (N,2H,2W,Cout).  w_phases:(4, 4*Cin, Cout) (preprocessed)."""
    N, H, W, Cin = x_nhwc.shape
    Cout = w_phases.shape[-1]
    xb = x_nhwc.astype(MATMUL_DTYPE)
    xp = jnp.pad(xb, ((0, 0), (1, 1), (1, 1), (0, 0)))       # spatial pad by 1

    a_phases = []
    for ph in range(2):
        for pw in range(2):
            taps = [xp[:, ra:ra + H, cb:cb + W, :]
                    for (ra, _) in _PHASE_TAPS[ph]
                    for (cb, _) in _PHASE_TAPS[pw]]
            a = jnp.concatenate(taps, axis=-1)               # (N,H,W,4*Cin)
            a_phases.append(a.reshape(N * H * W, 4 * Cin))
    a_all = jnp.stack(a_phases, axis=0)                      # (4, M, 4*Cin)

    y = batched_matmul_bias(a_all, w_phases, bias, activation=activation)
    # y: (4, N*H*W, Cout) with leading axis p = ph*2 + pw; interleave phases.
    y = y.reshape(2, 2, N, H, W, Cout)
    y = jnp.transpose(y, (2, 3, 0, 4, 1, 5)).reshape(N, 2 * H, 2 * W, Cout)
    return y


# --------------------------- Generator --------------------------------------

def init_generator_params(key, d=128):
    ks = jax.random.split(key, 8)

    def w(k, shape):
        return 0.05 * jax.random.normal(k, shape, jnp.float32)

    return {
        "deconv1_w": w(ks[0], (100, d * 4, 4, 4)),
        "deconv1_b": w(ks[1], (d * 4,)),
        "bn1_gamma": jnp.ones((d * 4,), jnp.float32),
        "bn1_beta": jnp.zeros((d * 4,), jnp.float32),
        "deconv2_w": w(ks[2], (d * 4 + 10, d * 2, 4, 4)),
        "deconv2_b": w(ks[3], (d * 2,)),
        "bn2_gamma": jnp.ones((d * 2,), jnp.float32),
        "bn2_beta": jnp.zeros((d * 2,), jnp.float32),
        "deconv3_w": w(ks[4], (d * 2, d, 4, 4)),
        "deconv3_b": w(ks[5], (d,)),
        "bn3_gamma": jnp.ones((d,), jnp.float32),
        "bn3_beta": jnp.zeros((d,), jnp.float32),
        "deconv4_w": w(ks[6], (d, 3, 4, 4)),
        "deconv4_b": w(ks[7], (3,)),
    }


def preprocess_params(params):
    """One-time weight re-layout (hoisted out of the forward pass)."""
    prep = {}
    # deconv1: 1x1 input, stride 1, pad 0 -> pure dense layer.
    w1 = jnp.transpose(params["deconv1_w"], (0, 2, 3, 1))    # (100,4,4,Cout)
    prep["w1"] = w1.reshape(w1.shape[0], -1).astype(MATMUL_DTYPE)  # (100,16*Cout)
    prep["b1"] = jnp.tile(params["deconv1_b"], 16).astype(jnp.float32)
    prep["bn1"] = (params["bn1_gamma"], params["bn1_beta"])

    for idx in (2, 3, 4):
        w = params[f"deconv{idx}_w"]                         # (Cin,Cout,4,4)
        mats = []
        for ph in range(2):
            for pw in range(2):
                blocks = [w[:, :, kh, kw]
                          for (_, kh) in _PHASE_TAPS[ph]
                          for (_, kw) in _PHASE_TAPS[pw]]
                mats.append(jnp.concatenate(blocks, axis=0))  # (4*Cin, Cout)
        prep[f"w{idx}"] = jnp.stack(mats, axis=0).astype(MATMUL_DTYPE)
        prep[f"b{idx}"] = params[f"deconv{idx}_b"].astype(jnp.float32)
        if idx < 4:
            prep[f"bn{idx}"] = (params[f"bn{idx}_gamma"],
                                params[f"bn{idx}_beta"])
    return prep


@jax.jit
def generator_forward(prep, z_nchw, labels_nchw):
    """Matches Generator.forward.  z:(N,100,1,1), labels:(N,10,1,1) -> (N,3,32,32)."""
    N = z_nchw.shape[0]
    z = z_nchw.reshape(N, -1)                                # (N,100)
    lab = jnp.transpose(labels_nchw, (0, 2, 3, 1))           # (N,1,1,10)

    # deconv1 (dense) -> BN -> ReLU : (N,4,4,4d)
    c1 = prep["w1"].shape[-1] // 16
    y1 = batched_matmul_bias(z[None], prep["w1"][None], prep["b1"])[0]
    x = bn_relu(y1.reshape(N * 16, c1), *prep["bn1"]).reshape(N, 4, 4, c1)

    # labels.expand + channel concat (== torch.cat dim=1 in NCHW)
    lab_b = jnp.broadcast_to(lab, (N, 4, 4, lab.shape[-1])).astype(jnp.float32)
    x = jnp.concatenate([x, lab_b], axis=-1)

    # deconv2 -> BN -> ReLU : (N,8,8,2d)
    x = deconv_s2(x, prep["w2"], prep["b2"])
    n, oh, ow, c = x.shape
    x = bn_relu(x.reshape(n * oh * ow, c), *prep["bn2"]).reshape(n, oh, ow, c)

    # deconv3 -> BN -> ReLU : (N,16,16,d)
    x = deconv_s2(x, prep["w3"], prep["b3"])
    n, oh, ow, c = x.shape
    x = bn_relu(x.reshape(n * oh * ow, c), *prep["bn3"]).reshape(n, oh, ow, c)

    # deconv4 -> tanh (fused into the matmul epilogue) : (N,32,32,3)
    x = deconv_s2(x, prep["w4"], prep["b4"], activation="tanh")
    return jnp.transpose(x, (0, 3, 1, 2))                    # back to NCHW


# --------------------------- pure-JAX reference ------------------------------

def _ref_deconv(x_nhwc, w_t, bias, stride, padding):
    K = w_t.shape[2]
    w_hwio = jnp.transpose(w_t[:, :, ::-1, ::-1], (2, 3, 0, 1))
    q = K - 1 - padding
    out = jax.lax.conv_general_dilated(
        x_nhwc, w_hwio, window_strides=(1, 1), padding=[(q, q), (q, q)],
        lhs_dilation=(stride, stride),
        dimension_numbers=("NHWC", "HWIO", "NHWC"),
        precision=jax.lax.Precision.HIGHEST)
    return out + bias


def _ref_bn_relu(x, gamma, beta):
    mean = jnp.mean(x, axis=(0, 1, 2), keepdims=True)
    var = jnp.mean(jnp.square(x - mean), axis=(0, 1, 2), keepdims=True)
    y = (x - mean) * jax.lax.rsqrt(var + BN_EPS) * gamma + beta
    return jnp.maximum(y, 0.0)


def generator_forward_ref(params, z_nchw, labels_nchw):
    N = z_nchw.shape[0]
    z = jnp.transpose(z_nchw, (0, 2, 3, 1))
    lab = jnp.transpose(labels_nchw, (0, 2, 3, 1))
    x = _ref_deconv(z, params["deconv1_w"], params["deconv1_b"], 1, 0)
    x = _ref_bn_relu(x, params["bn1_gamma"], params["bn1_beta"])
    lab_b = jnp.broadcast_to(lab, (N, x.shape[1], x.shape[2], lab.shape[-1]))
    x = jnp.concatenate([x, lab_b], axis=-1)
    x = _ref_deconv(x, params["deconv2_w"], params["deconv2_b"], 2, 1)
    x = _ref_bn_relu(x, params["bn2_gamma"], params["bn2_beta"])
    x = _ref_deconv(x, params["deconv3_w"], params["deconv3_b"], 2, 1)
    x = _ref_bn_relu(x, params["bn3_gamma"], params["bn3_beta"])
    x = _ref_deconv(x, params["deconv4_w"], params["deconv4_b"], 2, 1)
    x = jnp.tanh(x)
    return jnp.transpose(x, (0, 3, 1, 2))


# ------------------------------- main ----------------------------------------

if __name__ == "__main__":
    d = 32          # small width for the test (PyTorch default is 128)
    N = 2
    key = jax.random.PRNGKey(0)
    kp, kz, kl = jax.random.split(key, 3)

    params = init_generator_params(kp, d=d)
    prep = preprocess_params(params)

    z = jax.random.normal(kz, (N, 100, 1, 1), jnp.float32)
    lab_idx = jax.random.randint(kl, (N,), 0, 10)
    labels = jax.nn.one_hot(lab_idx, 10, dtype=jnp.float32).reshape(N, 10, 1, 1)

    out = generator_forward(prep, z, labels)
    out = jax.block_until_ready(out)
    assert out.shape == (N, 3, 32, 32)
    assert bool(jnp.all(jnp.isfinite(out)))

    ref = generator_forward_ref(params, z, labels)
    max_err = float(jnp.max(jnp.abs(out - ref)))
    # bf16 MXU operands (f32 accumulation) -> slightly looser tolerance than f32.
    assert jnp.allclose(out, ref, atol=3e-2, rtol=3e-2), max_err

    print("KERNEL_OK")
</pallas_src>

<mosaic_0001>
module attributes {stable_mosaic.version = 11 : i64} {
  func.func @_matmul_bias_kernel(%arg0: i32, %arg1: i32, %arg2: i32, %arg3: memref<1x8x104xbf16, #tpu.memory_space<vmem>>, %arg4: memref<1x104x256xbf16, #tpu.memory_space<vmem>>, %arg5: memref<1x256xf32, #tpu.memory_space<vmem>>, %arg6: memref<1x8x256xf32, #tpu.memory_space<vmem>>) attributes {dimension_semantics = [#tpu.dimension_semantics<parallel>, #tpu.dimension_semantics<parallel>, #tpu.dimension_semantics<parallel>], iteration_bounds = array<i64: 1, 1, 8>, scalar_prefetch = 0 : i64, scratch_operands = 0 : i64, tpu.core_type = #tpu.core_type<tc>, window_params = [{transform_indices = @transform_0, window_bounds = array<i64: 1, 8, 104>}, {transform_indices = @transform_1, window_bounds = array<i64: 1, 104, 256>}, {transform_indices = @transform_2, window_bounds = array<i64: 1, 256>}, {transform_indices = @transform_3, window_bounds = array<i64: 1, 8, 256>}]} {
    %c0 = arith.constant 0 : index
    %c0_0 = arith.constant 0 : index
    %c0_1 = arith.constant 0 : index
    %0 = vector.load %arg3[%c0, %c0_0, %c0_1] : memref<1x8x104xbf16, #tpu.memory_space<vmem>>, vector<1x8x104xbf16>
    %1 = vector.shape_cast %0 : vector<1x8x104xbf16> to vector<8x104xbf16>
    %c0_2 = arith.constant 0 : index
    %c0_3 = arith.constant 0 : index
    %c0_4 = arith.constant 0 : index
    %2 = vector.load %arg4[%c0_2, %c0_3, %c0_4] : memref<1x104x256xbf16, #tpu.memory_space<vmem>>, vector<1x104x256xbf16>
    %3 = vector.shape_cast %2 : vector<1x104x256xbf16> to vector<104x256xbf16>
    %cst = arith.constant dense<0.000000e+00> : vector<8x256xf32>
    %4 = tpu.matmul %1, %3, %cst {dimension_numbers = #tpu.dot_dimension_numbers<[1], [0], [0], [1], [0, 0, 1, 1], [], []>} : vector<8x104xbf16>, vector<104x256xbf16>, vector<8x256xf32> -> vector<8x256xf32>
    %c0_5 = arith.constant 0 : index
    %c0_6 = arith.constant 0 : index
    %5 = vector.load %arg5[%c0_5, %c0_6] : memref<1x256xf32, #tpu.memory_space<vmem>>, vector<1x256xf32>
    %6 = vector.broadcast %5 : vector<1x256xf32> to vector<8x256xf32>
    %7 = arith.addf %4, %6 : vector<8x256xf32>
    %c0_7 = arith.constant 0 : index
    %c0_8 = arith.constant 0 : index
    %c0_9 = arith.constant 0 : index
    %8 = vector.load %arg6[%c0_7, %c0_8, %c0_9] : memref<1x8x256xf32, #tpu.memory_space<vmem>>, vector<1x8x256xf32>
    %9 = vector.shape_cast %8 : vector<1x8x256xf32> to vector<8x256xf32>
    %10 = vector.shape_cast %7 : vector<8x256xf32> to vector<1x8x256xf32>
    tpu.vector_store %arg6[%c0_7, %c0_8, %c0_9], %10 {strides = array<i32>} : memref<1x8x256xf32, #tpu.memory_space<vmem>>, vector<1x8x256xf32>,
    return
  }
  func.func @transform_0(%arg0: i32, %arg1: i32, %arg2: i32) -> (i32, i32, i32) {
    %c0_i32 = arith.constant 0 : i32
    %c0_i32_0 = arith.constant 0 : i32
    return %arg0, %arg1, %c0_i32 : i32, i32, i32
  }
  func.func @transform_1(%arg0: i32, %arg1: i32, %arg2: i32) -> (i32, i32, i32) {
    %c0_i32 = arith.constant 0 : i32
    %c0_i32_0 = arith.constant 0 : i32
    return %arg0, %c0_i32, %arg2 : i32, i32, i32
  }
  func.func @transform_2(%arg0: i32, %arg1: i32, %arg2: i32) -> (i32, i32) {
    %c0_i32 = arith.constant 0 : i32
    %c0_i32_0 = arith.constant 0 : i32
    return %c0_i32, %arg2 : i32, i32
  }
  func.func @transform_3(%arg0: i32, %arg1: i32, %arg2: i32) -> (i32, i32, i32) {
    %c0_i32 = arith.constant 0 : i32
    return %arg0, %arg1, %arg2 : i32, i32, i32
  }
}

module attributes {stable_mosaic.version = 11 : i64} {
  func.func @_bn_stats_kernel(%arg0: i32, %arg1: memref<32x128xf32, #tpu.memory_space<vmem>>, %arg2: memref<1x128xf32, #tpu.memory_space<vmem>>, %arg3: memref<1x128xf32, #tpu.memory_space<vmem>>, %arg4: memref<1x128xf32, #tpu.memory_space<vmem>>, %arg5: memref<1x128xf32, #tpu.memory_space<vmem>>) attributes {dimension_semantics = [#tpu.dimension_semantics<arbitrary>], iteration_bounds = array<i64: 1>, scalar_prefetch = 0 : i64, scratch_operands = 2 : i64, tpu.core_type = #tpu.core_type<tc>, window_params = [{transform_indices = @transform_0, window_bounds = array<i64: 32, 128>}, {pipeline_mode = #tpu.pipeline_mode<synchronous>, transform_indices = @transform_1, window_bounds = array<i64: 1, 128>}, {pipeline_mode = #tpu.pipeline_mode<synchronous>, transform_indices = @transform_2, window_bounds = array<i64: 1, 128>}]} {
    %c0_i32 = arith.constant 0 : i32
    %0 = arith.cmpi eq, %arg0, %c0_i32 : i32
    %1 = arith.extui %0 : i1 to i32
    %c0_i32_0 = arith.constant 0 : i32
    %2 = arith.cmpi ne, %1, %c0_i32_0 : i32
    scf.if %2 {
      %cst_13 = arith.constant 0.000000e+00 : f32
      %18 = vector.broadcast %cst_13 : f32 to vector<1x128xf32>
      %c0_14 = arith.constant 0 : index
      %c0_15 = arith.constant 0 : index
      %19 = vector.load %arg4[%c0_14, %c0_15] : memref<1x128xf32, #tpu.memory_space<vmem>>, vector<1x128xf32>
      tpu.vector_store %arg4[%c0_14, %c0_15], %18 {strides = array<i32>} : memref<1x128xf32, #tpu.memory_space<vmem>>, vector<1x128xf32>,
      %cst_16 = arith.constant 0.000000e+00 : f32
      %20 = vector.broadcast %cst_16 : f32 to vector<1x128xf32>
      %c0_17 = arith.constant 0 : index
      %c0_18 = arith.constant 0 : index
      %21 = vector.load %arg5[%c0_17, %c0_18] : memref<1x128xf32, #tpu.memory_space<vmem>>, vector<1x128xf32>
      tpu.vector_store %arg5[%c0_17, %c0_18], %20 {strides = array<i32>} : memref<1x128xf32, #tpu.memory_space<vmem>>, vector<1x128xf32>,
    } else {
    }
    %c0 = arith.constant 0 : index
    %c0_1 = arith.constant 0 : index
    %3 = vector.load %arg1[%c0, %c0_1] : memref<32x128xf32, #tpu.memory_space<vmem>>, vector<32x128xf32>
    %c0_2 = arith.constant 0 : index
    %c0_3 = arith.constant 0 : index
    %4 = vector.load %arg4[%c0_2, %c0_3] : memref<1x128xf32, #tpu.memory_space<vmem>>, vector<1x128xf32>
    %cst = arith.constant dense<0.000000e+00> : vector<128xf32>
    %5 = vector.multi_reduction <add>, %3, %cst [0] : vector<32x128xf32> to vector<128xf32>
    %6 = vector.shape_cast %5 : vector<128xf32> to vector<1x128xf32>
    %7 = arith.addf %4, %6 : vector<1x128xf32>
    %c0_4 = arith.constant 0 : index
    %c0_5 = arith.constant 0 : index
    %8 = vector.load %arg4[%c0_4, %c0_5] : memref<1x128xf32, #tpu.memory_space<vmem>>, vector<1x128xf32>
    tpu.vector_store %arg4[%c0_4, %c0_5], %7 {strides = array<i32>} : memref<1x128xf32, #tpu.memory_space<vmem>>, vector<1x128xf32>,
    %c0_6 = arith.constant 0 : index
    %c0_7 = arith.constant 0 : index
    %9 = vector.load %arg5[%c0_6, %c0_7] : memref<1x128xf32, #tpu.memory_space<vmem>>, vector<1x128xf32>
    %10 = arith.mulf %3, %3 : vector<32x128xf32>
    %cst_8 = arith.constant dense<0.000000e+00> : vector<128xf32>
    %11 = vector.multi_reduction <add>, %10, %cst_8 [0] : vector<32x128xf32> to vector<128xf32>
    %12 = vector.shape_cast %11 : vector<128xf32> to vector<1x128xf32>
    %13 = arith.addf %9, %12 : vector<1x128xf32>
    %c0_9 = arith.constant 0 : index
    %c0_10 = arith.constant 0 : index
    %14 = vector.load %arg5[%c0_9, %c0_10] : memref<1x128xf32, #tpu.memory_space<vmem>>, vector<1x128xf32>
    tpu.vector_store %arg5[%c0_9, %c0_10], %13 {strides = array<i32>} : memref<1x128xf32, #tpu.memory_space<vmem>>, vector<1x128xf32>,
    %c0_i32_11 = arith.constant 0 : i32
    %15 = arith.cmpi eq, %arg0, %c0_i32_11 : i32
    %16 = arith.extui %15 : i1 to i32
    %c0_i32_12 = arith.constant 0 : i32
    %17 = arith.cmpi ne, %16, %c0_i32_12 : i32
    scf.if %17 {
      %c0_13 = arith.constant 0 : index
      %c0_14 = arith.constant 0 : index
      %18 = vector.load %arg4[%c0_13, %c0_14] : memref<1x128xf32, #tpu.memory_space<vmem>>, vector<1x128xf32>
      %c0_15 = arith.constant 0 : index
      %c0_16 = arith.constant 0 : index
      %19 = vector.load %arg2[%c0_15, %c0_16] : memref<1x128xf32, #tpu.memory_space<vmem>>, vector<1x128xf32>
      tpu.vector_store %arg2[%c0_15, %c0_16], %18 {strides = array<i32>} : memref<1x128xf32, #tpu.memory_space<vmem>>, vector<1x128xf32>,
      %c0_17 = arith.constant 0 : index
      %c0_18 = arith.constant 0 : index
      %20 = vector.load %arg5[%c0_17, %c0_18] : memref<1x128xf32, #tpu.memory_space<vmem>>, vector<1x128xf32>
      %c0_19 = arith.constant 0 : index
      %c0_20 = arith.constant 0 : index
      %21 = vector.load %arg3[%c0_19, %c0_20] : memref<1x128xf32, #tpu.memory_space<vmem>>, vector<1x128xf32>
      tpu.vector_store %arg3[%c0_19, %c0_20], %20 {strides = array<i32>} : memref<1x128xf32, #tpu.memory_space<vmem>>, vector<1x128xf32>,
    } else {
    }
    return
  }
  func.func @transform_0(%arg0: i32) -> (i32, i32) {
    %c0_i32 = arith.constant 0 : i32
    %c0_i32_0 = arith.constant 0 : i32
    return %arg0, %c0_i32 : i32, i32
  }
  func.func @transform_1(%arg0: i32) -> (i32, i32) {
    %c0_i32 = arith.constant 0 : i32
    %c0_i32_0 = arith.constant 0 : i32
    %c0_i32_1 = arith.constant 0 : i32
    return %c0_i32, %c0_i32_0 : i32, i32
  }
  func.func @transform_2(%arg0: i32) -> (i32, i32) {
    %c0_i32 = arith.constant 0 : i32
    %c0_i32_0 = arith.constant 0 : i32
    %c0_i32_1 = arith.constant 0 : i32
    return %c0_i32, %c0_i32_0 : i32, i32
  }
}

module attributes {stable_mosaic.version = 11 : i64} {
  func.func @_bn_apply_relu_kernel(%arg0: i32, %arg1: memref<32x128xf32, #tpu.memory_space<vmem>>, %arg2: memref<1x128xf32, #tpu.memory_space<vmem>>, %arg3: memref<1x128xf32, #tpu.memory_space<vmem>>, %arg4: memref<32x128xf32, #tpu.memory_space<vmem>>) attributes {dimension_semantics = [#tpu.dimension_semantics<parallel>], iteration_bounds = array<i64: 1>, scalar_prefetch = 0 : i64, scratch_operands = 0 : i64, tpu.core_type = #tpu.core_type<tc>, window_params = [{transform_indices = @transform_0, window_bounds = array<i64: 32, 128>}, {pipeline_mode = #tpu.pipeline_mode<synchronous>, transform_indices = @transform_1, window_bounds = array<i64: 1, 128>}, {pipeline_mode = #tpu.pipeline_mode<synchronous>, transform_indices = @transform_2, window_bounds = array<i64: 1, 128>}, {transform_indices = @transform_3, window_bounds = array<i64: 32, 128>}]} {
    %c0 = arith.constant 0 : index
    %c0_0 = arith.constant 0 : index
    %0 = vector.load %arg1[%c0, %c0_0] : memref<32x128xf32, #tpu.memory_space<vmem>>, vector<32x128xf32>
    %c0_1 = arith.constant 0 : index
    %c0_2 = arith.constant 0 : index
    %1 = vector.load %arg2[%c0_1, %c0_2] : memref<1x128xf32, #tpu.memory_space<vmem>>, vector<1x128xf32>
    %2 = vector.broadcast %1 : vector<1x128xf32> to vector<32x128xf32>
    %3 = arith.mulf %0, %2 : vector<32x128xf32>
    %c0_3 = arith.constant 0 : index
    %c0_4 = arith.constant 0 : index
    %4 = vector.load %arg3[%c0_3, %c0_4] : memref<1x128xf32, #tpu.memory_space<vmem>>, vector<1x128xf32>
    %5 = vector.broadcast %4 : vector<1x128xf32> to vector<32x128xf32>
    %6 = arith.addf %3, %5 : vector<32x128xf32>
    %cst = arith.constant 0.000000e+00 : f32
    %7 = vector.broadcast %cst : f32 to vector<32x128xf32>
    %8 = arith.maximumf %6, %7 : vector<32x128xf32>
    %c0_5 = arith.constant 0 : index
    %c0_6 = arith.constant 0 : index
    %9 = vector.load %arg4[%c0_5, %c0_6] : memref<32x128xf32, #tpu.memory_space<vmem>>, vector<32x128xf32>
    tpu.vector_store %arg4[%c0_5, %c0_6], %8 {strides = array<i32>} : memref<32x128xf32, #tpu.memory_space<vmem>>, vector<32x128xf32>,
    return
  }
  func.func @transform_0(%arg0: i32) -> (i32, i32) {
    %c0_i32 = arith.constant 0 : i32
    %c0_i32_0 = arith.constant 0 : i32
    return %arg0, %c0_i32 : i32, i32
  }
  func.func @transform_1(%arg0: i32) -> (i32, i32) {
    %c0_i32 = arith.constant 0 : i32
    %c0_i32_0 = arith.constant 0 : i32
    %c0_i32_1 = arith.constant 0 : i32
    return %c0_i32, %c0_i32_0 : i32, i32
  }
  func.func @transform_2(%arg0: i32) -> (i32, i32) {
    %c0_i32 = arith.constant 0 : i32
    %c0_i32_0 = arith.constant 0 : i32
    %c0_i32_1 = arith.constant 0 : i32
    return %c0_i32, %c0_i32_0 : i32, i32
  }
  func.func @transform_3(%arg0: i32) -> (i32, i32) {
    %c0_i32 = arith.constant 0 : i32
    %c0_i32_0 = arith.constant 0 : i32
    return %arg0, %c0_i32 : i32, i32
  }
}

module attributes {stable_mosaic.version = 11 : i64} {
  func.func @_matmul_bias_kernel(%arg0: i32, %arg1: i32, %arg2: i32, %arg3: memref<1x32x552xbf16, #tpu.memory_space<vmem>>, %arg4: memref<1x552x64xbf16, #tpu.memory_space<vmem>>, %arg5: memref<1x64xf32, #tpu.memory_space<vmem>>, %arg6: memref<1x32x64xf32, #tpu.memory_space<vmem>>) attributes {dimension_semantics = [#tpu.dimension_semantics<parallel>, #tpu.dimension_semantics<parallel>, #tpu.dimension_semantics<parallel>], iteration_bounds = array<i64: 4, 1, 1>, scalar_prefetch = 0 : i64, scratch_operands = 0 : i64, tpu.core_type = #tpu.core_type<tc>, window_params = [{transform_indices = @transform_0, window_bounds = array<i64: 1, 32, 552>}, {transform_indices = @transform_1, window_bounds = array<i64: 1, 552, 64>}, {transform_indices = @transform_2, window_bounds = array<i64: 1, 64>}, {transform_indices = @transform_3, window_bounds = array<i64: 1, 32, 64>}]} {
    %c0 = arith.constant 0 : index
    %c0_0 = arith.constant 0 : index
    %c0_1 = arith.constant 0 : index
    %0 = vector.load %arg3[%c0, %c0_0, %c0_1] : memref<1x32x552xbf16, #tpu.memory_space<vmem>>, vector<1x32x552xbf16>
    %1 = vector.shape_cast %0 : vector<1x32x552xbf16> to vector<32x552xbf16>
    %c0_2 = arith.constant 0 : index
    %c0_3 = arith.constant 0 : index
    %c0_4 = arith.constant 0 : index
    %2 = vector.load %arg4[%c0_2, %c0_3, %c0_4] : memref<1x552x64xbf16, #tpu.memory_space<vmem>>, vector<1x552x64xbf16>
    %3 = vector.shape_cast %2 : vector<1x552x64xbf16> to vector<552x64xbf16>
    %cst = arith.constant dense<0.000000e+00> : vector<32x64xf32>
    %4 = tpu.matmul %1, %3, %cst {dimension_numbers = #tpu.dot_dimension_numbers<[1], [0], [0], [1], [0, 0, 1, 1], [], []>} : vector<32x552xbf16>, vector<552x64xbf16>, vector<32x64xf32> -> vector<32x64xf32>
    %c0_5 = arith.constant 0 : index
    %c0_6 = arith.constant 0 : index
    %5 = vector.load %arg5[%c0_5, %c0_6] : memref<1x64xf32, #tpu.memory_space<vmem>>, vector<1x64xf32>
    %6 = vector.broadcast %5 : vector<1x64xf32> to vector<32x64xf32>
    %7 = arith.addf %4, %6 : vector<32x64xf32>
    %c0_7 = arith.constant 0 : index
    %c0_8 = arith.constant 0 : index
    %c0_9 = arith.constant 0 : index
    %8 = vector.load %arg6[%c0_7, %c0_8, %c0_9] : memref<1x32x64xf32, #tpu.memory_space<vmem>>, vector<1x32x64xf32>
    %9 = vector.shape_cast %8 : vector<1x32x64xf32> to vector<32x64xf32>
    %10 = vector.shape_cast %7 : vector<32x64xf32> to vector<1x32x64xf32>
    tpu.vector_store %arg6[%c0_7, %c0_8, %c0_9], %10 {strides = array<i32>} : memref<1x32x64xf32, #tpu.memory_space<vmem>>, vector<1x32x64xf32>,
    return
  }
  func.func @transform_0(%arg0: i32, %arg1: i32, %arg2: i32) -> (i32, i32, i32) {
    %c0_i32 = arith.constant 0 : i32
    %c0_i32_0 = arith.constant 0 : i32
    return %arg0, %arg1, %c0_i32 : i32, i32, i32
  }
  func.func @transform_1(%arg0: i32, %arg1: i32, %arg2: i32) -> (i32, i32, i32) {
    %c0_i32 = arith.constant 0 : i32
    %c0_i32_0 = arith.constant 0 : i32
    return %arg0, %c0_i32, %arg2 : i32, i32, i32
  }
  func.func @transform_2(%arg0: i32, %arg1: i32, %arg2: i32) -> (i32, i32) {
    %c0_i32 = arith.constant 0 : i32
    %c0_i32_0 = arith.constant 0 : i32
    return %c0_i32, %arg2 : i32, i32
  }
  func.func @transform_3(%arg0: i32, %arg1: i32, %arg2: i32) -> (i32, i32, i32) {
    %c0_i32 = arith.constant 0 : i32
    return %arg0, %arg1, %arg2 : i32, i32, i32
  }
}

module attributes {stable_mosaic.version = 11 : i64} {
  func.func @_bn_stats_kernel(%arg0: i32, %arg1: memref<128x64xf32, #tpu.memory_space<vmem>>, %arg2: memref<1x64xf32, #tpu.memory_space<vmem>>, %arg3: memref<1x64xf32, #tpu.memory_space<vmem>>, %arg4: memref<1x64xf32, #tpu.memory_space<vmem>>, %arg5: memref<1x64xf32, #tpu.memory_space<vmem>>) attributes {dimension_semantics = [#tpu.dimension_semantics<arbitrary>], iteration_bounds = array<i64: 1>, scalar_prefetch = 0 : i64, scratch_operands = 2 : i64, tpu.core_type = #tpu.core_type<tc>, window_params = [{transform_indices = @transform_0, window_bounds = array<i64: 128, 64>}, {pipeline_mode = #tpu.pipeline_mode<synchronous>, transform_indices = @transform_1, window_bounds = array<i64: 1, 64>}, {pipeline_mode = #tpu.pipeline_mode<synchronous>, transform_indices = @transform_2, window_bounds = array<i64: 1, 64>}]} {
    %c0_i32 = arith.constant 0 : i32
    %0 = arith.cmpi eq, %arg0, %c0_i32 : i32
    %1 = arith.extui %0 : i1 to i32
    %c0_i32_0 = arith.constant 0 : i32
    %2 = arith.cmpi ne, %1, %c0_i32_0 : i32
    scf.if %2 {
      %cst_13 = arith.constant 0.000000e+00 : f32
      %18 = vector.broadcast %cst_13 : f32 to vector<1x64xf32>
      %c0_14 = arith.constant 0 : index
      %c0_15 = arith.constant 0 : index
      %19 = vector.load %arg4[%c0_14, %c0_15] : memref<1x64xf32, #tpu.memory_space<vmem>>, vector<1x64xf32>
      tpu.vector_store %arg4[%c0_14, %c0_15], %18 {strides = array<i32>} : memref<1x64xf32, #tpu.memory_space<vmem>>, vector<1x64xf32>,
      %cst_16 = arith.constant 0.000000e+00 : f32
      %20 = vector.broadcast %cst_16 : f32 to vector<1x64xf32>
      %c0_17 = arith.constant 0 : index
      %c0_18 = arith.constant 0 : index
      %21 = vector.load %arg5[%c0_17, %c0_18] : memref<1x64xf32, #tpu.memory_space<vmem>>, vector<1x64xf32>
      tpu.vector_store %arg5[%c0_17, %c0_18], %20 {strides = array<i32>} : memref<1x64xf32, #tpu.memory_space<vmem>>, vector<1x64xf32>,
    } else {
    }
    %c0 = arith.constant 0 : index
    %c0_1 = arith.constant 0 : index
    %3 = vector.load %arg1[%c0, %c0_1] : memref<128x64xf32, #tpu.memory_space<vmem>>, vector<128x64xf32>
    %c0_2 = arith.constant 0 : index
    %c0_3 = arith.constant 0 : index
    %4 = vector.load %arg4[%c0_2, %c0_3] : memref<1x64xf32, #tpu.memory_space<vmem>>, vector<1x64xf32>
    %cst = arith.constant dense<0.000000e+00> : vector<64xf32>
    %5 = vector.multi_reduction <add>, %3, %cst [0] : vector<128x64xf32> to vector<64xf32>
    %6 = vector.shape_cast %5 : vector<64xf32> to vector<1x64xf32>
    %7 = arith.addf %4, %6 : vector<1x64xf32>
    %c0_4 = arith.constant 0 : index
    %c0_5 = arith.constant 0 : index
    %8 = vector.load %arg4[%c0_4, %c0_5] : memref<1x64xf32, #tpu.memory_space<vmem>>, vector<1x64xf32>
    tpu.vector_store %arg4[%c0_4, %c0_5], %7 {strides = array<i32>} : memref<1x64xf32, #tpu.memory_space<vmem>>, vector<1x64xf32>,
    %c0_6 = arith.constant 0 : index
    %c0_7 = arith.constant 0 : index
    %9 = vector.load %arg5[%c0_6, %c0_7] : memref<1x64xf32, #tpu.memory_space<vmem>>, vector<1x64xf32>
    %10 = arith.mulf %3, %3 : vector<128x64xf32>
    %cst_8 = arith.constant dense<0.000000e+00> : vector<64xf32>
    %11 = vector.multi_reduction <add>, %10, %cst_8 [0] : vector<128x64xf32> to vector<64xf32>
    %12 = vector.shape_cast %11 : vector<64xf32> to vector<1x64xf32>
    %13 = arith.addf %9, %12 : vector<1x64xf32>
    %c0_9 = arith.constant 0 : index
    %c0_10 = arith.constant 0 : index
    %14 = vector.load %arg5[%c0_9, %c0_10] : memref<1x64xf32, #tpu.memory_space<vmem>>, vector<1x64xf32>
    tpu.vector_store %arg5[%c0_9, %c0_10], %13 {strides = array<i32>} : memref<1x64xf32, #tpu.memory_space<vmem>>, vector<1x64xf32>,
    %c0_i32_11 = arith.constant 0 : i32
    %15 = arith.cmpi eq, %arg0, %c0_i32_11 : i32
    %16 = arith.extui %15 : i1 to i32
    %c0_i32_12 = arith.constant 0 : i32
    %17 = arith.cmpi ne, %16, %c0_i32_12 : i32
    scf.if %17 {
      %c0_13 = arith.constant 0 : index
      %c0_14 = arith.constant 0 : index
      %18 = vector.load %arg4[%c0_13, %c0_14] : memref<1x64xf32, #tpu.memory_space<vmem>>, vector<1x64xf32>
      %c0_15 = arith.constant 0 : index
      %c0_16 = arith.constant 0 : index
      %19 = vector.load %arg2[%c0_15, %c0_16] : memref<1x64xf32, #tpu.memory_space<vmem>>, vector<1x64xf32>
      tpu.vector_store %arg2[%c0_15, %c0_16], %18 {strides = array<i32>} : memref<1x64xf32, #tpu.memory_space<vmem>>, vector<1x64xf32>,
      %c0_17 = arith.constant 0 : index
      %c0_18 = arith.constant 0 : index
      %20 = vector.load %arg5[%c0_17, %c0_18] : memref<1x64xf32, #tpu.memory_space<vmem>>, vector<1x64xf32>
      %c0_19 = arith.constant 0 : index
      %c0_20 = arith.constant 0 : index
      %21 = vector.load %arg3[%c0_19, %c0_20] : memref<1x64xf32, #tpu.memory_space<vmem>>, vector<1x64xf32>
      tpu.vector_store %arg3[%c0_19, %c0_20], %20 {strides = array<i32>} : memref<1x64xf32, #tpu.memory_space<vmem>>, vector<1x64xf32>,
    } else {
    }
    return
  }
  func.func @transform_0(%arg0: i32) -> (i32, i32) {
    %c0_i32 = arith.constant 0 : i32
    %c0_i32_0 = arith.constant 0 : i32
    return %arg0, %c0_i32 : i32, i32
  }
  func.func @transform_1(%arg0: i32) -> (i32, i32) {
    %c0_i32 = arith.constant 0 : i32
    %c0_i32_0 = arith.constant 0 : i32
    %c0_i32_1 = arith.constant 0 : i32
    return %c0_i32, %c0_i32_0 : i32, i32
  }
  func.func @transform_2(%arg0: i32) -> (i32, i32) {
    %c0_i32 = arith.constant 0 : i32
    %c0_i32_0 = arith.constant 0 : i32
    %c0_i32_1 = arith.constant 0 : i32
    return %c0_i32, %c0_i32_0 : i32, i32
  }
}

module attributes {stable_mosaic.version = 11 : i64} {
  func.func @_bn_apply_relu_kernel(%arg0: i32, %arg1: memref<128x64xf32, #tpu.memory_space<vmem>>, %arg2: memref<1x64xf32, #tpu.memory_space<vmem>>, %arg3: memref<1x64xf32, #tpu.memory_space<vmem>>, %arg4: memref<128x64xf32, #tpu.memory_space<vmem>>) attributes {dimension_semantics = [#tpu.dimension_semantics<parallel>], iteration_bounds = array<i64: 1>, scalar_prefetch = 0 : i64, scratch_operands = 0 : i64, tpu.core_type = #tpu.core_type<tc>, window_params = [{transform_indices = @transform_0, window_bounds = array<i64: 128, 64>}, {pipeline_mode = #tpu.pipeline_mode<synchronous>, transform_indices = @transform_1, window_bounds = array<i64: 1, 64>}, {pipeline_mode = #tpu.pipeline_mode<synchronous>, transform_indices = @transform_2, window_bounds = array<i64: 1, 64>}, {transform_indices = @transform_3, window_bounds = array<i64: 128, 64>}]} {
    %c0 = arith.constant 0 : index
    %c0_0 = arith.constant 0 : index
    %0 = vector.load %arg1[%c0, %c0_0] : memref<128x64xf32, #tpu.memory_space<vmem>>, vector<128x64xf32>
    %c0_1 = arith.constant 0 : index
    %c0_2 = arith.constant 0 : index
    %1 = vector.load %arg2[%c0_1, %c0_2] : memref<1x64xf32, #tpu.memory_space<vmem>>, vector<1x64xf32>
    %2 = vector.broadcast %1 : vector<1x64xf32> to vector<128x64xf32>
    %3 = arith.mulf %0, %2 : vector<128x64xf32>
    %c0_3 = arith.constant 0 : index
    %c0_4 = arith.constant 0 : index
    %4 = vector.load %arg3[%c0_3, %c0_4] : memref<1x64xf32, #tpu.memory_space<vmem>>, vector<1x64xf32>
    %5 = vector.broadcast %4 : vector<1x64xf32> to vector<128x64xf32>
    %6 = arith.addf %3, %5 : vector<128x64xf32>
    %cst = arith.constant 0.000000e+00 : f32
    %7 = vector.broadcast %cst : f32 to vector<128x64xf32>
    %8 = arith.maximumf %6, %7 : vector<128x64xf32>
    %c0_5 = arith.constant 0 : index
    %c0_6 = arith.constant 0 : index
    %9 = vector.load %arg4[%c0_5, %c0_6] : memref<128x64xf32, #tpu.memory_space<vmem>>, vector<128x64xf32>
    tpu.vector_store %arg4[%c0_5, %c0_6], %8 {strides = array<i32>} : memref<128x64xf32, #tpu.memory_space<vmem>>, vector<128x64xf32>,
    return
  }
  func.func @transform_0(%arg0: i32) -> (i32, i32) {
    %c0_i32 = arith.constant 0 : i32
    %c0_i32_0 = arith.constant 0 : i32
    return %arg0, %c0_i32 : i32, i32
  }
  func.func @transform_1(%arg0: i32) -> (i32, i32) {
    %c0_i32 = arith.constant 0 : i32
    %c0_i32_0 = arith.constant 0 : i32
    %c0_i32_1 = arith.constant 0 : i32
    return %c0_i32, %c0_i32_0 : i32, i32
  }
  func.func @transform_2(%arg0: i32) -> (i32, i32) {
    %c0_i32 = arith.constant 0 : i32
    %c0_i32_0 = arith.constant 0 : i32
    %c0_i32_1 = arith.constant 0 : i32
    return %c0_i32, %c0_i32_0 : i32, i32
  }
  func.func @transform_3(%arg0: i32) -> (i32, i32) {
    %c0_i32 = arith.constant 0 : i32
    %c0_i32_0 = arith.constant 0 : i32
    return %arg0, %c0_i32 : i32, i32
  }
}

module attributes {stable_mosaic.version = 11 : i64} {
  func.func @_bn_stats_kernel(%arg0: i32, %arg1: memref<256x32xf32, #tpu.memory_space<vmem>>, %arg2: memref<1x32xf32, #tpu.memory_space<vmem>>, %arg3: memref<1x32xf32, #tpu.memory_space<vmem>>, %arg4: memref<1x32xf32, #tpu.memory_space<vmem>>, %arg5: memref<1x32xf32, #tpu.memory_space<vmem>>) attributes {dimension_semantics = [#tpu.dimension_semantics<arbitrary>], iteration_bounds = array<i64: 2>, scalar_prefetch = 0 : i64, scratch_operands = 2 : i64, tpu.core_type = #tpu.core_type<tc>, window_params = [{transform_indices = @transform_0, window_bounds = array<i64: 256, 32>}, {pipeline_mode = #tpu.pipeline_mode<synchronous>, transform_indices = @transform_1, window_bounds = array<i64: 1, 32>}, {pipeline_mode = #tpu.pipeline_mode<synchronous>, transform_indices = @transform_2, window_bounds = array<i64: 1, 32>}]} {
    %c0_i32 = arith.constant 0 : i32
    %0 = arith.cmpi eq, %arg0, %c0_i32 : i32
    %1 = arith.extui %0 : i1 to i32
    %c0_i32_0 = arith.constant 0 : i32
    %2 = arith.cmpi ne, %1, %c0_i32_0 : i32
    scf.if %2 {
      %cst_12 = arith.constant 0.000000e+00 : f32
      %18 = vector.broadcast %cst_12 : f32 to vector<1x32xf32>
      %c0_13 = arith.constant 0 : index
      %c0_14 = arith.constant 0 : index
      %19 = vector.load %arg4[%c0_13, %c0_14] : memref<1x32xf32, #tpu.memory_space<vmem>>, vector<1x32xf32>
      tpu.vector_store %arg4[%c0_13, %c0_14], %18 {strides = array<i32>} : memref<1x32xf32, #tpu.memory_space<vmem>>, vector<1x32xf32>,
      %cst_15 = arith.constant 0.000000e+00 : f32
      %20 = vector.broadcast %cst_15 : f32 to vector<1x32xf32>
      %c0_16 = arith.constant 0 : index
      %c0_17 = arith.constant 0 : index
      %21 = vector.load %arg5[%c0_16, %c0_17] : memref<1x32xf32, #tpu.memory_space<vmem>>, vector<1x32xf32>
      tpu.vector_store %arg5[%c0_16, %c0_17], %20 {strides = array<i32>} : memref<1x32xf32, #tpu.memory_space<vmem>>, vector<1x32xf32>,
    } else {
    }
    %c0 = arith.constant 0 : index
    %c0_1 = arith.constant 0 : index
    %3 = vector.load %arg1[%c0, %c0_1] : memref<256x32xf32, #tpu.memory_space<vmem>>, vector<256x32xf32>
    %c0_2 = arith.constant 0 : index
    %c0_3 = arith.constant 0 : index
    %4 = vector.load %arg4[%c0_2, %c0_3] : memref<1x32xf32, #tpu.memory_space<vmem>>, vector<1x32xf32>
    %cst = arith.constant dense<0.000000e+00> : vector<32xf32>
    %5 = vector.multi_reduction <add>, %3, %cst [0] : vector<256x32xf32> to vector<32xf32>
    %6 = vector.shape_cast %5 : vector<32xf32> to vector<1x32xf32>
    %7 = arith.addf %4, %6 : vector<1x32xf32>
    %c0_4 = arith.constant 0 : index
    %c0_5 = arith.constant 0 : index
    %8 = vector.load %arg4[%c0_4, %c0_5] : memref<1x32xf32, #tpu.memory_space<vmem>>, vector<1x32xf32>
    tpu.vector_store %arg4[%c0_4, %c0_5], %7 {strides = array<i32>} : memref<1x32xf32, #tpu.memory_space<vmem>>, vector<1x32xf32>,
    %c0_6 = arith.constant 0 : index
    %c0_7 = arith.constant 0 : index
    %9 = vector.load %arg5[%c0_6, %c0_7] : memref<1x32xf32, #tpu.memory_space<vmem>>, vector<1x32xf32>
    %10 = arith.mulf %3, %3 : vector<256x32xf32>
    %cst_8 = arith.constant dense<0.000000e+00> : vector<32xf32>
    %11 = vector.multi_reduction <add>, %10, %cst_8 [0] : vector<256x32xf32> to vector<32xf32>
    %12 = vector.shape_cast %11 : vector<32xf32> to vector<1x32xf32>
    %13 = arith.addf %9, %12 : vector<1x32xf32>
    %c0_9 = arith.constant 0 : index
    %c0_10 = arith.constant 0 : index
    %14 = vector.load %arg5[%c0_9, %c0_10] : memref<1x32xf32, #tpu.memory_space<vmem>>, vector<1x32xf32>
    tpu.vector_store %arg5[%c0_9, %c0_10], %13 {strides = array<i32>} : memref<1x32xf32, #tpu.memory_space<vmem>>, vector<1x32xf32>,
    %c1_i32 = arith.constant 1 : i32
    %15 = arith.cmpi eq, %arg0, %c1_i32 : i32
    %16 = arith.extui %15 : i1 to i32
    %c0_i32_11 = arith.constant 0 : i32
    %17 = arith.cmpi ne, %16, %c0_i32_11 : i32
    scf.if %17 {
      %c0_12 = arith.constant 0 : index
      %c0_13 = arith.constant 0 : index
      %18 = vector.load %arg4[%c0_12, %c0_13] : memref<1x32xf32, #tpu.memory_space<vmem>>, vector<1x32xf32>
      %c0_14 = arith.constant 0 : index
      %c0_15 = arith.constant 0 : index
      %19 = vector.load %arg2[%c0_14, %c0_15] : memref<1x32xf32, #tpu.memory_space<vmem>>, vector<1x32xf32>
      tpu.vector_store %arg2[%c0_14, %c0_15], %18 {strides = array<i32>} : memref<1x32xf32, #tpu.memory_space<vmem>>, vector<1x32xf32>,
      %c0_16 = arith.constant 0 : index
      %c0_17 = arith.constant 0 : index
      %20 = vector.load %arg5[%c0_16, %c0_17] : memref<1x32xf32, #tpu.memory_space<vmem>>, vector<1x32xf32>
      %c0_18 = arith.constant 0 : index
      %c0_19 = arith.constant 0 : index
      %21 = vector.load %arg3[%c0_18, %c0_19] : memref<1x32xf32, #tpu.memory_space<vmem>>, vector<1x32xf32>
      tpu.vector_store %arg3[%c0_18, %c0_19], %20 {strides = array<i32>} : memref<1x32xf32, #tpu.memory_space<vmem>>, vector<1x32xf32>,
    } else {
    }
    return
  }
  func.func @transform_0(%arg0: i32) -> (i32, i32) {
    %c0_i32 = arith.constant 0 : i32
    %c0_i32_0 = arith.constant 0 : i32
    return %arg0, %c0_i32 : i32, i32
  }
  func.func @transform_1(%arg0: i32) -> (i32, i32) {
    %c0_i32 = arith.constant 0 : i32
    %c0_i32_0 = arith.constant 0 : i32
    %c0_i32_1 = arith.constant 0 : i32
    return %c0_i32, %c0_i32_0 : i32, i32
  }
  func.func @transform_2(%arg0: i32) -> (i32, i32) {
    %c0_i32 = arith.constant 0 : i32
    %c0_i32_0 = arith.constant 0 : i32
    %c0_i32_1 = arith.constant 0 : i32
    return %c0_i32, %c0_i32_0 : i32, i32
  }
}

module attributes {stable_mosaic.version = 11 : i64} {
  func.func @_matmul_bias_kernel(%arg0: i32, %arg1: i32, %arg2: i32, %arg3: memref<1x128x256xbf16, #tpu.memory_space<vmem>>, %arg4: memref<1x256x32xbf16, #tpu.memory_space<vmem>>, %arg5: memref<1x32xf32, #tpu.memory_space<vmem>>, %arg6: memref<1x128x32xf32, #tpu.memory_space<vmem>>) attributes {dimension_semantics = [#tpu.dimension_semantics<parallel>, #tpu.dimension_semantics<parallel>, #tpu.dimension_semantics<parallel>], iteration_bounds = array<i64: 4, 1, 1>, scalar_prefetch = 0 : i64, scratch_operands = 0 : i64, tpu.core_type = #tpu.core_type<tc>, window_params = [{transform_indices = @transform_0, window_bounds = array<i64: 1, 128, 256>}, {transform_indices = @transform_1, window_bounds = array<i64: 1, 256, 32>}, {transform_indices = @transform_2, window_bounds = array<i64: 1, 32>}, {transform_indices = @transform_3, window_bounds = array<i64: 1, 128, 32>}]} {
    %c0 = arith.constant 0 : index
    %c0_0 = arith.constant 0 : index
    %c0_1 = arith.constant 0 : index
    %0 = vector.load %arg3[%c0, %c0_0, %c0_1] : memref<1x128x256xbf16, #tpu.memory_space<vmem>>, vector<1x128x256xbf16>
    %1 = vector.shape_cast %0 : vector<1x128x256xbf16> to vector<128x256xbf16>
    %c0_2 = arith.constant 0 : index
    %c0_3 = arith.constant 0 : index
    %c0_4 = arith.constant 0 : index
    %2 = vector.load %arg4[%c0_2, %c0_3, %c0_4] : memref<1x256x32xbf16, #tpu.memory_space<vmem>>, vector<1x256x32xbf16>
    %3 = vector.shape_cast %2 : vector<1x256x32xbf16> to vector<256x32xbf16>
    %cst = arith.constant dense<0.000000e+00> : vector<128x32xf32>
    %4 = tpu.matmul %1, %3, %cst {dimension_numbers = #tpu.dot_dimension_numbers<[1], [0], [0], [1], [0, 0, 1, 1], [], []>} : vector<128x256xbf16>, vector<256x32xbf16>, vector<128x32xf32> -> vector<128x32xf32>
    %c0_5 = arith.constant 0 : index
    %c0_6 = arith.constant 0 : index
    %5 = vector.load %arg5[%c0_5, %c0_6] : memref<1x32xf32, #tpu.memory_space<vmem>>, vector<1x32xf32>
    %6 = vector.broadcast %5 : vector<1x32xf32> to vector<128x32xf32>
    %7 = arith.addf %4, %6 : vector<128x32xf32>
    %c0_7 = arith.constant 0 : index
    %c0_8 = arith.constant 0 : index
    %c0_9 = arith.constant 0 : index
    %8 = vector.load %arg6[%c0_7, %c0_8, %c0_9] : memref<1x128x32xf32, #tpu.memory_space<vmem>>, vector<1x128x32xf32>
    %9 = vector.shape_cast %8 : vector<1x128x32xf32> to vector<128x32xf32>
    %10 = vector.shape_cast %7 : vector<128x32xf32> to vector<1x128x32xf32>
    tpu.vector_store %arg6[%c0_7, %c0_8, %c0_9], %10 {strides = array<i32>} : memref<1x128x32xf32, #tpu.memory_space<vmem>>, vector<1x128x32xf32>,
    return
  }
  func.func @transform_0(%arg0: i32, %arg1: i32, %arg2: i32) -> (i32, i32, i32) {
    %c0_i32 = arith.constant 0 : i32
    %c0_i32_0 = arith.constant 0 : i32
    return %arg0, %arg1, %c0_i32 : i32, i32, i32
  }
  func.func @transform_1(%arg0: i32, %arg1: i32, %arg2: i32) -> (i32, i32, i32) {
    %c0_i32 = arith.constant 0 : i32
    %c0_i32_0 = arith.constant 0 : i32
    return %arg0, %c0_i32, %arg2 : i32, i32, i32
  }
  func.func @transform_2(%arg0: i32, %arg1: i32, %arg2: i32) -> (i32, i32) {
    %c0_i32 = arith.constant 0 : i32
    %c0_i32_0 = arith.constant 0 : i32
    return %c0_i32, %arg2 : i32, i32
  }
  func.func @transform_3(%arg0: i32, %arg1: i32, %arg2: i32) -> (i32, i32, i32) {
    %c0_i32 = arith.constant 0 : i32
    return %arg0, %arg1, %arg2 : i32, i32, i32
  }
}

module attributes {stable_mosaic.version = 11 : i64} {
  func.func @_bn_apply_relu_kernel(%arg0: i32, %arg1: memref<256x32xf32, #tpu.memory_space<vmem>>, %arg2: memref<1x32xf32, #tpu.memory_space<vmem>>, %arg3: memref<1x32xf32, #tpu.memory_space<vmem>>, %arg4: memref<256x32xf32, #tpu.memory_space<vmem>>) attributes {dimension_semantics = [#tpu.dimension_semantics<parallel>], iteration_bounds = array<i64: 2>, scalar_prefetch = 0 : i64, scratch_operands = 0 : i64, tpu.core_type = #tpu.core_type<tc>, window_params = [{transform_indices = @transform_0, window_bounds = array<i64: 256, 32>}, {pipeline_mode = #tpu.pipeline_mode<synchronous>, transform_indices = @transform_1, window_bounds = array<i64: 1, 32>}, {pipeline_mode = #tpu.pipeline_mode<synchronous>, transform_indices = @transform_2, window_bounds = array<i64: 1, 32>}, {transform_indices = @transform_3, window_bounds = array<i64: 256, 32>}]} {
    %c0 = arith.constant 0 : index
    %c0_0 = arith.constant 0 : index
    %0 = vector.load %arg1[%c0, %c0_0] : memref<256x32xf32, #tpu.memory_space<vmem>>, vector<256x32xf32>
    %c0_1 = arith.constant 0 : index
    %c0_2 = arith.constant 0 : index
    %1 = vector.load %arg2[%c0_1, %c0_2] : memref<1x32xf32, #tpu.memory_space<vmem>>, vector<1x32xf32>
    %2 = vector.broadcast %1 : vector<1x32xf32> to vector<256x32xf32>
    %3 = arith.mulf %0, %2 : vector<256x32xf32>
    %c0_3 = arith.constant 0 : index
    %c0_4 = arith.constant 0 : index
    %4 = vector.load %arg3[%c0_3, %c0_4] : memref<1x32xf32, #tpu.memory_space<vmem>>, vector<1x32xf32>
    %5 = vector.broadcast %4 : vector<1x32xf32> to vector<256x32xf32>
    %6 = arith.addf %3, %5 : vector<256x32xf32>
    %cst = arith.constant 0.000000e+00 : f32
    %7 = vector.broadcast %cst : f32 to vector<256x32xf32>
    %8 = arith.maximumf %6, %7 : vector<256x32xf32>
    %c0_5 = arith.constant 0 : index
    %c0_6 = arith.constant 0 : index
    %9 = vector.load %arg4[%c0_5, %c0_6] : memref<256x32xf32, #tpu.memory_space<vmem>>, vector<256x32xf32>
    tpu.vector_store %arg4[%c0_5, %c0_6], %8 {strides = array<i32>} : memref<256x32xf32, #tpu.memory_space<vmem>>, vector<256x32xf32>,
    return
  }
  func.func @transform_0(%arg0: i32) -> (i32, i32) {
    %c0_i32 = arith.constant 0 : i32
    %c0_i32_0 = arith.constant 0 : i32
    return %arg0, %c0_i32 : i32, i32
  }
  func.func @transform_1(%arg0: i32) -> (i32, i32) {
    %c0_i32 = arith.constant 0 : i32
    %c0_i32_0 = arith.constant 0 : i32
    %c0_i32_1 = arith.constant 0 : i32
    return %c0_i32, %c0_i32_0 : i32, i32
  }
  func.func @transform_2(%arg0: i32) -> (i32, i32) {
    %c0_i32 = arith.constant 0 : i32
    %c0_i32_0 = arith.constant 0 : i32
    %c0_i32_1 = arith.constant 0 : i32
    return %c0_i32, %c0_i32_0 : i32, i32
  }
  func.func @transform_3(%arg0: i32) -> (i32, i32) {
    %c0_i32 = arith.constant 0 : i32
    %c0_i32_0 = arith.constant 0 : i32
    return %arg0, %c0_i32 : i32, i32
  }
}

module attributes {stable_mosaic.version = 11 : i64} {
  func.func @_matmul_bias_kernel(%arg0: i32, %arg1: i32, %arg2: i32, %arg3: memref<1x256x128xbf16, #tpu.memory_space<vmem>>, %arg4: memref<1x128x3xbf16, #tpu.memory_space<vmem>>, %arg5: memref<1x3xf32, #tpu.memory_space<vmem>>, %arg6: memref<1x256x3xf32, #tpu.memory_space<vmem>>) attributes {dimension_semantics = [#tpu.dimension_semantics<parallel>, #tpu.dimension_semantics<parallel>, #tpu.dimension_semantics<parallel>], iteration_bounds = array<i64: 4, 2, 1>, scalar_prefetch = 0 : i64, scratch_operands = 0 : i64, tpu.core_type = #tpu.core_type<tc>, window_params = [{transform_indices = @transform_0, window_bounds = array<i64: 1, 256, 128>}, {transform_indices = @transform_1, window_bounds = array<i64: 1, 128, 3>}, {transform_indices = @transform_2, window_bounds = array<i64: 1, 3>}, {transform_indices = @transform_3, window_bounds = array<i64: 1, 256, 3>}]} {
    %c0 = arith.constant 0 : index
    %c0_0 = arith.constant 0 : index
    %c0_1 = arith.constant 0 : index
    %0 = vector.load %arg3[%c0, %c0_0, %c0_1] : memref<1x256x128xbf16, #tpu.memory_space<vmem>>, vector<1x256x128xbf16>
    %1 = vector.shape_cast %0 : vector<1x256x128xbf16> to vector<256x128xbf16>
    %c0_2 = arith.constant 0 : index
    %c0_3 = arith.constant 0 : index
    %c0_4 = arith.constant 0 : index
    %2 = vector.load %arg4[%c0_2, %c0_3, %c0_4] : memref<1x128x3xbf16, #tpu.memory_space<vmem>>, vector<1x128x3xbf16>
    %3 = vector.shape_cast %2 : vector<1x128x3xbf16> to vector<128x3xbf16>
    %cst = arith.constant dense<0.000000e+00> : vector<256x3xf32>
    %4 = tpu.matmul %1, %3, %cst {dimension_numbers = #tpu.dot_dimension_numbers<[1], [0], [0], [1], [0, 0, 1, 1], [], []>} : vector<256x128xbf16>, vector<128x3xbf16>, vector<256x3xf32> -> vector<256x3xf32>
    %c0_5 = arith.constant 0 : index
    %c0_6 = arith.constant 0 : index
    %5 = vector.load %arg5[%c0_5, %c0_6] : memref<1x3xf32, #tpu.memory_space<vmem>>, vector<1x3xf32>
    %6 = vector.broadcast %5 : vector<1x3xf32> to vector<256x3xf32>
    %7 = arith.addf %4, %6 : vector<256x3xf32>
    %8 = math.tanh %7 : vector<256x3xf32>
    %c0_7 = arith.constant 0 : index
    %c0_8 = arith.constant 0 : index
    %c0_9 = arith.constant 0 : index
    %9 = vector.load %arg6[%c0_7, %c0_8, %c0_9] : memref<1x256x3xf32, #tpu.memory_space<vmem>>, vector<1x256x3xf32>
    %10 = vector.shape_cast %9 : vector<1x256x3xf32> to vector<256x3xf32>
    %11 = vector.shape_cast %8 : vector<256x3xf32> to vector<1x256x3xf32>
    tpu.vector_store %arg6[%c0_7, %c0_8, %c0_9], %11 {strides = array<i32>} : memref<1x256x3xf32, #tpu.memory_space<vmem>>, vector<1x256x3xf32>,
    return
  }
  func.func @transform_0(%arg0: i32, %arg1: i32, %arg2: i32) -> (i32, i32, i32) {
    %c0_i32 = arith.constant 0 : i32
    %c0_i32_0 = arith.constant 0 : i32
    return %arg0, %arg1, %c0_i32 : i32, i32, i32
  }
  func.func @transform_1(%arg0: i32, %arg1: i32, %arg2: i32) -> (i32, i32, i32) {
    %c0_i32 = arith.constant 0 : i32
    %c0_i32_0 = arith.constant 0 : i32
    return %arg0, %c0_i32, %arg2 : i32, i32, i32
  }
  func.func @transform_2(%arg0: i32, %arg1: i32, %arg2: i32) -> (i32, i32) {
    %c0_i32 = arith.constant 0 : i32
    %c0_i32_0 = arith.constant 0 : i32
    return %c0_i32, %arg2 : i32, i32
  }
  func.func @transform_3(%arg0: i32, %arg1: i32, %arg2: i32) -> (i32, i32, i32) {
    %c0_i32 = arith.constant 0 : i32
    return %arg0, %arg1, %arg2 : i32, i32, i32
  }
}

</mosaic_0001>

<llo_original>
// kernel: squeeze.1
$region0: #{squeeze.1}
  %s0 = inlined_call_operand.vmem [shape: f32[1,2,2048], index: 0, kind: input, shape index: {}]
  %s1 = inlined_call_operand.vmem [shape: f32[32,128], index: 1, kind: output, shape index: {}]
  $region1: #{squeeze.1} parent=0
    #allocation0 [shape = 'u8[65536]{0}', space=vmem, size = 0x10000, scoped, tag = 'scoped mem for input reshape']
    %s3 = sshll.u32 1, 2
    %s4 = ssub.s32 %s3, 1
    %s5 = smul.addr 2, 15
    %s6 = scalar_lea.vmem %s0, %s5
    %v7 = vld [vmem:[%s6] sm:%s4]
    %s8 = scalar_lea.vmem [#allocation0], 120
    %9 = vst [vmem:[%s8] sm:%s4] %v7
    %s10 = smul.addr 2, 14
    %s11 = scalar_lea.vmem %s0, %s10
    %v12 = vld [vmem:[%s11] sm:%s4]
    %s13 = scalar_lea.vmem [#allocation0], 112
    %14 = vst [vmem:[%s13] sm:%s4] %v12
    %s15 = smul.addr 2, 13
    %s16 = scalar_lea.vmem %s0, %s15
    %v17 = vld [vmem:[%s16] sm:%s4]
    %s18 = scalar_lea.vmem [#allocation0], 104
    %19 = vst [vmem:[%s18] sm:%s4] %v17
    %s20 = smul.addr 2, 12
    %s21 = scalar_lea.vmem %s0, %s20
    %v22 = vld [vmem:[%s21] sm:%s4]
    %s23 = scalar_lea.vmem [#allocation0], 96
    %24 = vst [vmem:[%s23] sm:%s4] %v22
    %s25 = smul.addr 2, 11
    %s26 = scalar_lea.vmem %s0, %s25
    %v27 = vld [vmem:[%s26] sm:%s4]
    %s28 = scalar_lea.vmem [#allocation0], 88
    %29 = vst [vmem:[%s28] sm:%s4] %v27
    %s30 = smul.addr 2, 10
    %s31 = scalar_lea.vmem %s0, %s30
    %v32 = vld [vmem:[%s31] sm:%s4]
    %s33 = scalar_lea.vmem [#allocation0], 80
    %34 = vst [vmem:[%s33] sm:%s4] %v32
    %s35 = smul.addr 2, 9
    %s36 = scalar_lea.vmem %s0, %s35
    %v37 = vld [vmem:[%s36] sm:%s4]
    %s38 = scalar_lea.vmem [#allocation0], 72
    %39 = vst [vmem:[%s38] sm:%s4] %v37
    %s40 = smul.addr 2, 8
    %s41 = scalar_lea.vmem %s0, %s40
    %v42 = vld [vmem:[%s41] sm:%s4]
    %s43 = scalar_lea.vmem [#allocation0], 64
    %44 = vst [vmem:[%s43] sm:%s4] %v42
    %s45 = smul.addr 2, 7
    %s46 = scalar_lea.vmem %s0, %s45
    %v47 = vld [vmem:[%s46] sm:%s4]
    %s48 = scalar_lea.vmem [#allocation0], 56
    %49 = vst [vmem:[%s48] sm:%s4] %v47
    %s50 = smul.addr 2, 6
    %s51 = scalar_lea.vmem %s0, %s50
    %v52 = vld [vmem:[%s51] sm:%s4]
    %s53 = scalar_lea.vmem [#allocation0], 48
    %54 = vst [vmem:[%s53] sm:%s4] %v52
    %s55 = smul.addr 2, 5
    %s56 = scalar_lea.vmem %s0, %s55
    %v57 = vld [vmem:[%s56] sm:%s4]
    %s58 = scalar_lea.vmem [#allocation0], 40
    %59 = vst [vmem:[%s58] sm:%s4] %v57
    %s60 = smul.addr 2, 4
    %s61 = scalar_lea.vmem %s0, %s60
    %v62 = vld [vmem:[%s61] sm:%s4]
    %s63 = scalar_lea.vmem [#allocation0], 32
    %64 = vst [vmem:[%s63] sm:%s4] %v62
    %s65 = smul.addr 2, 3
    %s66 = scalar_lea.vmem %s0, %s65
    %v67 = vld [vmem:[%s66] sm:%s4]
    %s68 = scalar_lea.vmem [#allocation0], 24
    %69 = vst [vmem:[%s68] sm:%s4] %v67
    %s70 = smul.addr 2, 2
    %s71 = scalar_lea.vmem %s0, %s70
    %v72 = vld [vmem:[%s71] sm:%s4]
    %s73 = scalar_lea.vmem [#allocation0], 16
    %74 = vst [vmem:[%s73] sm:%s4] %v72
    %s75 = scalar_lea.vmem %s0, 2
    %v76 = vld [vmem:[%s75] sm:%s4]
    %s77 = scalar_lea.vmem [#allocation0], 8
    %78 = vst [vmem:[%s77] sm:%s4] %v76
    %v79 = vld [vmem:[%s0] sm:%s4]
    %80 = vst [vmem:[#allocation0] sm:%s4] %v79
    %v81 = vld [vmem:[#allocation0] sm:$0x3]
    %82 = vst [vmem:[%s1] ss:$16 sm:$0x3] %v81
    %s83 = scalar_lea.vmem [#allocation0], 8
    %v84 = vld [vmem:[%s83] sm:$0x3]
    %s85 = scalar_lea.vmem %s1, 1
    %86 = vst [vmem:[%s85] ss:$16 sm:$0x3] %v84
    %s87 = scalar_lea.vmem [#allocation0], 16
    %v88 = vld [vmem:[%s87] sm:$0x3]
    %s89 = scalar_lea.vmem %s1, 2
    %90 = vst [vmem:[%s89] ss:$16 sm:$0x3] %v88
    %s91 = scalar_lea.vmem [#allocation0], 24
    %v92 = vld [vmem:[%s91] sm:$0x3]
    %s93 = scalar_lea.vmem %s1, 3
    %94 = vst [vmem:[%s93] ss:$16 sm:$0x3] %v92
    %s95 = scalar_lea.vmem [#allocation0], 32
    %v96 = vld [vmem:[%s95] sm:$0x3]
    %s97 = scalar_lea.vmem %s1, 4
    %98 = vst [vmem:[%s97] ss:$16 sm:$0x3] %v96
    %s99 = scalar_lea.vmem [#allocation0], 40
    %v100 = vld [vmem:[%s99] sm:$0x3]
    %s101 = scalar_lea.vmem %s1, 5
    %102 = vst [vmem:[%s101] ss:$16 sm:$0x3] %v100
    %s103 = scalar_lea.vmem [#allocation0], 48
    %v104 = vld [vmem:[%s103] sm:$0x3]
    %s105 = scalar_lea.vmem %s1, 6
    %106 = vst [vmem:[%s105] ss:$16 sm:$0x3] %v104
    %s107 = scalar_lea.vmem [#allocation0], 56
    %v108 = vld [vmem:[%s107] sm:$0x3]
    %s109 = scalar_lea.vmem %s1, 7
    %110 = vst [vmem:[%s109] ss:$16 sm:$0x3] %v108
    %s111 = scalar_lea.vmem [#allocation0], 64
    %v112 = vld [vmem:[%s111] sm:$0x3]
    %s113 = scalar_lea.vmem %s1, 8
    %114 = vst [vmem:[%s113] ss:$16 sm:$0x3] %v112
    %s115 = scalar_lea.vmem [#allocation0], 72
    %v116 = vld [vmem:[%s115] sm:$0x3]
    %s117 = scalar_lea.vmem %s1, 9
    %118 = vst [vmem:[%s117] ss:$16 sm:$0x3] %v116
    %s119 = scalar_lea.vmem [#allocation0], 80
    %v120 = vld [vmem:[%s119] sm:$0x3]
    %s121 = scalar_lea.vmem %s1, 10
    %122 = vst [vmem:[%s121] ss:$16 sm:$0x3] %v120
    %s123 = scalar_lea.vmem [#allocation0], 88
    %v124 = vld [vmem:[%s123] sm:$0x3]
    %s125 = scalar_lea.vmem %s1, 11
    %126 = vst [vmem:[%s125] ss:$16 sm:$0x3] %v124
    %s127 = scalar_lea.vmem [#allocation0], 96
    %v128 = vld [vmem:[%s127] sm:$0x3]
    %s129 = scalar_lea.vmem %s1, 12
    %130 = vst [vmem:[%s129] ss:$16 sm:$0x3] %v128
    %s131 = scalar_lea.vmem [#allocation0], 104
    %v132 = vld [vmem:[%s131] sm:$0x3]
    %s133 = scalar_lea.vmem %s1, 13
    %134 = vst [vmem:[%s133] ss:$16 sm:$0x3] %v132
    %s135 = scalar_lea.vmem [#allocation0], 112
    %v136 = vld [vmem:[%s135] sm:$0x3]
    %s137 = scalar_lea.vmem %s1, 14
    %138 = vst [vmem:[%s137] ss:$16 sm:$0x3] %v136
    %s139 = scalar_lea.vmem [#allocation0], 120
    %v140 = vld [vmem:[%s139] sm:$0x3]
    %s141 = scalar_lea.vmem %s1, 15
    %142 = vst [vmem:[%s141] ss:$16 sm:$0x3] %v140

// kernel: generator_forward.10
$region0: #{generator_forward.10}
  #allocation0 [shape = 'u32[]', space=smem, size = 0x4, offset = 0x4, fixed_abs, tag = 'smem constant byte address 0x4 - core index']
  #allocation1 [shape = 'u32[144,128]{1,0:T(1,128)}', space=vmem, size = 0x12000, scoped, tag = 'internal scratch']
  %s0 = inlined_call_operand.vmem [shape: bf16[1,8,104], index: 0, kind: input, shape index: {}]
  %s1 = inlined_call_operand.vmem [shape: bf16[1,104,2048], index: 1, kind: input, shape index: {}]
  %s2 = inlined_call_operand.hbm [shape: f32[1,2048], index: 2, kind: input, shape index: {}]
  %s3 = inlined_call_operand.vmem [shape: f32[1,8,2048], index: 3, kind: output, shape index: {}]
  %s4 = sld [smem:[#allocation0]]
  $region87: #{generator_forward.10} parent=0
    _
  %s6 = ssub.s32 1, %s4
  %s7 = scalar_select 0, %s6, %s4
  $region1: #{generator_forward.10} parent=0
    #allocation2 [shape = 'u8[106496]{0}', space=vmem, size = 0x1a000, scoped, tag = 'input window, operand 1']
    #allocation3 [shape = 'u8[2048]{0}', space=vmem, size = 0x800, scoped, tag = 'input window, operand 2']
    #allocation4 [shape = 's32[2]{0}', space=sflag, size = 0x8, scoped, tag = 'scoped memory for generator_forward.10']
    %8 = vsyncpa [#allocation4], 0
    %s9 = scalar_lea.sflag [#allocation4], 1
    %10 = vsyncpa %s9, 0
    loop: start=0, step=1, limit=10
    $region2: #{generator_forward.10} parent=1 // loop_pre_header
      _
    $region3: #{generator_forward.10} parent=1 // loop_header
      %s12 = sphi 0, %s16
      %p13 = scmp.ge.s32.totalorder %s12, 10
      %s19 = sphi 0, %s38
      %s20 = sphi 0, %s34
      %s21 = sphi 0, %s30
      %s22 = sphi 0, %s19
      %s23 = sphi 0, %s20
      %s24 = sphi 0, %s21
      %s25 = sphi 0, %s22
      %s26 = sphi 0, %s23
      %s27 = sphi 0, %s24
      %s43 = sphi 0, %s45
      %s46 = sphi 0, %s43
      %s47 = sphi 0, %s46
      %s63 = sphi 0, %s47
      %s71 = sphi 0, %s73
      %s74 = sphi 0, %s71
      %s75 = sphi 0, %s74
      %s91 = sphi 0, %s75
      %s97 = sphi 0, %s99
      %s100 = sphi 0, %s97
      %s101 = sphi 0, %s100
      %s117 = sphi 0, %s101
      %s127 = sphi 0, %s129
      %s130 = sphi 0, %s127
      %s131 = sphi 0, %s130
      %s147 = sphi 0, %s131
    $region4: #{generator_forward.10} parent=1 // loop_header_branch
      %15 = sbr.rel (%p13) target = $region8
    $region5: #{generator_forward.10} parent=1 // loop_body
      %s17 = ssub.s32 %s12, 1
      %s18 = ssub.s32 %s12, 2
      %s28 = sadd.s32 1, %s21
      %p29 = scmp.ge.s32.totalorder %s28, 8
      %s30 = scalar_select %p29, 0, %s28
      %s31 = sadd.s32 1, %s20
      %s32 = scalar_select %p29, %s31, %s20
      %p33 = scmp.ge.s32.totalorder %s32, 1
      %s34 = scalar_select %p33, 0, %s32
      %s35 = sadd.s32 1, %s19
      %s36 = scalar_select %p33, %s35, %s19
      %p37 = scmp.ge.s32.totalorder %s36, 1
      %s38 = scalar_select %p37, 0, %s36
      %s39 = ssub.s32 %s19, %s38
      %s40 = ssub.s32 %s20, %s34
      %s41 = sor.u32 %s39, %s40
      %p42 = scmp.eq.s32.totalorder %s41, 0
      %s44 = sadd.s32 %s43, 1
      %s45 = scalar_select %p42, %s43, %s44
      %p48 = pneg %p42
      %p49 = scmp.eq.s32.totalorder %s12, 7
      %p50 = por %p48, %p49
      %p51 = scmp.ne.s32.totalorder %s43, %s46
      %p52 = scmp.eq.s32.totalorder %s12, 0
      %p53 = por %p51, %p52
      %p54 = scmp.ne.s32.totalorder %s43, %s46
      %p55 = scmp.eq.s32.totalorder %s17, 7
      %p56 = por %p54, %p55
      %p57 = scmp.ne.s32.totalorder %s46, %s47
      %p58 = scmp.eq.s32.totalorder %s17, 0
      %p59 = por %p57, %p58
      %p60 = scmp.ne.s32.totalorder %s46, %s47
      %p61 = scmp.eq.s32.totalorder %s18, 7
      %p62 = por %p60, %p61
      %p64 = scmp.ne.s32.totalorder %s47, %s63
      %p65 = scmp.eq.s32.totalorder %s18, 0
      %p66 = por %p64, %p65
      %s67 = ssub.s32 %s19, %s38
      %s68 = ssub.s32 %s21, %s30
      %s69 = sor.u32 %s67, %s68
      %p70 = scmp.eq.s32.totalorder %s69, 0
      %s72 = sadd.s32 %s71, 1
      %s73 = scalar_select %p70, %s71, %s72
      %p76 = pneg %p70
      %p77 = scmp.eq.s32.totalorder %s12, 7
      %p78 = por %p76, %p77
      %p79 = scmp.ne.s32.totalorder %s71, %s74
      %p80 = scmp.eq.s32.totalorder %s12, 0
      %p81 = por %p79, %p80
      %p82 = scmp.ne.s32.totalorder %s71, %s74
      %p83 = scmp.eq.s32.totalorder %s17, 7
      %p84 = por %p82, %p83
      %p85 = scmp.ne.s32.totalorder %s74, %s75
      %p86 = scmp.eq.s32.totalorder %s17, 0
      %p87 = por %p85, %p86
      %p88 = scmp.ne.s32.totalorder %s74, %s75
      %p89 = scmp.eq.s32.totalorder %s18, 7
      %p90 = por %p88, %p89
      %p92 = scmp.ne.s32.totalorder %s75, %s91
      %p93 = scmp.eq.s32.totalorder %s18, 0
      %p94 = por %p92, %p93
      %s95 = ssub.s32 %s21, %s30
      %p96 = scmp.eq.s32.totalorder %s95, 0
      %s98 = sadd.s32 %s97, 1
      %s99 = scalar_select %p96, %s97, %s98
      %p102 = pneg %p96
      %p103 = scmp.eq.s32.totalorder %s12, 7
      %p104 = por %p102, %p103
      %p105 = scmp.ne.s32.totalorder %s97, %s100
      %p106 = scmp.eq.s32.totalorder %s12, 0
      %p107 = por %p105, %p106
      %p108 = scmp.ne.s32.totalorder %s97, %s100
      %p109 = scmp.eq.s32.totalorder %s17, 7
      %p110 = por %p108, %p109
      %p111 = scmp.ne.s32.totalorder %s100, %s101
      %p112 = scmp.eq.s32.totalorder %s17, 0
      %p113 = por %p111, %p112
      %p114 = scmp.ne.s32.totalorder %s100, %s101
      %p115 = scmp.eq.s32.totalorder %s18, 7
      %p116 = por %p114, %p115
      %p118 = scmp.ne.s32.totalorder %s101, %s117
      %p119 = scmp.eq.s32.totalorder %s18, 0
      %p120 = por %p118, %p119
      %s121 = ssub.s32 %s19, %s38
      %s122 = ssub.s32 %s20, %s34
      %s123 = sor.u32 %s121, %s122
      %s124 = ssub.s32 %s21, %s30
      %s125 = sor.u32 %s123, %s124
      %p126 = scmp.eq.s32.totalorder %s125, 0
      %s128 = sadd.s32 %s127, 1
      %s129 = scalar_select %p126, %s127, %s128
      %p132 = pneg %p126
      %p133 = scmp.eq.s32.totalorder %s12, 7
      %p134 = por %p132, %p133
      %p135 = scmp.ne.s32.totalorder %s127, %s130
      %p136 = scmp.eq.s32.totalorder %s12, 0
      %p137 = por %p135, %p136
      %p138 = scmp.ne.s32.totalorder %s127, %s130
      %p139 = scmp.eq.s32.totalorder %s17, 7
      %p140 = por %p138, %p139
      %p141 = scmp.ne.s32.totalorder %s130, %s131
      %p142 = scmp.eq.s32.totalorder %s17, 0
      %p143 = por %p141, %p142
      %p144 = scmp.ne.s32.totalorder %s130, %s131
      %p145 = scmp.eq.s32.totalorder %s18, 7
      %p146 = por %p144, %p145
      %p148 = scmp.ne.s32.totalorder %s131, %s147
      %p149 = scmp.eq.s32.totalorder %s18, 0
      %p150 = por %p148, %p149
      %p151 = scmp.le.s32.totalorder 1, %s12
      %p152 = scmp.lt.s32.totalorder %s12, 9
      %p153 = pnand %p151, %p152
      %p154 = pneg %p153
      // Predicated region
      $region9: #{generator_forward.10} parent=5 // pred_check
        _
      $region10: #{generator_forward.10} parent=5 // pred_check_branch
        %156 = sbr.rel (%p153) target = $region12
      $region11: #{generator_forward.10} parent=5 // pred_region
        %s157 = ssub.s32 %s12, 1
        // Predicated region
        $region13: #{generator_forward.10} parent=11 // pred_check
          %p158 = pneg %p59
        $region14: #{generator_forward.10} parent=11 // pred_check_branch
          %160 = sbr.rel (%p158) target = $region16
        $region15: #{generator_forward.10} parent=11 // pred_region
          %p161 = scmp.lt.s32.totalorder %s22, 0
          %s162 = scalar_select %p161, %s22, 0
          %p163 = scmp.lt.s32.totalorder %s23, 0
          %s164 = scalar_select %p163, %s23, 0
          %s165 = sadd.s32 %s164, %s162
          %s166 = smul.addr %s165, 4
          %s167 = scalar_lea.vmem %s0, %s166
        $region16: #{generator_forward.10} parent=11 // pred_fallthru
          _
      $region12: #{generator_forward.10} parent=5 // pred_fallthru
        _
      %p168 = scmp.lt.s32.totalorder %s12, 8
      // Predicated region
      $region17: #{generator_forward.10} parent=5 // pred_check
        %p169 = pneg %p168
      $region18: #{generator_forward.10} parent=5 // pred_check_branch
        %171 = sbr.rel (%p169) target = $region20
      $region19: #{generator_forward.10} parent=5 // pred_region
        // Predicated region
        $region21: #{generator_forward.10} parent=19 // pred_check
          %p172 = pneg %p81
        $region22: #{generator_forward.10} parent=19 // pred_check_branch
          %174 = sbr.rel (%p172) target = $region24
        $region23: #{generator_forward.10} parent=19 // pred_region
          %s175 = sand.u32 %s71, 1
          %s176 = sand.u32 %s71, 1
          %s177 = smul.addr %s176, 104
          %s178 = scalar_lea.vmem [#allocation2], %s177
          %s179 = smul.u32 2, %s21
          %s180 = smul.addr %s19, 208
          %s181 = sadd.s32 %s179, %s180
          %s182 = smul.addr %s181, 4
          %s183 = scalar_lea.vmem %s1, %s182
          // Predicated region
          $region25: #{generator_forward.10} parent=23 // pred_check
            _
          $region26: #{generator_forward.10} parent=23 // pred_check_branch
            %185 = sbr.rel (0) target = $region28
          $region27: #{generator_forward.10} parent=23 // pred_region
            // Predicated region
            $region29: #{generator_forward.10} parent=27 // pred_check
              _
            $region30: #{generator_forward.10} parent=27 // pred_check_branch
              %187 = sbr.rel (0) target = $region32
            $region31: #{generator_forward.10} parent=27 // pred_region
              // Predicated region
              $region44: #{generator_forward.10} parent=31 // pred_check
                _
              $region45: #{generator_forward.10} parent=31 // pred_check_branch
                %227 = sbr.rel (0) target = $region47
              $region46: #{generator_forward.10} parent=31 // pred_region
                loop: start=0, step=1, limit=1
                $region48: #{generator_forward.10} parent=46 // loop_pre_header
                  _
                $region49: #{generator_forward.10} parent=46 // loop_header
                  %s229 = sphi 0, %s233
                  %p230 = scmp.ge.s32.totalorder %s229, 1
                  %s234 = sphi %s183, %s183
                  %s235 = sphi %s178, %s178
                $region50: #{generator_forward.10} parent=46 // loop_header_branch
                  %232 = sbr.rel (%p230) target = $region54
                $region51: #{generator_forward.10} parent=46 // loop_body
                  %v236 = vld [vmem:[%s234] sm:$0xff]
                  %237 = vst [vmem:[%s235] sm:$0xff] %v236
                  %v238 = vld [vmem:[%s234 + $0x40] sm:$0xff]
                  %239 = vst [vmem:[%s235 + $0x8] sm:$0xff] %v238
                  %v240 = vld [vmem:[%s234 + $0x80] sm:$0xff]
                  %241 = vst [vmem:[%s235 + $0x10] sm:$0xff] %v240
                  %v242 = vld [vmem:[%s234 + $0xc0] sm:$0xff]
                  %243 = vst [vmem:[%s235 + $0x18] sm:$0xff] %v242
                  %v244 = vld [vmem:[%s234 + $0x100] sm:$0xff]
                  %245 = vst [vmem:[%s235 + $0x20] sm:$0xff] %v244
                  %v246 = vld [vmem:[%s234 + $0x140] sm:$0xff]
                  %247 = vst [vmem:[%s235 + $0x28] sm:$0xff] %v246
                  %v248 = vld [vmem:[%s234 + $0x180] sm:$0xff]
                  %249 = vst [vmem:[%s235 + $0x30] sm:$0xff] %v248
                  %v250 = vld [vmem:[%s234 + $0x1c0] sm:$0xff]
                  %251 = vst [vmem:[%s235 + $0x38] sm:$0xff] %v250
                  %v252 = vld [vmem:[%s234 + $0x200] sm:$0xff]
                  %253 = vst [vmem:[%s235 + $0x40] sm:$0xff] %v252
                  %v254 = vld [vmem:[%s234 + $0x240] sm:$0xff]
                  %255 = vst [vmem:[%s235 + $0x48] sm:$0xff] %v254
                  %v256 = vld [vmem:[%s234 + $0x280] sm:$0xff]
                  %257 = vst [vmem:[%s235 + $0x50] sm:$0xff] %v256
                  %v258 = vld [vmem:[%s234 + $0x2c0] sm:$0xff]
                  %259 = vst [vmem:[%s235 + $0x58] sm:$0xff] %v258
                  %v260 = vld [vmem:[%s234 + $0x300] sm:$0xff]
                  %261 = vst [vmem:[%s235 + $0x60] sm:$0xff] %v260
                $region52: #{generator_forward.10} parent=46 // loop_footer
                  %s233 = sadd.s32 1, %s229
                $region53: #{generator_forward.10} parent=46 // loop_footer_branch
                  %228 = sbr.rel target = $region49
                $region54: #{generator_forward.10} parent=46 // loop_exit
                  _
              $region47: #{generator_forward.10} parent=31 // pred_fallthru
                _
              // Predicated region
              $region55: #{generator_forward.10} parent=31 // pred_check
                _
              $region56: #{generator_forward.10} parent=31 // pred_check_branch
                %263 = sbr.rel target = $region58
              $region57: #{generator_forward.10} parent=31 // pred_region
                _
              $region58: #{generator_forward.10} parent=31 // pred_fallthru
                _
            $region32: #{generator_forward.10} parent=27 // pred_fallthru
              _
            // Predicated region
            $region33: #{generator_forward.10} parent=27 // pred_check
              _
            $region34: #{generator_forward.10} parent=27 // pred_check_branch
              %189 = sbr.rel target = $region36
            $region35: #{generator_forward.10} parent=27 // pred_region
              %s191 = ssub.s32 256, 1
              loop: start=0, step=1, limit=1
              $region37: #{generator_forward.10} parent=35 // loop_pre_header
                _
              $region38: #{generator_forward.10} parent=35 // loop_header
                %s193 = sphi 0, %s197
                %p194 = scmp.ge.s32.totalorder %s193, 1
                %s198 = sphi %s183, %s183
                %s199 = sphi %s178, %s178
              $region39: #{generator_forward.10} parent=35 // loop_header_branch
                %196 = sbr.rel (%p194) target = $region43
              $region40: #{generator_forward.10} parent=35 // loop_body
                %v200 = vld [vmem:[%s198] sm:%s191]
                %201 = vst [vmem:[%s199] sm:%s191] %v200
                %v202 = vld [vmem:[%s198 + $0x40] sm:%s191]
                %203 = vst [vmem:[%s199 + $0x8] sm:%s191] %v202
                %v204 = vld [vmem:[%s198 + $0x80] sm:%s191]
                %205 = vst [vmem:[%s199 + $0x10] sm:%s191] %v204
                %v206 = vld [vmem:[%s198 + $0xc0] sm:%s191]
                %207 = vst [vmem:[%s199 + $0x18] sm:%s191] %v206
                %v208 = vld [vmem:[%s198 + $0x100] sm:%s191]
                %209 = vst [vmem:[%s199 + $0x20] sm:%s191] %v208
                %v210 = vld [vmem:[%s198 + $0x140] sm:%s191]
                %211 = vst [vmem:[%s199 + $0x28] sm:%s191] %v210
                %v212 = vld [vmem:[%s198 + $0x180] sm:%s191]
                %213 = vst [vmem:[%s199 + $0x30] sm:%s191] %v212
                %v214 = vld [vmem:[%s198 + $0x1c0] sm:%s191]
                %215 = vst [vmem:[%s199 + $0x38] sm:%s191] %v214
                %v216 = vld [vmem:[%s198 + $0x200] sm:%s191]
                %217 = vst [vmem:[%s199 + $0x40] sm:%s191] %v216
                %v218 = vld [vmem:[%s198 + $0x240] sm:%s191]
                %219 = vst [vmem:[%s199 + $0x48] sm:%s191] %v218
                %v220 = vld [vmem:[%s198 + $0x280] sm:%s191]
                %221 = vst [vmem:[%s199 + $0x50] sm:%s191] %v220
                %v222 = vld [vmem:[%s198 + $0x2c0] sm:%s191]
                %223 = vst [vmem:[%s199 + $0x58] sm:%s191] %v222
                %v224 = vld [vmem:[%s198 + $0x300] sm:%s191]
                %225 = vst [vmem:[%s199 + $0x60] sm:%s191] %v224
              $region41: #{generator_forward.10} parent=35 // loop_footer
                %s197 = sadd.s32 1, %s193
              $region42: #{generator_forward.10} parent=35 // loop_footer_branch
                %192 = sbr.rel target = $region38
              $region43: #{generator_forward.10} parent=35 // loop_exit
                _
            $region36: #{generator_forward.10} parent=27 // pred_fallthru
              _
          $region28: #{generator_forward.10} parent=23 // pred_fallthru
            _
          %264 = vnop
        $region24: #{generator_forward.10} parent=19 // pred_fallthru
          _
        // Predicated region
        $region59: #{generator_forward.10} parent=19 // pred_check
          %p265 = pneg %p107
        $region60: #{generator_forward.10} parent=19 // pred_check_branch
          %267 = sbr.rel (%p265) target = $region62
        $region61: #{generator_forward.10} parent=19 // pred_region
          %s268 = sand.u32 %s97, 1
          %s269 = scalar_lea.sflag [#allocation4], %s268
          %s270 = sand.u32 %s97, 1
          %s271 = smul.addr %s270, 2
          %s272 = scalar_lea.vmem [#allocation3], %s271
          %s273 = smul.u32 2, %s21
          %s275 = ssub.s32 32, 32
          %276 = vsyncadd %s269, %s275
          %s277 = smul.addr %s273, 16
          %s278 = scalar_lea.hbm %s2, %s277
          %s280 = sshll.u32 %s272, 4
          %s281 = int_to_ptr.vmem [resolvable:$true] %s280
          %283 = dma.hbm_to_vmem [thread:$0]  %s278, 32, %s281, %s269
        $region62: #{generator_forward.10} parent=19 // pred_fallthru
          _
      $region20: #{generator_forward.10} parent=5 // pred_fallthru
        _
      %p284 = scmp.le.s32.totalorder 1, %s12
      %p285 = scmp.lt.s32.totalorder %s12, 9
      %p286 = pnand %p284, %p285
      %p287 = pneg %p286
      // Predicated region
      $region63: #{generator_forward.10} parent=5 // pred_check
        _
      $region64: #{generator_forward.10} parent=5 // pred_check_branch
        %289 = sbr.rel (%p286) target = $region66
      $region65: #{generator_forward.10} parent=5 // pred_region
        %s290 = ssub.s32 %s12, 1
        %s291 = sand.u32 %s74, 1
        %s292 = sand.u32 %s74, 1
        %s293 = smul.addr %s292, 104
        %s294 = scalar_lea.vmem [#allocation2], %s293
        // Predicated region
        $region67: #{generator_forward.10} parent=65 // pred_check
          %p295 = pneg %p87
        $region68: #{generator_forward.10} parent=65 // pred_check_branch
          %297 = sbr.rel (%p295) target = $region70
        $region69: #{generator_forward.10} parent=65 // pred_region
          _
        $region70: #{generator_forward.10} parent=65 // pred_fallthru
          _
        %s298 = sand.u32 %s100, 1
        %s299 = scalar_lea.sflag [#allocation4], %s298
        %s300 = sand.u32 %s100, 1
        %s301 = smul.addr %s300, 2
        %s302 = scalar_lea.vmem [#allocation3], %s301
        // Predicated region
        $region71: #{generator_forward.10} parent=65 // pred_check
          %p303 = pneg %p113
        $region72: #{generator_forward.10} parent=65 // pred_check_branch
          %305 = sbr.rel (%p303) target = $region74
        $region73: #{generator_forward.10} parent=65 // pred_region
          %306 = dma.done %s299, 32
        $region74: #{generator_forward.10} parent=65 // pred_fallthru
          _
        %p307 = scmp.lt.s32.totalorder %s22, 0
        %s308 = scalar_select %p307, %s22, 0
        %p309 = scmp.lt.s32.totalorder %s23, 0
        %s310 = scalar_select %p309, %s23, 0
        %s311 = sadd.s32 %s310, %s308
        %s312 = smul.addr %s311, 4
        %s313 = scalar_lea.vmem %s0, %s312
        %p314 = pneg %p59
        %p315 = pneg %p56
        %s316 = sand.u32 %s74, 1
        %s317 = sand.u32 %s74, 1
        %s318 = smul.addr %s317, 104
        %s319 = scalar_lea.vmem [#allocation2], %s318
        %p320 = pneg %p87
        %p321 = pneg %p84
        %s322 = sand.u32 %s100, 1
        %s323 = scalar_lea.sflag [#allocation4], %s322
        %s324 = sand.u32 %s100, 1
        %s325 = smul.addr %s324, 2
        %s326 = scalar_lea.vmem [#allocation3], %s325
        %p327 = pneg %p113
        %p328 = pneg %p110
        %p329 = pneg %p143
        %p330 = pneg %p140
        %s331 = smul.u32 2, %s24
        %p332 = scmp.lt.s32.totalorder %s22, 0
        %s333 = scalar_select %p332, %s22, 0
        %p334 = scmp.lt.s32.totalorder %s23, 0
        %s335 = scalar_select %p334, %s23, 0
        %p336 = scmp.lt.s32.totalorder %s331, 15
        %s337 = scalar_select %p336, %s331, 15
        %s338 = smul.addr %s335, 16
        %s339 = sadd.s32 %s337, %s338
        %s340 = smul.addr %s333, 16
        %s341 = sadd.s32 %s339, %s340
        %s342 = smul.addr %s341, 8
        %s343 = scalar_lea.vmem %s3, %s342
        %p344 = scmp.lt.s32.totalorder %s22, 0
        %s345 = scalar_select %p344, %s22, 0
        %p346 = scmp.lt.s32.totalorder %s23, 0
        %s347 = scalar_select %p346, %s23, 0
        %s348 = sadd.s32 %s347, %s345
        %s349 = smul.addr %s348, 4
        %s350 = scalar_lea.vmem %s0, %s349
        %s351 = smul.u32 2, %s24
        %s352 = smul.u32 2, %s24
        %s353 = smul.u32 2, %s24
        %p354 = scmp.lt.s32.totalorder %s22, 0
        %s355 = scalar_select %p354, %s22, 0
        %p356 = scmp.lt.s32.totalorder %s23, 0
        %s357 = scalar_select %p356, %s23, 0
        %p358 = scmp.lt.s32.totalorder %s353, 15
        %s359 = scalar_select %p358, %s353, 15
        %s360 = smul.addr %s357, 16
        %s361 = sadd.s32 %s359, %s360
        %s362 = smul.addr %s355, 16
        %s363 = sadd.s32 %s361, %s362
        %s364 = smul.addr %s363, 8
        %s365 = scalar_lea.vmem %s3, %s364
        %s366 = smul.u32 2, %s24
        %v368 = vld [vmem:[%s350] sm:$0xf]
        %v369 = vld [vmem:[%s294] sm:$0xff]
        %v370 = vld [vmem:[%s294 + $0x8] sm:$0xff]
        %v371 = vld [vmem:[%s294 + $0x10] sm:$0xff]
        %v372 = vld [vmem:[%s294 + $0x18] sm:$0xff]
        %v373 = vld [vmem:[%s294 + $0x20] sm:$0xff]
        %v374 = vld [vmem:[%s294 + $0x28] sm:$0xff]
        %v375 = vld [vmem:[%s294 + $0x30] sm:$0xff]
        %v376 = vld [vmem:[%s294 + $0x38] sm:$0xff]
        %v377 = vld [vmem:[%s294 + $0x40] sm:$0xff]
        %v378 = vld [vmem:[%s294 + $0x48] sm:$0xff]
        %v379 = vld [vmem:[%s294 + $0x50] sm:$0xff]
        %v380 = vld [vmem:[%s294 + $0x58] sm:$0xff]
        %v381 = vld [vmem:[%s294 + $0x60] sm:$0xff]
        %v382 = vld [vmem:[%s302] sm:$0x3]
        %v384 = vlaneseq
        %v385 = vshrl.u32 %v384, 7
        %v386 = vsub.s32 0, %v385
        %v387 = vrot.slane %v382, %v386
        %v388 = vlaneseq
        %v389 = vshrl.u32 %v388, 7
        %v390 = vsub.s32 1, %v389
        %v391 = vrot.slane %v382, %v390
        %v407 = vunpack.c.l.b16 %v369
        %v408 = vunpack.c.h.b16 %v369
        %v409 = vunpack.c.l.b16 %v370
        %v410 = vunpack.c.h.b16 %v370
        %v411 = vunpack.c.l.b16 %v371
        %v412 = vunpack.c.h.b16 %v371
        %v413 = vunpack.c.l.b16 %v372
        %v414 = vunpack.c.h.b16 %v372
        %v415 = vunpack.c.l.b16 %v373
        %v416 = vunpack.c.h.b16 %v373
        %v417 = vunpack.c.l.b16 %v374
        %v418 = vunpack.c.h.b16 %v374
        %v419 = vunpack.c.l.b16 %v375
        %v420 = vunpack.c.h.b16 %v375
        %v421 = vunpack.c.l.b16 %v376
        %v422 = vunpack.c.h.b16 %v376
        %v423 = vunpack.c.l.b16 %v377
        %v424 = vunpack.c.h.b16 %v377
        %v425 = vunpack.c.l.b16 %v378
        %v426 = vunpack.c.h.b16 %v378
        %v427 = vunpack.c.l.b16 %v379
        %v428 = vunpack.c.h.b16 %v379
        %v429 = vunpack.c.l.b16 %v380
        %v430 = vunpack.c.h.b16 %v380
        %v431 = vunpack.c.l.b16 %v381
        %v432 = vunpack.c.h.b16 %v381
        %v433 = vpack.c.b16 %v409, %v407
        %v434 = vpack.c.b16 %v410, %v408
        %v435 = vpack.c.b16 %v413, %v411
        %v436 = vpack.c.b16 %v414, %v412
        %v437 = vpack.c.b16 %v417, %v415
        %v438 = vpack.c.b16 %v418, %v416
        %v439 = vpack.c.b16 %v421, %v419
        %v440 = vpack.c.b16 %v422, %v420
        %v441 = vpack.c.b16 %v425, %v423
        %v442 = vpack.c.b16 %v426, %v424
        %v443 = vpack.c.b16 %v429, %v427
        %v444 = vpack.c.b16 %v430, %v428
        %v445 = vpack.c.b16 %v431, %v431
        %v446 = vpack.c.b16 %v432, %v432
        %vm459 = vcmask 850944
        %v461 = vsel %vm459, %v368, 0
        %vm463 = vcmask 1043456
        %v465 = vsel %vm463, %v445, 0
        %v468 = vsel %vm463, %v446, 0
        %470 = vmatprep.subr.bf16.mxu0 0
        %471 = vmatpush1.bf16.msra.mxu0 0
        %472 = vmatprep.subr.bf16.mxu0 %v468
        %473 = vmatpush1.bf16.msra.mxu0 %v465
        %474 = vmatprep.subr.bf16.mxu0 %v444
        %475 = vmatpush1.bf16.msra.mxu0 %v443
        %476 = vmatprep.subr.bf16.mxu0 %v442
        %477 = vmatpush1.bf16.msra.mxu0 %v441
        %478 = vmatprep.subr.bf16.mxu0 %v440
        %479 = vmatpush1.bf16.msra.mxu0 %v439
        %480 = vmatprep.subr.bf16.mxu0 %v438
        %481 = vmatpush1.bf16.msra.mxu0 %v437
        %482 = vmatprep.subr.bf16.mxu0 %v436
        %483 = vmatpush1.bf16.msra.mxu0 %v435
        %484 = vmatprep.subr.bf16.mxu0 %v434
        %485 = vmatpush1.bf16.msra.mxu0 %v433
        %486 = vmatprep.subr.bf16.mxu0 0
        %487 = vmatpush2.bf16.msra.mxu0 0
        %488 = vmatprep.subr.bf16.mxu0 0
        %489 = vmatpush2.bf16.msra.mxu0 0
        %490 = vmatprep.subr.bf16.mxu0 0
        %491 = vmatpush2.bf16.msra.mxu0 0
        %492 = vmatprep.subr.bf16.mxu0 0
        %493 = vmatpush2.bf16.msra.mxu0 0
        %494 = vmatprep.subr.bf16.mxu0 0
        %495 = vmatpush2.bf16.msra.mxu0 0
        %496 = vmatprep.subr.bf16.mxu0 0
        %497 = vmatpush2.bf16.msra.mxu0 0
        %498 = vmatprep.subr.bf16.mxu0 0
        %499 = vmatpush2.bf16.msra.mxu0 0
        %500 = vmatprep.subr.bf16.mxu0 0
        %501 = vmatpush2.bf16.msra.mxu0 0
        %502 = vmatprep.mubr.bf16.mxu0 0
        %503 = vmatmul.mubr.bf16.gmra.mxu0 %v461
        %v504 = vpop.f32.mrf.mxu0
        %v505 = vadd.f32 %v387, %v504
        %v506 = vpop.f32.mrf.mxu0
        %v507 = vadd.f32 %v391, %v506
        %v508 = vpop.f32.mrf.mxu0
        %v509 = vpop.f32.mrf.mxu0
        %510 = vdwg.mxu0
        %511 = vst [vmem:[%s365] sm:$0xff] %v505
        %512 = vst [vmem:[%s365 + $0x8] sm:$0xff] %v507
        %s513 = smul.u32 2, %s24
        %p514 = scmp.lt.s32.totalorder %s22, 0
        %s515 = scalar_select %p514, %s22, 0
        %p516 = scmp.lt.s32.totalorder %s23, 0
        %s517 = scalar_select %p516, %s23, 0
        %p518 = scmp.lt.s32.totalorder %s513, 15
        %s519 = scalar_select %p518, %s513, 15
        %s520 = smul.addr %s517, 16
        %s521 = sadd.s32 %s519, %s520
        %s522 = smul.addr %s515, 16
        %s523 = sadd.s32 %s521, %s522
        %s524 = smul.addr %s523, 8
        %s525 = scalar_lea.vmem %s3, %s524
        // Predicated region
        $region75: #{generator_forward.10} parent=65 // pred_check
          %p526 = pneg %p140
        $region76: #{generator_forward.10} parent=65 // pred_check_branch
          %528 = sbr.rel (%p526) target = $region78
        $region77: #{generator_forward.10} parent=65 // pred_region
          %s529 = smul.u32 2, %s24
        $region78: #{generator_forward.10} parent=65 // pred_fallthru
          _
      $region66: #{generator_forward.10} parent=5 // pred_fallthru
        _
      %p530 = scmp.le.s32.totalorder 2, %s12
      // Predicated region
      $region79: #{generator_forward.10} parent=5 // pred_check
        %p531 = pneg %p530
      $region80: #{generator_forward.10} parent=5 // pred_check_branch
        %533 = sbr.rel (%p531) target = $region82
      $region81: #{generator_forward.10} parent=5 // pred_region
        %s534 = ssub.s32 %s12, 2
        // Predicated region
        $region83: #{generator_forward.10} parent=81 // pred_check
          %p535 = pneg %p146
        $region84: #{generator_forward.10} parent=81 // pred_check_branch
          %537 = sbr.rel (%p535) target = $region86
        $region85: #{generator_forward.10} parent=81 // pred_region
          %s538 = smul.u32 2, %s27
          %p539 = scmp.lt.s32.totalorder %s25, 0
          %s540 = scalar_select %p539, %s25, 0
          %p541 = scmp.lt.s32.totalorder %s26, 0
          %s542 = scalar_select %p541, %s26, 0
          %p543 = scmp.lt.s32.totalorder %s538, 15
          %s544 = scalar_select %p543, %s538, 15
          %s545 = smul.addr %s542, 16
          %s546 = sadd.s32 %s544, %s545
          %s547 = smul.addr %s540, 16
          %s548 = sadd.s32 %s546, %s547
          %s549 = smul.addr %s548, 8
          %s550 = scalar_lea.vmem %s3, %s549
        $region86: #{generator_forward.10} parent=81 // pred_fallthru
          _
      $region82: #{generator_forward.10} parent=5 // pred_fallthru
        _
    $region6: #{generator_forward.10} parent=1 // loop_footer
      %s16 = sadd.s32 1, %s12
    $region7: #{generator_forward.10} parent=1 // loop_footer_branch
      %11 = sbr.rel target = $region3
    $region8: #{generator_forward.10} parent=1 // loop_exit
      _
    %551 = vsyncpa [#allocation4], 1
    %s552 = scalar_lea.sflag [#allocation4], 1
    %553 = vsyncpa %s552, 1

// kernel: generator_forward.11
$region0: #{generator_forward.11}
  #allocation0 [shape = 'u32[]', space=smem, size = 0x4, offset = 0x4, fixed_abs, tag = 'smem constant byte address 0x4 - core index']
  #allocation1 [shape = 'u32[144,128]{1,0:T(1,128)}', space=vmem, size = 0x12000, scoped, tag = 'internal scratch']
  #allocation2 [shape = 'f32[1,128]{1,0:T(1,128)}', space=vmem, size = 0x200, scoped, tag = 'scratch operand']
  #allocation3 [shape = 'f32[1,128]{1,0:T(1,128)}', space=vmem, size = 0x200, scoped, tag = 'scratch operand']
  %s0 = inlined_call_operand.vmem [shape: f32[32,128], index: 0, kind: input, shape index: {}]
  %s1 = inlined_call_operand.vmem [shape: f32[1,128], index: 1, kind: output, shape index: {0}]
  %s2 = inlined_call_operand.vmem [shape: f32[1,128], index: 2, kind: output, shape index: {1}]
  %3 = xla_tuple %s1, %s2
  %s4 = sld [smem:[#allocation0]]
  $region30: #{generator_forward.11} parent=0
    _
  %s6 = ssub.s32 1, %s4
  %s7 = scalar_select 0, %s6, %s4
  // Predicated region
  $region2: #{generator_forward.11} parent=0 // pred_check
    _
  $region3: #{generator_forward.11} parent=0 // pred_check_branch
    %9 = sbr.rel (0) target = $region5
  $region4: #{generator_forward.11} parent=0 // pred_region
    _
  $region5: #{generator_forward.11} parent=0 // pred_fallthru
    _
  %p10 = scmp.eq.s32.totalorder 0, 0
  // Predicated region
  $region6: #{generator_forward.11} parent=0 // pred_check
    %p11 = pneg %p10
  $region7: #{generator_forward.11} parent=0 // pred_check_branch
    %13 = sbr.rel (%p11) target = $region9
  $region8: #{generator_forward.11} parent=0 // pred_region
    %14 = vst [vmem:[#allocation2] sm:$0x1] 0.0
    %15 = vst [vmem:[#allocation3] sm:$0x1] 0.0
  $region9: #{generator_forward.11} parent=0 // pred_fallthru
    _
  %v16 = vld [vmem:[%s0] sm:$0xff]
  %v17 = vld [vmem:[%s0 + $0x8] sm:$0xff]
  %v18 = vld [vmem:[%s0 + $0x10] sm:$0xff]
  %v19 = vld [vmem:[%s0 + $0x18] sm:$0xff]
  %v20 = vld [vmem:[#allocation2] sm:$0x1]
  %v21 = vadd.f32 %v16, %v17
  %v22 = vadd.f32 %v21, %v18
  %v23 = vadd.f32 %v22, %v19
  %v24 = vrot.slane %v23, 4
  %v25 = vadd.f32 %v23, %v24
  %v26 = vrot.slane %v25, 2
  %v27 = vadd.f32 %v25, %v26
  %v28 = vrot.slane %v27, 1
  %v29 = vadd.f32 %v27, %v28
  %v30 = vadd.f32 %v20, %v29
  %31 = vst [vmem:[#allocation2] sm:$0x1] %v30
  %v32 = vld [vmem:[#allocation3] sm:$0x1]
  %v33 = vmul.f32 %v16, %v16
  %v34 = vmul.f32 %v17, %v17
  %v35 = vmul.f32 %v18, %v18
  %v36 = vmul.f32 %v19, %v19
  %v37 = vadd.f32 %v33, %v34
  %v38 = vadd.f32 %v37, %v35
  %v39 = vadd.f32 %v38, %v36
  %v40 = vrot.slane %v39, 4
  %v41 = vadd.f32 %v39, %v40
  %v42 = vrot.slane %v41, 2
  %v43 = vadd.f32 %v41, %v42
  %v44 = vrot.slane %v43, 1
  %v45 = vadd.f32 %v43, %v44
  %v46 = vadd.f32 %v32, %v45
  %47 = vst [vmem:[#allocation3] sm:$0x1] %v46
  // Predicated region
  $region10: #{generator_forward.11} parent=0 // pred_check
    %p48 = pneg %p10
  $region11: #{generator_forward.11} parent=0 // pred_check_branch
    %50 = sbr.rel (%p48) target = $region13
  $region12: #{generator_forward.11} parent=0 // pred_region
    %v51 = vld [vmem:[#allocation2] sm:$0x1]
    %52 = vst [vmem:[%s1] sm:$0x1] %v51
    %v53 = vld [vmem:[#allocation3] sm:$0x1]
    %54 = vst [vmem:[%s2] sm:$0x1] %v53
  $region13: #{generator_forward.11} parent=0 // pred_fallthru
    _
  // Predicated region
  $region14: #{generator_forward.11} parent=0 // pred_check
    _
  $region15: #{generator_forward.11} parent=0 // pred_check_branch
    %56 = sbr.rel (0) target = $region17
  $region16: #{generator_forward.11} parent=0 // pred_region
    _
  $region17: #{generator_forward.11} parent=0 // pred_fallthru
    _
  // Predicated region
  $region18: #{generator_forward.11} parent=0 // pred_check
    _
  $region19: #{generator_forward.11} parent=0 // pred_check_branch
    %58 = sbr.rel (0) target = $region21
  $region20: #{generator_forward.11} parent=0 // pred_region
    _
  $region21: #{generator_forward.11} parent=0 // pred_fallthru
    _
  // Predicated region
  $region22: #{generator_forward.11} parent=0 // pred_check
    _
  $region23: #{generator_forward.11} parent=0 // pred_check_branch
    %60 = sbr.rel (0) target = $region25
  $region24: #{generator_forward.11} parent=0 // pred_region
    _
  $region25: #{generator_forward.11} parent=0 // pred_fallthru
    _
  // Predicated region
  $region26: #{generator_forward.11} parent=0 // pred_check
    _
  $region27: #{generator_forward.11} parent=0 // pred_check_branch
    %62 = sbr.rel (0) target = $region29
  $region28: #{generator_forward.11} parent=0 // pred_region
    _
  $region29: #{generator_forward.11} parent=0 // pred_fallthru
    _

// kernel: generator_forward.12
$region0: #{generator_forward.12}
  #allocation0 [shape = 'u32[]', space=smem, size = 0x4, offset = 0x4, fixed_abs, tag = 'smem constant byte address 0x4 - core index']
  #allocation1 [shape = 'u32[144,128]{1,0:T(1,128)}', space=vmem, size = 0x12000, scoped, tag = 'internal scratch']
  %s0 = inlined_call_operand.vmem [shape: f32[32,128], index: 0, kind: input, shape index: {}]
  %s1 = inlined_call_operand.vmem [shape: f32[1,128], index: 1, kind: input, shape index: {}]
  %s2 = inlined_call_operand.vmem [shape: f32[1,128], index: 2, kind: input, shape index: {}]
  %s3 = inlined_call_operand.vmem [shape: f32[32,128], index: 3, kind: output, shape index: {}]
  %s4 = sld [smem:[#allocation0]]
  $region22: #{generator_forward.12} parent=0
    _
  %s6 = ssub.s32 1, %s4
  %s7 = scalar_select 0, %s6, %s4
  // Predicated region
  $region2: #{generator_forward.12} parent=0 // pred_check
    _
  $region3: #{generator_forward.12} parent=0 // pred_check_branch
    %9 = sbr.rel (0) target = $region5
  $region4: #{generator_forward.12} parent=0 // pred_region
    _
  $region5: #{generator_forward.12} parent=0 // pred_fallthru
    _
  // Predicated region
  $region6: #{generator_forward.12} parent=0 // pred_check
    _
  $region7: #{generator_forward.12} parent=0 // pred_check_branch
    %11 = sbr.rel (0) target = $region9
  $region8: #{generator_forward.12} parent=0 // pred_region
    _
  $region9: #{generator_forward.12} parent=0 // pred_fallthru
    _
  // Predicated region
  $region10: #{generator_forward.12} parent=0 // pred_check
    _
  $region11: #{generator_forward.12} parent=0 // pred_check_branch
    %13 = sbr.rel (0) target = $region13
  $region12: #{generator_forward.12} parent=0 // pred_region
    _
  $region13: #{generator_forward.12} parent=0 // pred_fallthru
    _
  %v14 = vld [vmem:[%s0] sm:$0xff]
  %v15 = vld [vmem:[%s0 + $0x8] sm:$0xff]
  %v16 = vld [vmem:[%s0 + $0x10] sm:$0xff]
  %v17 = vld [vmem:[%s0 + $0x18] sm:$0xff]
  %v18 = vld [vmem:[%s1] sm:$0x1]
  %v20 = vlaneseq
  %v21 = vshrl.u32 %v20, 7
  %v22 = vsub.s32 0, %v21
  %v23 = vrot.slane %v18, %v22
  %v25 = vmul.f32 %v14, %v23
  %v26 = vmul.f32 %v15, %v23
  %v27 = vmul.f32 %v16, %v23
  %v28 = vmul.f32 %v17, %v23
  %v29 = vld [vmem:[%s2] sm:$0x1]
  %v31 = vlaneseq
  %v32 = vshrl.u32 %v31, 7
  %v33 = vsub.s32 0, %v32
  %v34 = vrot.slane %v29, %v33
  %v36 = vadd.f32 %v25, %v34
  %v37 = vadd.f32 %v26, %v34
  %v38 = vadd.f32 %v27, %v34
  %v39 = vadd.f32 %v28, %v34
  %v40 = vmax.f32 %v36, 0.0
  %v41 = vmax.f32 %v37, 0.0
  %v42 = vmax.f32 %v38, 0.0
  %v43 = vmax.f32 %v39, 0.0
  %44 = vst [vmem:[%s3] sm:$0xff] %v40
  %45 = vst [vmem:[%s3 + $0x8] sm:$0xff] %v41
  %46 = vst [vmem:[%s3 + $0x10] sm:$0xff] %v42
  %47 = vst [vmem:[%s3 + $0x18] sm:$0xff] %v43
  // Predicated region
  $region14: #{generator_forward.12} parent=0 // pred_check
    _
  $region15: #{generator_forward.12} parent=0 // pred_check_branch
    %49 = sbr.rel (0) target = $region17
  $region16: #{generator_forward.12} parent=0 // pred_region
    _
  $region17: #{generator_forward.12} parent=0 // pred_fallthru
    _
  // Predicated region
  $region18: #{generator_forward.12} parent=0 // pred_check
    _
  $region19: #{generator_forward.12} parent=0 // pred_check_branch
    %51 = sbr.rel (0) target = $region21
  $region20: #{generator_forward.12} parent=0 // pred_region
    _
  $region21: #{generator_forward.12} parent=0 // pred_fallthru
    _

// kernel: generator_forward.13
$region0: #{generator_forward.13}
  #allocation0 [shape = 'u32[]', space=smem, size = 0x4, offset = 0x4, fixed_abs, tag = 'smem constant byte address 0x4 - core index']
  #allocation1 [shape = 'u32[144,128]{1,0:T(1,128)}', space=vmem, size = 0x12000, scoped, tag = 'internal scratch']
  %s0 = inlined_call_operand.vmem [shape: bf16[4,32,552], index: 0, kind: input, shape index: {}]
  %s1 = inlined_call_operand.vmem [shape: bf16[4,552,64], index: 1, kind: input, shape index: {}]
  %s2 = inlined_call_operand.vmem [shape: f32[1,64], index: 2, kind: input, shape index: {}]
  %s3 = inlined_call_operand.vmem [shape: f32[4,32,64], index: 3, kind: output, shape index: {}]
  %s4 = sld [smem:[#allocation0]]
  $region45: #{generator_forward.13} parent=0
    _
  %s6 = ssub.s32 1, %s4
  %s7 = scalar_select 0, %s6, %s4
  loop: start=0, step=1, limit=6
  $region2: #{generator_forward.13} parent=0 // loop_pre_header
    _
  $region3: #{generator_forward.13} parent=0 // loop_header
    %s9 = sphi 0, %s13
    %p10 = scmp.ge.s32.totalorder %s9, 6
    %s16 = sphi 0, %s35
    %s17 = sphi 0, %s31
    %s18 = sphi 0, %s27
    %s19 = sphi 0, %s16
    %s20 = sphi 0, %s17
    %s21 = sphi 0, %s18
    %s22 = sphi 0, %s19
    %s23 = sphi 0, %s20
    %s24 = sphi 0, %s21
    %s40 = sphi 0, %s42
    %s43 = sphi 0, %s40
    %s44 = sphi 0, %s43
    %s60 = sphi 0, %s44
    %s68 = sphi 0, %s70
    %s71 = sphi 0, %s68
    %s72 = sphi 0, %s71
    %s88 = sphi 0, %s72
    %s94 = sphi 0, %s96
    %s97 = sphi 0, %s94
    %s98 = sphi 0, %s97
    %s114 = sphi 0, %s98
    %s124 = sphi 0, %s126
    %s127 = sphi 0, %s124
    %s128 = sphi 0, %s127
    %s144 = sphi 0, %s128
  $region4: #{generator_forward.13} parent=0 // loop_header_branch
    %12 = sbr.rel (%p10) target = $region8
  $region5: #{generator_forward.13} parent=0 // loop_body
    %s14 = ssub.s32 %s9, 1
    %s15 = ssub.s32 %s9, 2
    %s25 = sadd.s32 1, %s18
    %p26 = scmp.ge.s32.totalorder %s25, 1
    %s27 = scalar_select %p26, 0, %s25
    %s28 = sadd.s32 1, %s17
    %s29 = scalar_select %p26, %s28, %s17
    %p30 = scmp.ge.s32.totalorder %s29, 1
    %s31 = scalar_select %p30, 0, %s29
    %s32 = sadd.s32 1, %s16
    %s33 = scalar_select %p30, %s32, %s16
    %p34 = scmp.ge.s32.totalorder %s33, 4
    %s35 = scalar_select %p34, 0, %s33
    %s36 = ssub.s32 %s16, %s35
    %s37 = ssub.s32 %s17, %s31
    %s38 = sor.u32 %s36, %s37
    %p39 = scmp.eq.s32.totalorder %s38, 0
    %s41 = sadd.s32 %s40, 1
    %s42 = scalar_select %p39, %s40, %s41
    %p45 = pneg %p39
    %p46 = scmp.eq.s32.totalorder %s9, 3
    %p47 = por %p45, %p46
    %p48 = scmp.ne.s32.totalorder %s40, %s43
    %p49 = scmp.eq.s32.totalorder %s9, 0
    %p50 = por %p48, %p49
    %p51 = scmp.ne.s32.totalorder %s40, %s43
    %p52 = scmp.eq.s32.totalorder %s14, 3
    %p53 = por %p51, %p52
    %p54 = scmp.ne.s32.totalorder %s43, %s44
    %p55 = scmp.eq.s32.totalorder %s14, 0
    %p56 = por %p54, %p55
    %p57 = scmp.ne.s32.totalorder %s43, %s44
    %p58 = scmp.eq.s32.totalorder %s15, 3
    %p59 = por %p57, %p58
    %p61 = scmp.ne.s32.totalorder %s44, %s60
    %p62 = scmp.eq.s32.totalorder %s15, 0
    %p63 = por %p61, %p62
    %s64 = ssub.s32 %s16, %s35
    %s65 = ssub.s32 %s18, %s27
    %s66 = sor.u32 %s64, %s65
    %p67 = scmp.eq.s32.totalorder %s66, 0
    %s69 = sadd.s32 %s68, 1
    %s70 = scalar_select %p67, %s68, %s69
    %p73 = pneg %p67
    %p74 = scmp.eq.s32.totalorder %s9, 3
    %p75 = por %p73, %p74
    %p76 = scmp.ne.s32.totalorder %s68, %s71
    %p77 = scmp.eq.s32.totalorder %s9, 0
    %p78 = por %p76, %p77
    %p79 = scmp.ne.s32.totalorder %s68, %s71
    %p80 = scmp.eq.s32.totalorder %s14, 3
    %p81 = por %p79, %p80
    %p82 = scmp.ne.s32.totalorder %s71, %s72
    %p83 = scmp.eq.s32.totalorder %s14, 0
    %p84 = por %p82, %p83
    %p85 = scmp.ne.s32.totalorder %s71, %s72
    %p86 = scmp.eq.s32.totalorder %s15, 3
    %p87 = por %p85, %p86
    %p89 = scmp.ne.s32.totalorder %s72, %s88
    %p90 = scmp.eq.s32.totalorder %s15, 0
    %p91 = por %p89, %p90
    %s92 = ssub.s32 %s18, %s27
    %p93 = scmp.eq.s32.totalorder %s92, 0
    %s95 = sadd.s32 %s94, 1
    %s96 = scalar_select %p93, %s94, %s95
    %p99 = pneg %p93
    %p100 = scmp.eq.s32.totalorder %s9, 3
    %p101 = por %p99, %p100
    %p102 = scmp.ne.s32.totalorder %s94, %s97
    %p103 = scmp.eq.s32.totalorder %s9, 0
    %p104 = por %p102, %p103
    %p105 = scmp.ne.s32.totalorder %s94, %s97
    %p106 = scmp.eq.s32.totalorder %s14, 3
    %p107 = por %p105, %p106
    %p108 = scmp.ne.s32.totalorder %s97, %s98
    %p109 = scmp.eq.s32.totalorder %s14, 0
    %p110 = por %p108, %p109
    %p111 = scmp.ne.s32.totalorder %s97, %s98
    %p112 = scmp.eq.s32.totalorder %s15, 3
    %p113 = por %p111, %p112
    %p115 = scmp.ne.s32.totalorder %s98, %s114
    %p116 = scmp.eq.s32.totalorder %s15, 0
    %p117 = por %p115, %p116
    %s118 = ssub.s32 %s16, %s35
    %s119 = ssub.s32 %s17, %s31
    %s120 = sor.u32 %s118, %s119
    %s121 = ssub.s32 %s18, %s27
    %s122 = sor.u32 %s120, %s121
    %p123 = scmp.eq.s32.totalorder %s122, 0
    %s125 = sadd.s32 %s124, 1
    %s126 = scalar_select %p123, %s124, %s125
    %p129 = pneg %p123
    %p130 = scmp.eq.s32.totalorder %s9, 3
    %p131 = por %p129, %p130
    %p132 = scmp.ne.s32.totalorder %s124, %s127
    %p133 = scmp.eq.s32.totalorder %s9, 0
    %p134 = por %p132, %p133
    %p135 = scmp.ne.s32.totalorder %s124, %s127
    %p136 = scmp.eq.s32.totalorder %s14, 3
    %p137 = por %p135, %p136
    %p138 = scmp.ne.s32.totalorder %s127, %s128
    %p139 = scmp.eq.s32.totalorder %s14, 0
    %p140 = por %p138, %p139
    %p141 = scmp.ne.s32.totalorder %s127, %s128
    %p142 = scmp.eq.s32.totalorder %s15, 3
    %p143 = por %p141, %p142
    %p145 = scmp.ne.s32.totalorder %s128, %s144
    %p146 = scmp.eq.s32.totalorder %s15, 0
    %p147 = por %p145, %p146
    %p148 = scmp.le.s32.totalorder 1, %s9
    %p149 = scmp.lt.s32.totalorder %s9, 5
    %p150 = pnand %p148, %p149
    %p151 = pneg %p150
    // Predicated region
    $region9: #{generator_forward.13} parent=5 // pred_check
      _
    $region10: #{generator_forward.13} parent=5 // pred_check_branch
      %153 = sbr.rel (%p150) target = $region12
    $region11: #{generator_forward.13} parent=5 // pred_region
      %s154 = ssub.s32 %s9, 1
      // Predicated region
      $region13: #{generator_forward.13} parent=11 // pred_check
        %p155 = pneg %p110
      $region14: #{generator_forward.13} parent=11 // pred_check_branch
        %157 = sbr.rel (%p155) target = $region16
      $region15: #{generator_forward.13} parent=11 // pred_region
        %p158 = scmp.lt.s32.totalorder %s21, 0
        %s159 = scalar_select %p158, %s21, 0
        %s160 = scalar_lea.vmem %s2, %s159
      $region16: #{generator_forward.13} parent=11 // pred_fallthru
        _
    $region12: #{generator_forward.13} parent=5 // pred_fallthru
      _
    %p161 = scmp.lt.s32.totalorder %s9, 4
    // Predicated region
    $region17: #{generator_forward.13} parent=5 // pred_check
      %p162 = pneg %p161
    $region18: #{generator_forward.13} parent=5 // pred_check_branch
      %164 = sbr.rel (%p162) target = $region20
    $region19: #{generator_forward.13} parent=5 // pred_region
      // Predicated region
      $region21: #{generator_forward.13} parent=19 // pred_check
        %p165 = pneg %p50
      $region22: #{generator_forward.13} parent=19 // pred_check_branch
        %167 = sbr.rel (%p165) target = $region24
      $region23: #{generator_forward.13} parent=19 // pred_region
        %s168 = smul.u32 4, %s17
        %p169 = scmp.lt.s32.totalorder %s16, 3
        %s170 = scalar_select %p169, %s16, 3
        %p171 = scmp.lt.s32.totalorder %s168, 3
        %s172 = scalar_select %p171, %s168, 3
        %s173 = smul.addr %s172, 5
        %s174 = smul.addr %s170, 20
        %s175 = sadd.s32 %s173, %s174
        %s176 = smul.addr %s175, 4
        %s177 = scalar_lea.vmem %s0, %s176
        %s178 = smul.u32 4, %s17
      $region24: #{generator_forward.13} parent=19 // pred_fallthru
        _
      // Predicated region
      $region25: #{generator_forward.13} parent=19 // pred_check
        %p179 = pneg %p78
      $region26: #{generator_forward.13} parent=19 // pred_check_branch
        %181 = sbr.rel (%p179) target = $region28
      $region27: #{generator_forward.13} parent=19 // pred_region
        %p182 = scmp.lt.s32.totalorder %s16, 3
        %s183 = scalar_select %p182, %s16, 3
        %p184 = scmp.lt.s32.totalorder %s18, 0
        %s185 = scalar_select %p184, %s18, 0
        %s186 = smul.addr %s183, 69
        %s187 = sadd.s32 %s185, %s186
        %s188 = smul.addr %s187, 4
        %s189 = scalar_lea.vmem %s1, %s188
      $region28: #{generator_forward.13} parent=19 // pred_fallthru
        _
    $region20: #{generator_forward.13} parent=5 // pred_fallthru
      _
    %p190 = scmp.le.s32.totalorder 1, %s9
    %p191 = scmp.lt.s32.totalorder %s9, 5
    %p192 = pnand %p190, %p191
    %p193 = pneg %p192
    // Predicated region
    $region29: #{generator_forward.13} parent=5 // pred_check
      _
    $region30: #{generator_forward.13} parent=5 // pred_check_branch
      %195 = sbr.rel (%p192) target = $region32
    $region31: #{generator_forward.13} parent=5 // pred_region
      %s196 = ssub.s32 %s9, 1
      %s197 = smul.u32 4, %s20
      %p198 = scmp.lt.s32.totalorder %s19, 3
      %s199 = scalar_select %p198, %s19, 3
      %p200 = scmp.lt.s32.totalorder %s197, 3
      %s201 = scalar_select %p200, %s197, 3
      %s202 = smul.addr %s201, 5
      %s203 = smul.addr %s199, 20
      %s204 = sadd.s32 %s202, %s203
      %s205 = smul.addr %s204, 4
      %s206 = scalar_lea.vmem %s0, %s205
      %p207 = pneg %p56
      %p208 = pneg %p53
      %p209 = scmp.lt.s32.totalorder %s19, 3
      %s210 = scalar_select %p209, %s19, 3
      %p211 = scmp.lt.s32.totalorder %s21, 0
      %s212 = scalar_select %p211, %s21, 0
      %s213 = smul.addr %s210, 69
      %s214 = sadd.s32 %s212, %s213
      %s215 = smul.addr %s214, 4
      %s216 = scalar_lea.vmem %s1, %s215
      %p217 = pneg %p84
      %p218 = pneg %p81
      %p219 = scmp.lt.s32.totalorder %s21, 0
      %s220 = scalar_select %p219, %s21, 0
      %s221 = scalar_lea.vmem %s2, %s220
      %p222 = pneg %p110
      %p223 = pneg %p107
      %p224 = pneg %p140
      %p225 = pneg %p137
      %s226 = smul.u32 4, %s20
      %p227 = scmp.lt.s32.totalorder %s19, 3
      %s228 = scalar_select %p227, %s19, 3
      %p229 = scmp.lt.s32.totalorder %s226, 3
      %s230 = scalar_select %p229, %s226, 3
      %p231 = scmp.lt.s32.totalorder %s21, 0
      %s232 = scalar_select %p231, %s21, 0
      %s233 = sadd.s32 %s232, %s230
      %s234 = smul.addr %s228, 4
      %s235 = sadd.s32 %s233, %s234
      %s236 = smul.addr %s235, 8
      %s237 = scalar_lea.vmem %s3, %s236
      %s238 = smul.u32 4, %s20
      %p239 = scmp.lt.s32.totalorder %s19, 3
      %s240 = scalar_select %p239, %s19, 3
      %p241 = scmp.lt.s32.totalorder %s238, 3
      %s242 = scalar_select %p241, %s238, 3
      %s243 = smul.addr %s242, 5
      %s244 = smul.addr %s240, 20
      %s245 = sadd.s32 %s243, %s244
      %s246 = smul.addr %s245, 4
      %s247 = scalar_lea.vmem %s0, %s246
      %s248 = smul.u32 4, %s20
      %p249 = scmp.lt.s32.totalorder %s19, 3
      %s250 = scalar_select %p249, %s19, 3
      %p251 = scmp.lt.s32.totalorder %s21, 0
      %s252 = scalar_select %p251, %s21, 0
      %s253 = smul.addr %s250, 69
      %s254 = sadd.s32 %s252, %s253
      %s255 = smul.addr %s254, 4
      %s256 = scalar_lea.vmem %s1, %s255
      %p257 = scmp.lt.s32.totalorder %s21, 0
      %s258 = scalar_select %p257, %s21, 0
      %s259 = scalar_lea.vmem %s2, %s258
      %s260 = smul.u32 4, %s20
      %p261 = scmp.lt.s32.totalorder %s19, 3
      %s262 = scalar_select %p261, %s19, 3
      %p263 = scmp.lt.s32.totalorder %s260, 3
      %s264 = scalar_select %p263, %s260, 3
      %p265 = scmp.lt.s32.totalorder %s21, 0
      %s266 = scalar_select %p265, %s21, 0
      %s267 = sadd.s32 %s266, %s264
      %s268 = smul.addr %s262, 4
      %s269 = sadd.s32 %s267, %s268
      %s270 = smul.addr %s269, 8
      %s271 = scalar_lea.vmem %s3, %s270
      %s272 = smul.u32 4, %s20
      %v274 = vld [vmem:[%s247] sm:$0xff]
      %v275 = vld [vmem:[%s247 + $0x8] sm:$0xff]
      %v276 = vld [vmem:[%s247 + $0x10] sm:$0xf]
      %v277 = vld [vmem:[%s247 + $0x14] sm:$0xff]
      %v278 = vld [vmem:[%s247 + $0x1c] sm:$0xff]
      %v279 = vld [vmem:[%s247 + $0x24] sm:$0xf]
      %v280 = vld [vmem:[%s247 + $0x28] sm:$0xff]
      %v281 = vld [vmem:[%s247 + $0x30] sm:$0xff]
      %v282 = vld [vmem:[%s247 + $0x38] sm:$0xf]
      %v283 = vld [vmem:[%s247 + $0x3c] sm:$0xff]
      %v284 = vld [vmem:[%s247 + $0x44] sm:$0xff]
      %v285 = vld [vmem:[%s247 + $0x4c] sm:$0xf]
      %v286 = vld [vmem:[%s256] sm:$0xf]
      %v287 = vld [vmem:[%s256 + $0x4] sm:$0xf]
      %v288 = vld [vmem:[%s256 + $0x8] sm:$0xf]
      %v289 = vld [vmem:[%s256 + $0xc] sm:$0xf]
      %v290 = vld [vmem:[%s256 + $0x10] sm:$0xf]
      %v291 = vld [vmem:[%s256 + $0x14] sm:$0xf]
      %v292 = vld [vmem:[%s256 + $0x18] sm:$0xf]
      %v293 = vld [vmem:[%s256 + $0x1c] sm:$0xf]
      %v294 = vld [vmem:[%s256 + $0x20] sm:$0xf]
      %v295 = vld [vmem:[%s256 + $0x24] sm:$0xf]
      %v296 = vld [vmem:[%s256 + $0x28] sm:$0xf]
      %v297 = vld [vmem:[%s256 + $0x2c] sm:$0xf]
      %v298 = vld [vmem:[%s256 + $0x30] sm:$0xf]
      %v299 = vld [vmem:[%s256 + $0x34] sm:$0xf]
      %v300 = vld [vmem:[%s256 + $0x38] sm:$0xf]
      %v301 = vld [vmem:[%s256 + $0x3c] sm:$0xf]
      %v302 = vld [vmem:[%s256 + $0x40] sm:$0xf]
      %v303 = vld [vmem:[%s256 + $0x44] sm:$0xf]
      %v304 = vld [vmem:[%s256 + $0x48] sm:$0xf]
      %v305 = vld [vmem:[%s256 + $0x4c] sm:$0xf]
      %v306 = vld [vmem:[%s256 + $0x50] sm:$0xf]
      %v307 = vld [vmem:[%s256 + $0x54] sm:$0xf]
      %v308 = vld [vmem:[%s256 + $0x58] sm:$0xf]
      %v309 = vld [vmem:[%s256 + $0x5c] sm:$0xf]
      %v310 = vld [vmem:[%s256 + $0x60] sm:$0xf]
      %v311 = vld [vmem:[%s256 + $0x64] sm:$0xf]
      %v312 = vld [vmem:[%s256 + $0x68] sm:$0xf]
      %v313 = vld [vmem:[%s256 + $0x6c] sm:$0xf]
      %v314 = vld [vmem:[%s256 + $0x70] sm:$0xf]
      %v315 = vld [vmem:[%s256 + $0x74] sm:$0xf]
      %v316 = vld [vmem:[%s256 + $0x78] sm:$0xf]
      %v317 = vld [vmem:[%s256 + $0x7c] sm:$0xf]
      %v318 = vld [vmem:[%s256 + $0x80] sm:$0xf]
      %v319 = vld [vmem:[%s256 + $0x84] sm:$0xf]
      %v320 = vld [vmem:[%s256 + $0x88] sm:$0xf]
      %v321 = vld [vmem:[%s256 + $0x8c] sm:$0xf]
      %v322 = vld [vmem:[%s256 + $0x90] sm:$0xf]
      %v323 = vld [vmem:[%s256 + $0x94] sm:$0xf]
      %v324 = vld [vmem:[%s256 + $0x98] sm:$0xf]
      %v325 = vld [vmem:[%s256 + $0x9c] sm:$0xf]
      %v326 = vld [vmem:[%s256 + $0xa0] sm:$0xf]
      %v327 = vld [vmem:[%s256 + $0xa4] sm:$0xf]
      %v328 = vld [vmem:[%s256 + $0xa8] sm:$0xf]
      %v329 = vld [vmem:[%s256 + $0xac] sm:$0xf]
      %v330 = vld [vmem:[%s256 + $0xb0] sm:$0xf]
      %v331 = vld [vmem:[%s256 + $0xb4] sm:$0xf]
      %v332 = vld [vmem:[%s256 + $0xb8] sm:$0xf]
      %v333 = vld [vmem:[%s256 + $0xbc] sm:$0xf]
      %v334 = vld [vmem:[%s256 + $0xc0] sm:$0xf]
      %v335 = vld [vmem:[%s256 + $0xc4] sm:$0xf]
      %v336 = vld [vmem:[%s256 + $0xc8] sm:$0xf]
      %v337 = vld [vmem:[%s256 + $0xcc] sm:$0xf]
      %v338 = vld [vmem:[%s256 + $0xd0] sm:$0xf]
      %v339 = vld [vmem:[%s256 + $0xd4] sm:$0xf]
      %v340 = vld [vmem:[%s256 + $0xd8] sm:$0xf]
      %v341 = vld [vmem:[%s256 + $0xdc] sm:$0xf]
      %v342 = vld [vmem:[%s256 + $0xe0] sm:$0xf]
      %v343 = vld [vmem:[%s256 + $0xe4] sm:$0xf]
      %v344 = vld [vmem:[%s256 + $0xe8] sm:$0xf]
      %v345 = vld [vmem:[%s256 + $0xec] sm:$0xf]
      %v346 = vld [vmem:[%s256 + $0xf0] sm:$0xf]
      %v347 = vld [vmem:[%s256 + $0xf4] sm:$0xf]
      %v348 = vld [vmem:[%s256 + $0xf8] sm:$0xf]
      %v349 = vld [vmem:[%s256 + $0xfc] sm:$0xf]
      %v350 = vld [vmem:[%s256 + $0x100] sm:$0xf]
      %v351 = vld [vmem:[%s256 + $0x104] sm:$0xf]
      %v352 = vld [vmem:[%s256 + $0x108] sm:$0xf]
      %v353 = vld [vmem:[%s256 + $0x10c] sm:$0xf]
      %v354 = vld [vmem:[%s256 + $0x110] sm:$0xf]
      %v355 = vld [vmem:[%s259] sm:$0x1]
      %v357 = vlaneseq
      %v358 = vshrl.u32 %v357, 7
      %v359 = vsub.s32 0, %v358
      %v360 = vrot.slane %v355, %v359
      %v374 = vunpack.c.l.b16 %v274
      %v375 = vunpack.c.h.b16 %v274
      %v376 = vunpack.c.l.b16 %v275
      %v377 = vunpack.c.h.b16 %v275
      %v378 = vunpack.c.l.b16 %v276
      %v379 = vunpack.c.l.b16 %v277
      %v380 = vunpack.c.h.b16 %v277
      %v381 = vunpack.c.l.b16 %v278
      %v382 = vunpack.c.h.b16 %v278
      %v383 = vunpack.c.l.b16 %v279
      %v384 = vunpack.c.l.b16 %v280
      %v385 = vunpack.c.h.b16 %v280
      %v386 = vunpack.c.l.b16 %v281
      %v387 = vunpack.c.h.b16 %v281
      %v388 = vunpack.c.l.b16 %v282
      %v389 = vunpack.c.l.b16 %v283
      %v390 = vunpack.c.h.b16 %v283
      %v391 = vunpack.c.l.b16 %v284
      %v392 = vunpack.c.h.b16 %v284
      %v393 = vunpack.c.l.b16 %v285
      %v394 = vpack.c.b16 %v379, %v374
      %v395 = vpack.c.b16 %v380, %v375
      %v396 = vpack.c.b16 %v381, %v376
      %v397 = vpack.c.b16 %v382, %v377
      %v398 = vpack.c.b16 %v383, %v378
      %v399 = vpack.c.b16 %v389, %v384
      %v400 = vpack.c.b16 %v390, %v385
      %v401 = vpack.c.b16 %v391, %v386
      %v402 = vpack.c.b16 %v392, %v387
      %v403 = vpack.c.b16 %v393, %v388
      %v481 = vunpack.c.l.b16 %v286
      %v482 = vunpack.c.l.b16 %v287
      %v483 = vunpack.c.l.b16 %v288
      %v484 = vunpack.c.l.b16 %v289
      %v485 = vunpack.c.l.b16 %v290
      %v486 = vunpack.c.l.b16 %v291
      %v487 = vunpack.c.l.b16 %v292
      %v488 = vunpack.c.l.b16 %v293
      %v489 = vunpack.c.l.b16 %v294
      %v490 = vunpack.c.l.b16 %v295
      %v491 = vunpack.c.l.b16 %v296
      %v492 = vunpack.c.l.b16 %v297
      %v493 = vunpack.c.l.b16 %v298
      %v494 = vunpack.c.l.b16 %v299
      %v495 = vunpack.c.l.b16 %v300
      %v496 = vunpack.c.l.b16 %v301
      %v497 = vunpack.c.l.b16 %v302
      %v498 = vunpack.c.l.b16 %v303
      %v499 = vunpack.c.l.b16 %v304
      %v500 = vunpack.c.l.b16 %v305
      %v501 = vunpack.c.l.b16 %v306
      %v502 = vunpack.c.l.b16 %v307
      %v503 = vunpack.c.l.b16 %v308
      %v504 = vunpack.c.l.b16 %v309
      %v505 = vunpack.c.l.b16 %v310
      %v506 = vunpack.c.l.b16 %v311
      %v507 = vunpack.c.l.b16 %v312
      %v508 = vunpack.c.l.b16 %v313
      %v509 = vunpack.c.l.b16 %v314
      %v510 = vunpack.c.l.b16 %v315
      %v511 = vunpack.c.l.b16 %v316
      %v512 = vunpack.c.l.b16 %v317
      %v513 = vunpack.c.l.b16 %v318
      %v514 = vunpack.c.l.b16 %v319
      %v515 = vunpack.c.l.b16 %v320
      %v516 = vunpack.c.l.b16 %v321
      %v517 = vunpack.c.l.b16 %v322
      %v518 = vunpack.c.l.b16 %v323
      %v519 = vunpack.c.l.b16 %v324
      %v520 = vunpack.c.l.b16 %v325
      %v521 = vunpack.c.l.b16 %v326
      %v522 = vunpack.c.l.b16 %v327
      %v523 = vunpack.c.l.b16 %v328
      %v524 = vunpack.c.l.b16 %v329
      %v525 = vunpack.c.l.b16 %v330
      %v526 = vunpack.c.l.b16 %v331
      %v527 = vunpack.c.l.b16 %v332
      %v528 = vunpack.c.l.b16 %v333
      %v529 = vunpack.c.l.b16 %v334
      %v530 = vunpack.c.l.b16 %v335
      %v531 = vunpack.c.l.b16 %v336
      %v532 = vunpack.c.l.b16 %v337
      %v533 = vunpack.c.l.b16 %v338
      %v534 = vunpack.c.l.b16 %v339
      %v535 = vunpack.c.l.b16 %v340
      %v536 = vunpack.c.l.b16 %v341
      %v537 = vunpack.c.l.b16 %v342
      %v538 = vunpack.c.l.b16 %v343
      %v539 = vunpack.c.l.b16 %v344
      %v540 = vunpack.c.l.b16 %v345
      %v541 = vunpack.c.l.b16 %v346
      %v542 = vunpack.c.l.b16 %v347
      %v543 = vunpack.c.l.b16 %v348
      %v544 = vunpack.c.l.b16 %v349
      %v545 = vunpack.c.l.b16 %v350
      %v546 = vunpack.c.l.b16 %v351
      %v547 = vunpack.c.l.b16 %v352
      %v548 = vunpack.c.l.b16 %v353
      %v549 = vunpack.c.l.b16 %v354
      %v550 = vpack.c.b16 %v482, %v481
      %v551 = vpack.c.b16 %v484, %v483
      %v552 = vpack.c.b16 %v486, %v485
      %v553 = vpack.c.b16 %v488, %v487
      %v554 = vpack.c.b16 %v490, %v489
      %v555 = vpack.c.b16 %v492, %v491
      %v556 = vpack.c.b16 %v494, %v493
      %v557 = vpack.c.b16 %v496, %v495
      %v558 = vpack.c.b16 %v498, %v497
      %v559 = vpack.c.b16 %v500, %v499
      %v560 = vpack.c.b16 %v502, %v501
      %v561 = vpack.c.b16 %v504, %v503
      %v562 = vpack.c.b16 %v506, %v505
      %v563 = vpack.c.b16 %v508, %v507
      %v564 = vpack.c.b16 %v510, %v509
      %v565 = vpack.c.b16 %v512, %v511
      %v566 = vpack.c.b16 %v514, %v513
      %v567 = vpack.c.b16 %v516, %v515
      %v568 = vpack.c.b16 %v518, %v517
      %v569 = vpack.c.b16 %v520, %v519
      %v570 = vpack.c.b16 %v522, %v521
      %v571 = vpack.c.b16 %v524, %v523
      %v572 = vpack.c.b16 %v526, %v525
      %v573 = vpack.c.b16 %v528, %v527
      %v574 = vpack.c.b16 %v530, %v529
      %v575 = vpack.c.b16 %v532, %v531
      %v576 = vpack.c.b16 %v534, %v533
      %v577 = vpack.c.b16 %v536, %v535
      %v578 = vpack.c.b16 %v538, %v537
      %v579 = vpack.c.b16 %v540, %v539
      %v580 = vpack.c.b16 %v542, %v541
      %v581 = vpack.c.b16 %v544, %v543
      %v582 = vpack.c.b16 %v546, %v545
      %v583 = vpack.c.b16 %v548, %v547
      %v584 = vpack.c.b16 %v549, %v549
      %vm619 = vcmask 326656
      %v621 = vsel %vm619, %v398, 0
      %v624 = vsel %vm619, %v403, 0
      %vm626 = vcmask 1043456
      %v628 = vsel %vm626, %v584, 0
      %630 = vmatprep.subr.bf16.mxu0 0
      %631 = vmatpush1.bf16.msra.mxu0 %v557
      %632 = vmatprep.subr.bf16.mxu0 0
      %633 = vmatpush1.bf16.msra.mxu0 %v556
      %634 = vmatprep.subr.bf16.mxu0 0
      %635 = vmatpush1.bf16.msra.mxu0 %v555
      %636 = vmatprep.subr.bf16.mxu0 0
      %637 = vmatpush1.bf16.msra.mxu0 %v554
      %638 = vmatprep.subr.bf16.mxu0 0
      %639 = vmatpush1.bf16.msra.mxu0 %v553
      %640 = vmatprep.subr.bf16.mxu0 0
      %641 = vmatpush1.bf16.msra.mxu0 %v552
      %642 = vmatprep.subr.bf16.mxu0 0
      %643 = vmatpush1.bf16.msra.mxu0 %v551
      %644 = vmatprep.subr.bf16.mxu0 0
      %645 = vmatpush1.bf16.msra.mxu0 %v550
      %646 = vmatprep.subr.bf16.mxu0 0
      %647 = vmatpush2.bf16.msra.mxu0 %v565
      %648 = vmatprep.subr.bf16.mxu0 0
      %649 = vmatpush2.bf16.msra.mxu0 %v564
      %650 = vmatprep.subr.bf16.mxu0 0
      %651 = vmatpush2.bf16.msra.mxu0 %v563
      %652 = vmatprep.subr.bf16.mxu0 0
      %653 = vmatpush2.bf16.msra.mxu0 %v562
      %654 = vmatprep.subr.bf16.mxu0 0
      %655 = vmatpush2.bf16.msra.mxu0 %v561
      %656 = vmatprep.subr.bf16.mxu0 0
      %657 = vmatpush2.bf16.msra.mxu0 %v560
      %658 = vmatprep.subr.bf16.mxu0 0
      %659 = vmatpush2.bf16.msra.mxu0 %v559
      %660 = vmatprep.subr.bf16.mxu0 0
      %661 = vmatpush2.bf16.msra.mxu0 %v558
      %662 = vmatprep.mubr.bf16.mxu0 %v395
      %663 = vmatmul.mubr.bf16.gmra.mxu0 %v394
      %v664 = vpop.f32.mrf.mxu0
      %v665 = vadd.f32 %v360, %v664
      %v666 = vpop.f32.mrf.mxu0
      %v667 = vpop.f32.mrf.mxu0
      %v668 = vadd.f32 %v360, %v667
      %v669 = vpop.f32.mrf.mxu0
      %670 = vmatprep.mubr.bf16.mxu0 %v400
      %671 = vmatmul.mubr.bf16.gmra.mxu0 %v399
      %v672 = vpop.f32.mrf.mxu0
      %v673 = vadd.f32 %v360, %v672
      %v674 = vpop.f32.mrf.mxu0
      %v675 = vpop.f32.mrf.mxu0
      %v676 = vadd.f32 %v360, %v675
      %v677 = vpop.f32.mrf.mxu0
      %678 = vdwg.mxu0
      %679 = vmatprep.subr.bf16.mxu0 0
      %680 = vmatpush1.bf16.msra.mxu0 %v573
      %681 = vmatprep.subr.bf16.mxu0 0
      %682 = vmatpush1.bf16.msra.mxu0 %v572
      %683 = vmatprep.subr.bf16.mxu0 0
      %684 = vmatpush1.bf16.msra.mxu0 %v571
      %685 = vmatprep.subr.bf16.mxu0 0
      %686 = vmatpush1.bf16.msra.mxu0 %v570
      %687 = vmatprep.subr.bf16.mxu0 0
      %688 = vmatpush1.bf16.msra.mxu0 %v569
      %689 = vmatprep.subr.bf16.mxu0 0
      %690 = vmatpush1.bf16.msra.mxu0 %v568
      %691 = vmatprep.subr.bf16.mxu0 0
      %692 = vmatpush1.bf16.msra.mxu0 %v567
      %693 = vmatprep.subr.bf16.mxu0 0
      %694 = vmatpush1.bf16.msra.mxu0 %v566
      %695 = vmatprep.subr.bf16.mxu0 0
      %696 = vmatpush2.bf16.msra.mxu0 %v581
      %697 = vmatprep.subr.bf16.mxu0 0
      %698 = vmatpush2.bf16.msra.mxu0 %v580
      %699 = vmatprep.subr.bf16.mxu0 0
      %700 = vmatpush2.bf16.msra.mxu0 %v579
      %701 = vmatprep.subr.bf16.mxu0 0
      %702 = vmatpush2.bf16.msra.mxu0 %v578
      %703 = vmatprep.subr.bf16.mxu0 0
      %704 = vmatpush2.bf16.msra.mxu0 %v577
      %705 = vmatprep.subr.bf16.mxu0 0
      %706 = vmatpush2.bf16.msra.mxu0 %v576
      %707 = vmatprep.subr.bf16.mxu0 0
      %708 = vmatpush2.bf16.msra.mxu0 %v575
      %709 = vmatprep.subr.bf16.mxu0 0
      %710 = vmatpush2.bf16.msra.mxu0 %v574
      %711 = vmatprep.mubr.bf16.mxu0 %v397
      %712 = vmatmul.mubr.bf16.gmra.mxu0 %v396
      %v713 = vpop.f32.mrf.mxu0
      %v714 = vadd.f32 %v665, %v713
      %v715 = vpop.f32.mrf.mxu0
      %v716 = vpop.f32.mrf.mxu0
      %v717 = vadd.f32 %v668, %v716
      %v718 = vpop.f32.mrf.mxu0
      %719 = vmatprep.mubr.bf16.mxu0 %v402
      %720 = vmatmul.mubr.bf16.gmra.mxu0 %v401
      %v721 = vpop.f32.mrf.mxu0
      %v722 = vadd.f32 %v673, %v721
      %v723 = vpop.f32.mrf.mxu0
      %v724 = vpop.f32.mrf.mxu0
      %v725 = vadd.f32 %v676, %v724
      %v726 = vpop.f32.mrf.mxu0
      %727 = vdwg.mxu0
      %728 = vmatprep.subr.bf16.mxu0 0
      %729 = vmatpush1.bf16.msra.mxu0 0
      %730 = vmatprep.subr.bf16.mxu0 0
      %731 = vmatpush1.bf16.msra.mxu0 0
      %732 = vmatprep.subr.bf16.mxu0 0
      %733 = vmatpush1.bf16.msra.mxu0 0
      %734 = vmatprep.subr.bf16.mxu0 0
      %735 = vmatpush1.bf16.msra.mxu0 0
      %736 = vmatprep.subr.bf16.mxu0 0
      %737 = vmatpush1.bf16.msra.mxu0 0
      %738 = vmatprep.subr.bf16.mxu0 0
      %739 = vmatpush1.bf16.msra.mxu0 %v628
      %740 = vmatprep.subr.bf16.mxu0 0
      %741 = vmatpush1.bf16.msra.mxu0 %v583
      %742 = vmatprep.subr.bf16.mxu0 0
      %743 = vmatpush1.bf16.msra.mxu0 %v582
      %744 = vmatprep.subr.bf16.mxu0 0
      %745 = vmatpush2.bf16.msra.mxu0 0
      %746 = vmatprep.subr.bf16.mxu0 0
      %747 = vmatpush2.bf16.msra.mxu0 0
      %748 = vmatprep.subr.bf16.mxu0 0
      %749 = vmatpush2.bf16.msra.mxu0 0
      %750 = vmatprep.subr.bf16.mxu0 0
      %751 = vmatpush2.bf16.msra.mxu0 0
      %752 = vmatprep.subr.bf16.mxu0 0
      %753 = vmatpush2.bf16.msra.mxu0 0
      %754 = vmatprep.subr.bf16.mxu0 0
      %755 = vmatpush2.bf16.msra.mxu0 0
      %756 = vmatprep.subr.bf16.mxu0 0
      %757 = vmatpush2.bf16.msra.mxu0 0
      %758 = vmatprep.subr.bf16.mxu0 0
      %759 = vmatpush2.bf16.msra.mxu0 0
      %760 = vmatprep.mubr.bf16.mxu0 0
      %761 = vmatmul.mubr.bf16.gmra.mxu0 %v621
      %v762 = vpop.f32.mrf.mxu0
      %v763 = vadd.f32 %v714, %v762
      %v764 = vpop.f32.mrf.mxu0
      %v765 = vpop.f32.mrf.mxu0
      %v766 = vadd.f32 %v717, %v765
      %v767 = vpop.f32.mrf.mxu0
      %768 = vmatprep.mubr.bf16.mxu0 0
      %769 = vmatmul.mubr.bf16.gmra.mxu0 %v624
      %v770 = vpop.f32.mrf.mxu0
      %v771 = vadd.f32 %v722, %v770
      %v772 = vpop.f32.mrf.mxu0
      %v773 = vpop.f32.mrf.mxu0
      %v774 = vadd.f32 %v725, %v773
      %v775 = vpop.f32.mrf.mxu0
      %776 = vdwg.mxu0
      %vm777 = vcmask 523264
      %778 = vst.msk [vmem:[%s271] sm:$0xff] %vm777, %v763
      %779 = vst.msk [vmem:[%s271 + $0x8] sm:$0xff] %vm777, %v766
      %780 = vst.msk [vmem:[%s271 + $0x10] sm:$0xff] %vm777, %v771
      %781 = vst.msk [vmem:[%s271 + $0x18] sm:$0xff] %vm777, %v774
      %s782 = smul.u32 4, %s20
      %p783 = scmp.lt.s32.totalorder %s19, 3
      %s784 = scalar_select %p783, %s19, 3
      %p785 = scmp.lt.s32.totalorder %s782, 3
      %s786 = scalar_select %p785, %s782, 3
      %p787 = scmp.lt.s32.totalorder %s21, 0
      %s788 = scalar_select %p787, %s21, 0
      %s789 = sadd.s32 %s788, %s786
      %s790 = smul.addr %s784, 4
      %s791 = sadd.s32 %s789, %s790
      %s792 = smul.addr %s791, 8
      %s793 = scalar_lea.vmem %s3, %s792
      // Predicated region
      $region33: #{generator_forward.13} parent=31 // pred_check
        %p794 = pneg %p137
      $region34: #{generator_forward.13} parent=31 // pred_check_branch
        %796 = sbr.rel (%p794) target = $region36
      $region35: #{generator_forward.13} parent=31 // pred_region
        %s797 = smul.u32 4, %s20
      $region36: #{generator_forward.13} parent=31 // pred_fallthru
        _
    $region32: #{generator_forward.13} parent=5 // pred_fallthru
      _
    %p798 = scmp.le.s32.totalorder 2, %s9
    // Predicated region
    $region37: #{generator_forward.13} parent=5 // pred_check
      %p799 = pneg %p798
    $region38: #{generator_forward.13} parent=5 // pred_check_branch
      %801 = sbr.rel (%p799) target = $region40
    $region39: #{generator_forward.13} parent=5 // pred_region
      %s802 = ssub.s32 %s9, 2
      // Predicated region
      $region41: #{generator_forward.13} parent=39 // pred_check
        %p803 = pneg %p143
      $region42: #{generator_forward.13} parent=39 // pred_check_branch
        %805 = sbr.rel (%p803) target = $region44
      $region43: #{generator_forward.13} parent=39 // pred_region
        %s806 = smul.u32 4, %s23
        %p807 = scmp.lt.s32.totalorder %s22, 3
        %s808 = scalar_select %p807, %s22, 3
        %p809 = scmp.lt.s32.totalorder %s806, 3
        %s810 = scalar_select %p809, %s806, 3
        %p811 = scmp.lt.s32.totalorder %s24, 0
        %s812 = scalar_select %p811, %s24, 0
        %s813 = sadd.s32 %s812, %s810
        %s814 = smul.addr %s808, 4
        %s815 = sadd.s32 %s813, %s814
        %s816 = smul.addr %s815, 8
        %s817 = scalar_lea.vmem %s3, %s816
      $region44: #{generator_forward.13} parent=39 // pred_fallthru
        _
    $region40: #{generator_forward.13} parent=5 // pred_fallthru
      _
  $region6: #{generator_forward.13} parent=0 // loop_footer
    %s13 = sadd.s32 1, %s9
  $region7: #{generator_forward.13} parent=0 // loop_footer_branch
    %8 = sbr.rel target = $region3
  $region8: #{generator_forward.13} parent=0 // loop_exit
    _

// kernel: generator_forward.14
$region0: #{generator_forward.14}
  #allocation0 [shape = 'u32[]', space=smem, size = 0x4, offset = 0x4, fixed_abs, tag = 'smem constant byte address 0x4 - core index']
  #allocation1 [shape = 'u32[144,128]{1,0:T(1,128)}', space=vmem, size = 0x12000, scoped, tag = 'internal scratch']
  #allocation2 [shape = 'f32[1,64]{1,0:T(1,128)}', space=vmem, size = 0x200, scoped, tag = 'scratch operand']
  #allocation3 [shape = 'f32[1,64]{1,0:T(1,128)}', space=vmem, size = 0x200, scoped, tag = 'scratch operand']
  %s0 = inlined_call_operand.vmem [shape: f32[128,64], index: 0, kind: input, shape index: {}]
  %s1 = inlined_call_operand.vmem [shape: f32[1,64], index: 1, kind: output, shape index: {0}]
  %s2 = inlined_call_operand.vmem [shape: f32[1,64], index: 2, kind: output, shape index: {1}]
  %3 = xla_tuple %s1, %s2
  %s4 = sld [smem:[#allocation0]]
  $region30: #{generator_forward.14} parent=0
    _
  %s6 = ssub.s32 1, %s4
  %s7 = scalar_select 0, %s6, %s4
  // Predicated region
  $region2: #{generator_forward.14} parent=0 // pred_check
    _
  $region3: #{generator_forward.14} parent=0 // pred_check_branch
    %9 = sbr.rel (0) target = $region5
  $region4: #{generator_forward.14} parent=0 // pred_region
    _
  $region5: #{generator_forward.14} parent=0 // pred_fallthru
    _
  %p10 = scmp.eq.s32.totalorder 0, 0
  // Predicated region
  $region6: #{generator_forward.14} parent=0 // pred_check
    %p11 = pneg %p10
  $region7: #{generator_forward.14} parent=0 // pred_check_branch
    %13 = sbr.rel (%p11) target = $region9
  $region8: #{generator_forward.14} parent=0 // pred_region
    %vm14 = vcmask 516096
    %15 = vst.msk [vmem:[#allocation2] sm:$0x1] %vm14, 0.0
    %16 = vst.msk [vmem:[#allocation3] sm:$0x1] %vm14, 0.0
  $region9: #{generator_forward.14} parent=0 // pred_fallthru
    _
  %v17 = vld [vmem:[%s0] sm:$0xff]
  %v18 = vld [vmem:[%s0 + $0x8] sm:$0xff]
  %v19 = vld [vmem:[%s0 + $0x10] sm:$0xff]
  %v20 = vld [vmem:[%s0 + $0x18] sm:$0xff]
  %v21 = vld [vmem:[%s0 + $0x20] sm:$0xff]
  %v22 = vld [vmem:[%s0 + $0x28] sm:$0xff]
  %v23 = vld [vmem:[%s0 + $0x30] sm:$0xff]
  %v24 = vld [vmem:[%s0 + $0x38] sm:$0xff]
  %v25 = vld [vmem:[%s0 + $0x40] sm:$0xff]
  %v26 = vld [vmem:[%s0 + $0x48] sm:$0xff]
  %v27 = vld [vmem:[%s0 + $0x50] sm:$0xff]
  %v28 = vld [vmem:[%s0 + $0x58] sm:$0xff]
  %v29 = vld [vmem:[%s0 + $0x60] sm:$0xff]
  %v30 = vld [vmem:[%s0 + $0x68] sm:$0xff]
  %v31 = vld [vmem:[%s0 + $0x70] sm:$0xff]
  %v32 = vld [vmem:[%s0 + $0x78] sm:$0xff]
  %v33 = vld [vmem:[#allocation2] sm:$0x1]
  %vm34 = vcmask 523264
  %v35 = vsel %vm34, %v17, 0.0
  %v36 = vsel %vm34, %v18, 0.0
  %v37 = vadd.f32 %v35, %v36
  %v38 = vsel %vm34, %v19, 0.0
  %v39 = vadd.f32 %v37, %v38
  %v40 = vsel %vm34, %v20, 0.0
  %v41 = vadd.f32 %v39, %v40
  %v42 = vsel %vm34, %v21, 0.0
  %v43 = vadd.f32 %v41, %v42
  %v44 = vsel %vm34, %v22, 0.0
  %v45 = vadd.f32 %v43, %v44
  %v46 = vsel %vm34, %v23, 0.0
  %v47 = vadd.f32 %v45, %v46
  %v48 = vsel %vm34, %v24, 0.0
  %v49 = vadd.f32 %v47, %v48
  %v50 = vsel %vm34, %v25, 0.0
  %v51 = vadd.f32 %v49, %v50
  %v52 = vsel %vm34, %v26, 0.0
  %v53 = vadd.f32 %v51, %v52
  %v54 = vsel %vm34, %v27, 0.0
  %v55 = vadd.f32 %v53, %v54
  %v56 = vsel %vm34, %v28, 0.0
  %v57 = vadd.f32 %v55, %v56
  %v58 = vsel %vm34, %v29, 0.0
  %v59 = vadd.f32 %v57, %v58
  %v60 = vsel %vm34, %v30, 0.0
  %v61 = vadd.f32 %v59, %v60
  %v62 = vsel %vm34, %v31, 0.0
  %v63 = vadd.f32 %v61, %v62
  %v64 = vsel %vm34, %v32, 0.0
  %v65 = vadd.f32 %v63, %v64
  %v66 = vrot.slane %v65, 4
  %v67 = vadd.f32 %v65, %v66
  %v68 = vrot.slane %v67, 2
  %v69 = vadd.f32 %v67, %v68
  %v70 = vrot.slane %v69, 1
  %v71 = vadd.f32 %v69, %v70
  %v72 = vadd.f32 %v33, %v71
  %vm73 = vcmask 516096
  %74 = vst.msk [vmem:[#allocation2] sm:$0x1] %vm73, %v72
  %v75 = vld [vmem:[#allocation3] sm:$0x1]
  %v76 = vmul.f32 %v17, %v17
  %v77 = vmul.f32 %v18, %v18
  %v78 = vmul.f32 %v19, %v19
  %v79 = vmul.f32 %v20, %v20
  %v80 = vmul.f32 %v21, %v21
  %v81 = vmul.f32 %v22, %v22
  %v82 = vmul.f32 %v23, %v23
  %v83 = vmul.f32 %v24, %v24
  %v84 = vmul.f32 %v25, %v25
  %v85 = vmul.f32 %v26, %v26
  %v86 = vmul.f32 %v27, %v27
  %v87 = vmul.f32 %v28, %v28
  %v88 = vmul.f32 %v29, %v29
  %v89 = vmul.f32 %v30, %v30
  %v90 = vmul.f32 %v31, %v31
  %v91 = vmul.f32 %v32, %v32
  %v92 = vsel %vm34, %v76, 0.0
  %v93 = vsel %vm34, %v77, 0.0
  %v94 = vadd.f32 %v92, %v93
  %v95 = vsel %vm34, %v78, 0.0
  %v96 = vadd.f32 %v94, %v95
  %v97 = vsel %vm34, %v79, 0.0
  %v98 = vadd.f32 %v96, %v97
  %v99 = vsel %vm34, %v80, 0.0
  %v100 = vadd.f32 %v98, %v99
  %v101 = vsel %vm34, %v81, 0.0
  %v102 = vadd.f32 %v100, %v101
  %v103 = vsel %vm34, %v82, 0.0
  %v104 = vadd.f32 %v102, %v103
  %v105 = vsel %vm34, %v83, 0.0
  %v106 = vadd.f32 %v104, %v105
  %v107 = vsel %vm34, %v84, 0.0
  %v108 = vadd.f32 %v106, %v107
  %v109 = vsel %vm34, %v85, 0.0
  %v110 = vadd.f32 %v108, %v109
  %v111 = vsel %vm34, %v86, 0.0
  %v112 = vadd.f32 %v110, %v111
  %v113 = vsel %vm34, %v87, 0.0
  %v114 = vadd.f32 %v112, %v113
  %v115 = vsel %vm34, %v88, 0.0
  %v116 = vadd.f32 %v114, %v115
  %v117 = vsel %vm34, %v89, 0.0
  %v118 = vadd.f32 %v116, %v117
  %v119 = vsel %vm34, %v90, 0.0
  %v120 = vadd.f32 %v118, %v119
  %v121 = vsel %vm34, %v91, 0.0
  %v122 = vadd.f32 %v120, %v121
  %v123 = vrot.slane %v122, 4
  %v124 = vadd.f32 %v122, %v123
  %v125 = vrot.slane %v124, 2
  %v126 = vadd.f32 %v124, %v125
  %v127 = vrot.slane %v126, 1
  %v128 = vadd.f32 %v126, %v127
  %v129 = vadd.f32 %v75, %v128
  %130 = vst.msk [vmem:[#allocation3] sm:$0x1] %vm73, %v129
  // Predicated region
  $region10: #{generator_forward.14} parent=0 // pred_check
    %p131 = pneg %p10
  $region11: #{generator_forward.14} parent=0 // pred_check_branch
    %133 = sbr.rel (%p131) target = $region13
  $region12: #{generator_forward.14} parent=0 // pred_region
    %v134 = vld [vmem:[#allocation2] sm:$0x1]
    %135 = vst.msk [vmem:[%s1] sm:$0x1] %vm73, %v134
    %v136 = vld [vmem:[#allocation3] sm:$0x1]
    %137 = vst.msk [vmem:[%s2] sm:$0x1] %vm73, %v136
  $region13: #{generator_forward.14} parent=0 // pred_fallthru
    _
  // Predicated region
  $region14: #{generator_forward.14} parent=0 // pred_check
    _
  $region15: #{generator_forward.14} parent=0 // pred_check_branch
    %139 = sbr.rel (0) target = $region17
  $region16: #{generator_forward.14} parent=0 // pred_region
    _
  $region17: #{generator_forward.14} parent=0 // pred_fallthru
    _
  // Predicated region
  $region18: #{generator_forward.14} parent=0 // pred_check
    _
  $region19: #{generator_forward.14} parent=0 // pred_check_branch
    %141 = sbr.rel (0) target = $region21
  $region20: #{generator_forward.14} parent=0 // pred_region
    _
  $region21: #{generator_forward.14} parent=0 // pred_fallthru
    _
  // Predicated region
  $region22: #{generator_forward.14} parent=0 // pred_check
    _
  $region23: #{generator_forward.14} parent=0 // pred_check_branch
    %143 = sbr.rel (0) target = $region25
  $region24: #{generator_forward.14} parent=0 // pred_region
    _
  $region25: #{generator_forward.14} parent=0 // pred_fallthru
    _
  // Predicated region
  $region26: #{generator_forward.14} parent=0 // pred_check
    _
  $region27: #{generator_forward.14} parent=0 // pred_check_branch
    %145 = sbr.rel (0) target = $region29
  $region28: #{generator_forward.14} parent=0 // pred_region
    _
  $region29: #{generator_forward.14} parent=0 // pred_fallthru
    _

// kernel: generator_forward.15
$region0: #{generator_forward.15}
  #allocation0 [shape = 'u32[]', space=smem, size = 0x4, offset = 0x4, fixed_abs, tag = 'smem constant byte address 0x4 - core index']
  #allocation1 [shape = 'u32[144,128]{1,0:T(1,128)}', space=vmem, size = 0x12000, scoped, tag = 'internal scratch']
  %s0 = inlined_call_operand.vmem [shape: f32[128,64], index: 0, kind: input, shape index: {}]
  %s1 = inlined_call_operand.vmem [shape: f32[1,64], index: 1, kind: input, shape index: {}]
  %s2 = inlined_call_operand.vmem [shape: f32[1,64], index: 2, kind: input, shape index: {}]
  %s3 = inlined_call_operand.vmem [shape: f32[128,64], index: 3, kind: output, shape index: {}]
  %s4 = sld [smem:[#allocation0]]
  $region22: #{generator_forward.15} parent=0
    _
  %s6 = ssub.s32 1, %s4
  %s7 = scalar_select 0, %s6, %s4
  // Predicated region
  $region2: #{generator_forward.15} parent=0 // pred_check
    _
  $region3: #{generator_forward.15} parent=0 // pred_check_branch
    %9 = sbr.rel (0) target = $region5
  $region4: #{generator_forward.15} parent=0 // pred_region
    _
  $region5: #{generator_forward.15} parent=0 // pred_fallthru
    _
  // Predicated region
  $region6: #{generator_forward.15} parent=0 // pred_check
    _
  $region7: #{generator_forward.15} parent=0 // pred_check_branch
    %11 = sbr.rel (0) target = $region9
  $region8: #{generator_forward.15} parent=0 // pred_region
    _
  $region9: #{generator_forward.15} parent=0 // pred_fallthru
    _
  // Predicated region
  $region10: #{generator_forward.15} parent=0 // pred_check
    _
  $region11: #{generator_forward.15} parent=0 // pred_check_branch
    %13 = sbr.rel (0) target = $region13
  $region12: #{generator_forward.15} parent=0 // pred_region
    _
  $region13: #{generator_forward.15} parent=0 // pred_fallthru
    _
  %v14 = vld [vmem:[%s0] sm:$0xff]
  %v15 = vld [vmem:[%s0 + $0x8] sm:$0xff]
  %v16 = vld [vmem:[%s0 + $0x10] sm:$0xff]
  %v17 = vld [vmem:[%s0 + $0x18] sm:$0xff]
  %v18 = vld [vmem:[%s0 + $0x20] sm:$0xff]
  %v19 = vld [vmem:[%s0 + $0x28] sm:$0xff]
  %v20 = vld [vmem:[%s0 + $0x30] sm:$0xff]
  %v21 = vld [vmem:[%s0 + $0x38] sm:$0xff]
  %v22 = vld [vmem:[%s0 + $0x40] sm:$0xff]
  %v23 = vld [vmem:[%s0 + $0x48] sm:$0xff]
  %v24 = vld [vmem:[%s0 + $0x50] sm:$0xff]
  %v25 = vld [vmem:[%s0 + $0x58] sm:$0xff]
  %v26 = vld [vmem:[%s0 + $0x60] sm:$0xff]
  %v27 = vld [vmem:[%s0 + $0x68] sm:$0xff]
  %v28 = vld [vmem:[%s0 + $0x70] sm:$0xff]
  %v29 = vld [vmem:[%s0 + $0x78] sm:$0xff]
  %v30 = vld [vmem:[%s1] sm:$0x1]
  %v32 = vlaneseq
  %v33 = vshrl.u32 %v32, 7
  %v34 = vsub.s32 0, %v33
  %v35 = vrot.slane %v30, %v34
  %v37 = vmul.f32 %v14, %v35
  %v38 = vmul.f32 %v15, %v35
  %v39 = vmul.f32 %v16, %v35
  %v40 = vmul.f32 %v17, %v35
  %v41 = vmul.f32 %v18, %v35
  %v42 = vmul.f32 %v19, %v35
  %v43 = vmul.f32 %v20, %v35
  %v44 = vmul.f32 %v21, %v35
  %v45 = vmul.f32 %v22, %v35
  %v46 = vmul.f32 %v23, %v35
  %v47 = vmul.f32 %v24, %v35
  %v48 = vmul.f32 %v25, %v35
  %v49 = vmul.f32 %v26, %v35
  %v50 = vmul.f32 %v27, %v35
  %v51 = vmul.f32 %v28, %v35
  %v52 = vmul.f32 %v29, %v35
  %v53 = vld [vmem:[%s2] sm:$0x1]
  %v55 = vlaneseq
  %v56 = vshrl.u32 %v55, 7
  %v57 = vsub.s32 0, %v56
  %v58 = vrot.slane %v53, %v57
  %v60 = vadd.f32 %v37, %v58
  %v61 = vadd.f32 %v38, %v58
  %v62 = vadd.f32 %v39, %v58
  %v63 = vadd.f32 %v40, %v58
  %v64 = vadd.f32 %v41, %v58
  %v65 = vadd.f32 %v42, %v58
  %v66 = vadd.f32 %v43, %v58
  %v67 = vadd.f32 %v44, %v58
  %v68 = vadd.f32 %v45, %v58
  %v69 = vadd.f32 %v46, %v58
  %v70 = vadd.f32 %v47, %v58
  %v71 = vadd.f32 %v48, %v58
  %v72 = vadd.f32 %v49, %v58
  %v73 = vadd.f32 %v50, %v58
  %v74 = vadd.f32 %v51, %v58
  %v75 = vadd.f32 %v52, %v58
  %v76 = vmax.f32 %v60, 0.0
  %v77 = vmax.f32 %v61, 0.0
  %v78 = vmax.f32 %v62, 0.0
  %v79 = vmax.f32 %v63, 0.0
  %v80 = vmax.f32 %v64, 0.0
  %v81 = vmax.f32 %v65, 0.0
  %v82 = vmax.f32 %v66, 0.0
  %v83 = vmax.f32 %v67, 0.0
  %v84 = vmax.f32 %v68, 0.0
  %v85 = vmax.f32 %v69, 0.0
  %v86 = vmax.f32 %v70, 0.0
  %v87 = vmax.f32 %v71, 0.0
  %v88 = vmax.f32 %v72, 0.0
  %v89 = vmax.f32 %v73, 0.0
  %v90 = vmax.f32 %v74, 0.0
  %v91 = vmax.f32 %v75, 0.0
  %vm92 = vcmask 523264
  %93 = vst.msk [vmem:[%s3] sm:$0xff] %vm92, %v76
  %94 = vst.msk [vmem:[%s3 + $0x8] sm:$0xff] %vm92, %v77
  %95 = vst.msk [vmem:[%s3 + $0x10] sm:$0xff] %vm92, %v78
  %96 = vst.msk [vmem:[%s3 + $0x18] sm:$0xff] %vm92, %v79
  %97 = vst.msk [vmem:[%s3 + $0x20] sm:$0xff] %vm92, %v80
  %98 = vst.msk [vmem:[%s3 + $0x28] sm:$0xff] %vm92, %v81
  %99 = vst.msk [vmem:[%s3 + $0x30] sm:$0xff] %vm92, %v82
  %100 = vst.msk [vmem:[%s3 + $0x38] sm:$0xff] %vm92, %v83
  %101 = vst.msk [vmem:[%s3 + $0x40] sm:$0xff] %vm92, %v84
  %102 = vst.msk [vmem:[%s3 + $0x48] sm:$0xff] %vm92, %v85
  %103 = vst.msk [vmem:[%s3 + $0x50] sm:$0xff] %vm92, %v86
  %104 = vst.msk [vmem:[%s3 + $0x58] sm:$0xff] %vm92, %v87
  %105 = vst.msk [vmem:[%s3 + $0x60] sm:$0xff] %vm92, %v88
  %106 = vst.msk [vmem:[%s3 + $0x68] sm:$0xff] %vm92, %v89
  %107 = vst.msk [vmem:[%s3 + $0x70] sm:$0xff] %vm92, %v90
  %108 = vst.msk [vmem:[%s3 + $0x78] sm:$0xff] %vm92, %v91
  // Predicated region
  $region14: #{generator_forward.15} parent=0 // pred_check
    _
  $region15: #{generator_forward.15} parent=0 // pred_check_branch
    %110 = sbr.rel (0) target = $region17
  $region16: #{generator_forward.15} parent=0 // pred_region
    _
  $region17: #{generator_forward.15} parent=0 // pred_fallthru
    _
  // Predicated region
  $region18: #{generator_forward.15} parent=0 // pred_check
    _
  $region19: #{generator_forward.15} parent=0 // pred_check_branch
    %112 = sbr.rel (0) target = $region21
  $region20: #{generator_forward.15} parent=0 // pred_region
    _
  $region21: #{generator_forward.15} parent=0 // pred_fallthru
    _

// kernel: generator_forward.17
$region0: #{generator_forward.17}
  #allocation0 [shape = 'u32[]', space=smem, size = 0x4, offset = 0x4, fixed_abs, tag = 'smem constant byte address 0x4 - core index']
  #allocation1 [shape = 'u32[144,128]{1,0:T(1,128)}', space=vmem, size = 0x12000, scoped, tag = 'internal scratch']
  #allocation2 [shape = 'f32[1,32]{1,0:T(1,128)}', space=vmem, size = 0x200, scoped, tag = 'scratch operand']
  #allocation3 [shape = 'f32[1,32]{1,0:T(1,128)}', space=vmem, size = 0x200, scoped, tag = 'scratch operand']
  %s0 = inlined_call_operand.vmem [shape: f32[512,32], index: 0, kind: input, shape index: {}]
  %s1 = inlined_call_operand.vmem [shape: f32[1,32], index: 1, kind: output, shape index: {0}]
  %s2 = inlined_call_operand.vmem [shape: f32[1,32], index: 2, kind: output, shape index: {1}]
  %3 = xla_tuple %s1, %s2
  %s4 = sld [smem:[#allocation0]]
  $region53: #{generator_forward.17} parent=0
    _
  %s6 = ssub.s32 1, %s4
  %s7 = scalar_select 0, %s6, %s4
  loop: start=0, step=1, limit=4
  $region2: #{generator_forward.17} parent=0 // loop_pre_header
    _
  $region3: #{generator_forward.17} parent=0 // loop_header
    %s9 = sphi 0, %s13
    %p10 = scmp.ge.s32.totalorder %s9, 4
    %s19 = sphi 0, %s21
    %s22 = sphi 0, %s19
    %s23 = sphi 0, %s22
    %s39 = sphi 0, %s23
    %s43 = sphi 0, %s43
    %s45 = sphi 0, %s43
    %s46 = sphi 0, %s45
    %s60 = sphi 0, %s46
    %s64 = sphi 0, %s64
    %s66 = sphi 0, %s64
    %s67 = sphi 0, %s66
    %s81 = sphi 0, %s67
  $region4: #{generator_forward.17} parent=0 // loop_header_branch
    %12 = sbr.rel (%p10) target = $region8
  $region5: #{generator_forward.17} parent=0 // loop_body
    %s14 = ssub.s32 %s9, 1
    %s15 = ssub.s32 %s9, 2
    %s16 = sadd.s32 %s9, 1
    %s17 = ssub.s32 %s9, %s16
    %p18 = scmp.eq.s32.totalorder %s17, 0
    %s20 = sadd.s32 %s19, 1
    %s21 = scalar_select %p18, %s19, %s20
    %p24 = pneg %p18
    %p25 = scmp.eq.s32.totalorder %s9, 1
    %p26 = por %p24, %p25
    %p27 = scmp.ne.s32.totalorder %s19, %s22
    %p28 = scmp.eq.s32.totalorder %s9, 0
    %p29 = por %p27, %p28
    %p30 = scmp.ne.s32.totalorder %s19, %s22
    %p31 = scmp.eq.s32.totalorder %s14, 1
    %p32 = por %p30, %p31
    %p33 = scmp.ne.s32.totalorder %s22, %s23
    %p34 = scmp.eq.s32.totalorder %s14, 0
    %p35 = por %p33, %p34
    %p36 = scmp.ne.s32.totalorder %s22, %s23
    %p37 = scmp.eq.s32.totalorder %s15, 1
    %p38 = por %p36, %p37
    %p40 = scmp.ne.s32.totalorder %s23, %s39
    %p41 = scmp.eq.s32.totalorder %s15, 0
    %p42 = por %p40, %p41
    %s44 = sadd.s32 %s43, 1
    %p47 = scmp.eq.s32.totalorder %s9, 1
    %p48 = scmp.ne.s32.totalorder %s43, %s45
    %p49 = scmp.eq.s32.totalorder %s9, 0
    %p50 = por %p48, %p49
    %p51 = scmp.ne.s32.totalorder %s43, %s45
    %p52 = scmp.eq.s32.totalorder %s14, 1
    %p53 = por %p51, %p52
    %p54 = scmp.ne.s32.totalorder %s45, %s46
    %p55 = scmp.eq.s32.totalorder %s14, 0
    %p56 = por %p54, %p55
    %p57 = scmp.ne.s32.totalorder %s45, %s46
    %p58 = scmp.eq.s32.totalorder %s15, 1
    %p59 = por %p57, %p58
    %p61 = scmp.ne.s32.totalorder %s46, %s60
    %p62 = scmp.eq.s32.totalorder %s15, 0
    %p63 = por %p61, %p62
    %s65 = sadd.s32 %s64, 1
    %p68 = scmp.eq.s32.totalorder %s9, 1
    %p69 = scmp.ne.s32.totalorder %s64, %s66
    %p70 = scmp.eq.s32.totalorder %s9, 0
    %p71 = por %p69, %p70
    %p72 = scmp.ne.s32.totalorder %s64, %s66
    %p73 = scmp.eq.s32.totalorder %s14, 1
    %p74 = por %p72, %p73
    %p75 = scmp.ne.s32.totalorder %s66, %s67
    %p76 = scmp.eq.s32.totalorder %s14, 0
    %p77 = por %p75, %p76
    %p78 = scmp.ne.s32.totalorder %s66, %s67
    %p79 = scmp.eq.s32.totalorder %s15, 1
    %p80 = por %p78, %p79
    %p82 = scmp.ne.s32.totalorder %s67, %s81
    %p83 = scmp.eq.s32.totalorder %s15, 0
    %p84 = por %p82, %p83
    %p85 = scmp.le.s32.totalorder 1, %s9
    %p86 = scmp.lt.s32.totalorder %s9, 3
    %p87 = pnand %p85, %p86
    %p88 = pneg %p87
    // Predicated region
    $region9: #{generator_forward.17} parent=5 // pred_check
      _
    $region10: #{generator_forward.17} parent=5 // pred_check_branch
      %90 = sbr.rel (%p87) target = $region12
    $region11: #{generator_forward.17} parent=5 // pred_region
      %s91 = ssub.s32 %s9, 1
    $region12: #{generator_forward.17} parent=5 // pred_fallthru
      _
    %p92 = scmp.lt.s32.totalorder %s9, 2
    // Predicated region
    $region13: #{generator_forward.17} parent=5 // pred_check
      %p93 = pneg %p92
    $region14: #{generator_forward.17} parent=5 // pred_check_branch
      %95 = sbr.rel (%p93) target = $region16
    $region15: #{generator_forward.17} parent=5 // pred_region
      // Predicated region
      $region17: #{generator_forward.17} parent=15 // pred_check
        %p96 = pneg %p29
      $region18: #{generator_forward.17} parent=15 // pred_check_branch
        %98 = sbr.rel (%p96) target = $region20
      $region19: #{generator_forward.17} parent=15 // pred_region
        %s99 = smul.u32 32, %s9
        %p100 = scmp.lt.s32.totalorder %s99, 63
        %s101 = scalar_select %p100, %s99, 63
        %s102 = smul.addr %s101, 8
        %s103 = scalar_lea.vmem %s0, %s102
        %s104 = smul.u32 32, %s9
      $region20: #{generator_forward.17} parent=15 // pred_fallthru
        _
    $region16: #{generator_forward.17} parent=5 // pred_fallthru
      _
    %p105 = scmp.le.s32.totalorder 1, %s9
    %p106 = scmp.lt.s32.totalorder %s9, 3
    %p107 = pnand %p105, %p106
    %p108 = pneg %p107
    // Predicated region
    $region21: #{generator_forward.17} parent=5 // pred_check
      _
    $region22: #{generator_forward.17} parent=5 // pred_check_branch
      %110 = sbr.rel (%p107) target = $region24
    $region23: #{generator_forward.17} parent=5 // pred_region
      %s111 = ssub.s32 %s9, 1
      %s112 = smul.u32 32, %s14
      %p113 = scmp.lt.s32.totalorder %s112, 63
      %s114 = scalar_select %p113, %s112, 63
      %s115 = smul.addr %s114, 8
      %s116 = scalar_lea.vmem %s0, %s115
      %p117 = pneg %p35
      %p118 = pneg %p32
      %p119 = pneg %p56
      %p120 = pneg %p53
      %p121 = pneg %p77
      %p122 = pneg %p74
      %s123 = smul.u32 32, %s14
      %p124 = scmp.lt.s32.totalorder %s123, 63
      %s125 = scalar_select %p124, %s123, 63
      %s126 = smul.addr %s125, 8
      %s127 = scalar_lea.vmem %s0, %s126
      %s128 = smul.u32 32, %s14
      %p129 = scmp.eq.s32.totalorder %s14, 0
      // Predicated region
      $region25: #{generator_forward.17} parent=23 // pred_check
        %p130 = pneg %p129
      $region26: #{generator_forward.17} parent=23 // pred_check_branch
        %132 = sbr.rel (%p130) target = $region28
      $region27: #{generator_forward.17} parent=23 // pred_region
        %vm133 = vcmask 253952
        %134 = vst.msk [vmem:[#allocation2] sm:$0x1] %vm133, 0.0
        %135 = vst.msk [vmem:[#allocation3] sm:$0x1] %vm133, 0.0
      $region28: #{generator_forward.17} parent=23 // pred_fallthru
        _
      %v136 = vld [vmem:[%s127] sm:$0xff]
      %v137 = vld [vmem:[%s127 + $0x8] sm:$0xff]
      %v138 = vld [vmem:[%s127 + $0x10] sm:$0xff]
      %v139 = vld [vmem:[%s127 + $0x18] sm:$0xff]
      %v140 = vld [vmem:[%s127 + $0x20] sm:$0xff]
      %v141 = vld [vmem:[%s127 + $0x28] sm:$0xff]
      %v142 = vld [vmem:[%s127 + $0x30] sm:$0xff]
      %v143 = vld [vmem:[%s127 + $0x38] sm:$0xff]
      %v144 = vld [vmem:[%s127 + $0x40] sm:$0xff]
      %v145 = vld [vmem:[%s127 + $0x48] sm:$0xff]
      %v146 = vld [vmem:[%s127 + $0x50] sm:$0xff]
      %v147 = vld [vmem:[%s127 + $0x58] sm:$0xff]
      %v148 = vld [vmem:[%s127 + $0x60] sm:$0xff]
      %v149 = vld [vmem:[%s127 + $0x68] sm:$0xff]
      %v150 = vld [vmem:[%s127 + $0x70] sm:$0xff]
      %v151 = vld [vmem:[%s127 + $0x78] sm:$0xff]
      %v152 = vld [vmem:[%s127 + $0x80] sm:$0xff]
      %v153 = vld [vmem:[%s127 + $0x88] sm:$0xff]
      %v154 = vld [vmem:[%s127 + $0x90] sm:$0xff]
      %v155 = vld [vmem:[%s127 + $0x98] sm:$0xff]
      %v156 = vld [vmem:[%s127 + $0xa0] sm:$0xff]
      %v157 = vld [vmem:[%s127 + $0xa8] sm:$0xff]
      %v158 = vld [vmem:[%s127 + $0xb0] sm:$0xff]
      %v159 = vld [vmem:[%s127 + $0xb8] sm:$0xff]
      %v160 = vld [vmem:[%s127 + $0xc0] sm:$0xff]
      %v161 = vld [vmem:[%s127 + $0xc8] sm:$0xff]
      %v162 = vld [vmem:[%s127 + $0xd0] sm:$0xff]
      %v163 = vld [vmem:[%s127 + $0xd8] sm:$0xff]
      %v164 = vld [vmem:[%s127 + $0xe0] sm:$0xff]
      %v165 = vld [vmem:[%s127 + $0xe8] sm:$0xff]
      %v166 = vld [vmem:[%s127 + $0xf0] sm:$0xff]
      %v167 = vld [vmem:[%s127 + $0xf8] sm:$0xff]
      %v168 = vld [vmem:[#allocation2] sm:$0x1]
      %vm169 = vcmask 261120
      %v170 = vsel %vm169, %v136, 0.0
      %v171 = vsel %vm169, %v137, 0.0
      %v172 = vadd.f32 %v170, %v171
      %v173 = vsel %vm169, %v138, 0.0
      %v174 = vadd.f32 %v172, %v173
      %v175 = vsel %vm169, %v139, 0.0
      %v176 = vadd.f32 %v174, %v175
      %v177 = vsel %vm169, %v140, 0.0
      %v178 = vadd.f32 %v176, %v177
      %v179 = vsel %vm169, %v141, 0.0
      %v180 = vadd.f32 %v178, %v179
      %v181 = vsel %vm169, %v142, 0.0
      %v182 = vadd.f32 %v180, %v181
      %v183 = vsel %vm169, %v143, 0.0
      %v184 = vadd.f32 %v182, %v183
      %v185 = vsel %vm169, %v144, 0.0
      %v186 = vadd.f32 %v184, %v185
      %v187 = vsel %vm169, %v145, 0.0
      %v188 = vadd.f32 %v186, %v187
      %v189 = vsel %vm169, %v146, 0.0
      %v190 = vadd.f32 %v188, %v189
      %v191 = vsel %vm169, %v147, 0.0
      %v192 = vadd.f32 %v190, %v191
      %v193 = vsel %vm169, %v148, 0.0
      %v194 = vadd.f32 %v192, %v193
      %v195 = vsel %vm169, %v149, 0.0
      %v196 = vadd.f32 %v194, %v195
      %v197 = vsel %vm169, %v150, 0.0
      %v198 = vadd.f32 %v196, %v197
      %v199 = vsel %vm169, %v151, 0.0
      %v200 = vadd.f32 %v198, %v199
      %v201 = vsel %vm169, %v152, 0.0
      %v202 = vadd.f32 %v200, %v201
      %v203 = vsel %vm169, %v153, 0.0
      %v204 = vadd.f32 %v202, %v203
      %v205 = vsel %vm169, %v154, 0.0
      %v206 = vadd.f32 %v204, %v205
      %v207 = vsel %vm169, %v155, 0.0
      %v208 = vadd.f32 %v206, %v207
      %v209 = vsel %vm169, %v156, 0.0
      %v210 = vadd.f32 %v208, %v209
      %v211 = vsel %vm169, %v157, 0.0
      %v212 = vadd.f32 %v210, %v211
      %v213 = vsel %vm169, %v158, 0.0
      %v214 = vadd.f32 %v212, %v213
      %v215 = vsel %vm169, %v159, 0.0
      %v216 = vadd.f32 %v214, %v215
      %v217 = vsel %vm169, %v160, 0.0
      %v218 = vadd.f32 %v216, %v217
      %v219 = vsel %vm169, %v161, 0.0
      %v220 = vadd.f32 %v218, %v219
      %v221 = vsel %vm169, %v162, 0.0
      %v222 = vadd.f32 %v220, %v221
      %v223 = vsel %vm169, %v163, 0.0
      %v224 = vadd.f32 %v222, %v223
      %v225 = vsel %vm169, %v164, 0.0
      %v226 = vadd.f32 %v224, %v225
      %v227 = vsel %vm169, %v165, 0.0
      %v228 = vadd.f32 %v226, %v227
      %v229 = vsel %vm169, %v166, 0.0
      %v230 = vadd.f32 %v228, %v229
      %v231 = vsel %vm169, %v167, 0.0
      %v232 = vadd.f32 %v230, %v231
      %v233 = vrot.slane %v232, 4
      %v234 = vadd.f32 %v232, %v233
      %v235 = vrot.slane %v234, 2
      %v236 = vadd.f32 %v234, %v235
      %v237 = vrot.slane %v236, 1
      %v238 = vadd.f32 %v236, %v237
      %v239 = vadd.f32 %v168, %v238
      %vm240 = vcmask 253952
      %241 = vst.msk [vmem:[#allocation2] sm:$0x1] %vm240, %v239
      %v242 = vld [vmem:[#allocation3] sm:$0x1]
      %v243 = vmul.f32 %v136, %v136
      %v244 = vmul.f32 %v137, %v137
      %v245 = vmul.f32 %v138, %v138
      %v246 = vmul.f32 %v139, %v139
      %v247 = vmul.f32 %v140, %v140
      %v248 = vmul.f32 %v141, %v141
      %v249 = vmul.f32 %v142, %v142
      %v250 = vmul.f32 %v143, %v143
      %v251 = vmul.f32 %v144, %v144
      %v252 = vmul.f32 %v145, %v145
      %v253 = vmul.f32 %v146, %v146
      %v254 = vmul.f32 %v147, %v147
      %v255 = vmul.f32 %v148, %v148
      %v256 = vmul.f32 %v149, %v149
      %v257 = vmul.f32 %v150, %v150
      %v258 = vmul.f32 %v151, %v151
      %v259 = vmul.f32 %v152, %v152
      %v260 = vmul.f32 %v153, %v153
      %v261 = vmul.f32 %v154, %v154
      %v262 = vmul.f32 %v155, %v155
      %v263 = vmul.f32 %v156, %v156
      %v264 = vmul.f32 %v157, %v157
      %v265 = vmul.f32 %v158, %v158
      %v266 = vmul.f32 %v159, %v159
      %v267 = vmul.f32 %v160, %v160
      %v268 = vmul.f32 %v161, %v161
      %v269 = vmul.f32 %v162, %v162
      %v270 = vmul.f32 %v163, %v163
      %v271 = vmul.f32 %v164, %v164
      %v272 = vmul.f32 %v165, %v165
      %v273 = vmul.f32 %v166, %v166
      %v274 = vmul.f32 %v167, %v167
      %v275 = vsel %vm169, %v243, 0.0
      %v276 = vsel %vm169, %v244, 0.0
      %v277 = vadd.f32 %v275, %v276
      %v278 = vsel %vm169, %v245, 0.0
      %v279 = vadd.f32 %v277, %v278
      %v280 = vsel %vm169, %v246, 0.0
      %v281 = vadd.f32 %v279, %v280
      %v282 = vsel %vm169, %v247, 0.0
      %v283 = vadd.f32 %v281, %v282
      %v284 = vsel %vm169, %v248, 0.0
      %v285 = vadd.f32 %v283, %v284
      %v286 = vsel %vm169, %v249, 0.0
      %v287 = vadd.f32 %v285, %v286
      %v288 = vsel %vm169, %v250, 0.0
      %v289 = vadd.f32 %v287, %v288
      %v290 = vsel %vm169, %v251, 0.0
      %v291 = vadd.f32 %v289, %v290
      %v292 = vsel %vm169, %v252, 0.0
      %v293 = vadd.f32 %v291, %v292
      %v294 = vsel %vm169, %v253, 0.0
      %v295 = vadd.f32 %v293, %v294
      %v296 = vsel %vm169, %v254, 0.0
      %v297 = vadd.f32 %v295, %v296
      %v298 = vsel %vm169, %v255, 0.0
      %v299 = vadd.f32 %v297, %v298
      %v300 = vsel %vm169, %v256, 0.0
      %v301 = vadd.f32 %v299, %v300
      %v302 = vsel %vm169, %v257, 0.0
      %v303 = vadd.f32 %v301, %v302
      %v304 = vsel %vm169, %v258, 0.0
      %v305 = vadd.f32 %v303, %v304
      %v306 = vsel %vm169, %v259, 0.0
      %v307 = vadd.f32 %v305, %v306
      %v308 = vsel %vm169, %v260, 0.0
      %v309 = vadd.f32 %v307, %v308
      %v310 = vsel %vm169, %v261, 0.0
      %v311 = vadd.f32 %v309, %v310
      %v312 = vsel %vm169, %v262, 0.0
      %v313 = vadd.f32 %v311, %v312
      %v314 = vsel %vm169, %v263, 0.0
      %v315 = vadd.f32 %v313, %v314
      %v316 = vsel %vm169, %v264, 0.0
      %v317 = vadd.f32 %v315, %v316
      %v318 = vsel %vm169, %v265, 0.0
      %v319 = vadd.f32 %v317, %v318
      %v320 = vsel %vm169, %v266, 0.0
      %v321 = vadd.f32 %v319, %v320
      %v322 = vsel %vm169, %v267, 0.0
      %v323 = vadd.f32 %v321, %v322
      %v324 = vsel %vm169, %v268, 0.0
      %v325 = vadd.f32 %v323, %v324
      %v326 = vsel %vm169, %v269, 0.0
      %v327 = vadd.f32 %v325, %v326
      %v328 = vsel %vm169, %v270, 0.0
      %v329 = vadd.f32 %v327, %v328
      %v330 = vsel %vm169, %v271, 0.0
      %v331 = vadd.f32 %v329, %v330
      %v332 = vsel %vm169, %v272, 0.0
      %v333 = vadd.f32 %v331, %v332
      %v334 = vsel %vm169, %v273, 0.0
      %v335 = vadd.f32 %v333, %v334
      %v336 = vsel %vm169, %v274, 0.0
      %v337 = vadd.f32 %v335, %v336
      %v338 = vrot.slane %v337, 4
      %v339 = vadd.f32 %v337, %v338
      %v340 = vrot.slane %v339, 2
      %v341 = vadd.f32 %v339, %v340
      %v342 = vrot.slane %v341, 1
      %v343 = vadd.f32 %v341, %v342
      %v344 = vadd.f32 %v242, %v343
      %345 = vst.msk [vmem:[#allocation3] sm:$0x1] %vm240, %v344
      %p346 = scmp.eq.s32.totalorder %s14, 1
      // Predicated region
      $region29: #{generator_forward.17} parent=23 // pred_check
        %p347 = pneg %p346
      $region30: #{generator_forward.17} parent=23 // pred_check_branch
        %349 = sbr.rel (%p347) target = $region32
      $region31: #{generator_forward.17} parent=23 // pred_region
        %v350 = vld [vmem:[#allocation2] sm:$0x1]
        %351 = vst.msk [vmem:[%s1] sm:$0x1] %vm240, %v350
        %v352 = vld [vmem:[#allocation3] sm:$0x1]
        %353 = vst.msk [vmem:[%s2] sm:$0x1] %vm240, %v352
      $region32: #{generator_forward.17} parent=23 // pred_fallthru
        _
      // Predicated region
      $region33: #{generator_forward.17} parent=23 // pred_check
        %p354 = pneg %p53
      $region34: #{generator_forward.17} parent=23 // pred_check_branch
        %356 = sbr.rel (%p354) target = $region36
      $region35: #{generator_forward.17} parent=23 // pred_region
        _
      $region36: #{generator_forward.17} parent=23 // pred_fallthru
        _
      // Predicated region
      $region37: #{generator_forward.17} parent=23 // pred_check
        %p357 = pneg %p74
      $region38: #{generator_forward.17} parent=23 // pred_check_branch
        %359 = sbr.rel (%p357) target = $region40
      $region39: #{generator_forward.17} parent=23 // pred_region
        _
      $region40: #{generator_forward.17} parent=23 // pred_fallthru
        _
      // Predicated region
      $region41: #{generator_forward.17} parent=23 // pred_check
        %p360 = pneg %p53
      $region42: #{generator_forward.17} parent=23 // pred_check_branch
        %362 = sbr.rel (%p360) target = $region44
      $region43: #{generator_forward.17} parent=23 // pred_region
        _
      $region44: #{generator_forward.17} parent=23 // pred_fallthru
        _
      // Predicated region
      $region45: #{generator_forward.17} parent=23 // pred_check
        %p363 = pneg %p74
      $region46: #{generator_forward.17} parent=23 // pred_check_branch
        %365 = sbr.rel (%p363) target = $region48
      $region47: #{generator_forward.17} parent=23 // pred_region
        _
      $region48: #{generator_forward.17} parent=23 // pred_fallthru
        _
    $region24: #{generator_forward.17} parent=5 // pred_fallthru
      _
    %p366 = scmp.le.s32.totalorder 2, %s9
    // Predicated region
    $region49: #{generator_forward.17} parent=5 // pred_check
      %p367 = pneg %p366
    $region50: #{generator_forward.17} parent=5 // pred_check_branch
      %369 = sbr.rel (%p367) target = $region52
    $region51: #{generator_forward.17} parent=5 // pred_region
      %s370 = ssub.s32 %s9, 2
    $region52: #{generator_forward.17} parent=5 // pred_fallthru
      _
  $region6: #{generator_forward.17} parent=0 // loop_footer
    %s13 = sadd.s32 1, %s9
  $region7: #{generator_forward.17} parent=0 // loop_footer_branch
    %8 = sbr.rel target = $region3
  $region8: #{generator_forward.17} parent=0 // loop_exit
    _

// kernel: generator_forward.16
$region0: #{generator_forward.16}
  #allocation0 [shape = 'u32[]', space=smem, size = 0x4, offset = 0x4, fixed_abs, tag = 'smem constant byte address 0x4 - core index']
  #allocation1 [shape = 'u32[144,128]{1,0:T(1,128)}', space=vmem, size = 0x12000, scoped, tag = 'internal scratch']
  %s0 = inlined_call_operand.vmem [shape: bf16[4,128,256], index: 0, kind: input, shape index: {}]
  %s1 = inlined_call_operand.vmem [shape: bf16[4,256,32], index: 1, kind: input, shape index: {}]
  %s2 = inlined_call_operand.vmem [shape: f32[1,32], index: 2, kind: input, shape index: {}]
  %s3 = inlined_call_operand.vmem [shape: f32[4,128,32], index: 3, kind: output, shape index: {}]
  %s4 = sld [smem:[#allocation0]]
  $region45: #{generator_forward.16} parent=0
    _
  %s6 = ssub.s32 1, %s4
  %s7 = scalar_select 0, %s6, %s4
  loop: start=0, step=1, limit=6
  $region2: #{generator_forward.16} parent=0 // loop_pre_header
    _
  $region3: #{generator_forward.16} parent=0 // loop_header
    %s9 = sphi 0, %s13
    %p10 = scmp.ge.s32.totalorder %s9, 6
    %s16 = sphi 0, %s35
    %s17 = sphi 0, %s31
    %s18 = sphi 0, %s27
    %s19 = sphi 0, %s16
    %s20 = sphi 0, %s17
    %s21 = sphi 0, %s18
    %s22 = sphi 0, %s19
    %s23 = sphi 0, %s20
    %s24 = sphi 0, %s21
    %s40 = sphi 0, %s42
    %s43 = sphi 0, %s40
    %s44 = sphi 0, %s43
    %s60 = sphi 0, %s44
    %s68 = sphi 0, %s70
    %s71 = sphi 0, %s68
    %s72 = sphi 0, %s71
    %s88 = sphi 0, %s72
    %s94 = sphi 0, %s96
    %s97 = sphi 0, %s94
    %s98 = sphi 0, %s97
    %s114 = sphi 0, %s98
    %s124 = sphi 0, %s126
    %s127 = sphi 0, %s124
    %s128 = sphi 0, %s127
    %s144 = sphi 0, %s128
  $region4: #{generator_forward.16} parent=0 // loop_header_branch
    %12 = sbr.rel (%p10) target = $region8
  $region5: #{generator_forward.16} parent=0 // loop_body
    %s14 = ssub.s32 %s9, 1
    %s15 = ssub.s32 %s9, 2
    %s25 = sadd.s32 1, %s18
    %p26 = scmp.ge.s32.totalorder %s25, 1
    %s27 = scalar_select %p26, 0, %s25
    %s28 = sadd.s32 1, %s17
    %s29 = scalar_select %p26, %s28, %s17
    %p30 = scmp.ge.s32.totalorder %s29, 1
    %s31 = scalar_select %p30, 0, %s29
    %s32 = sadd.s32 1, %s16
    %s33 = scalar_select %p30, %s32, %s16
    %p34 = scmp.ge.s32.totalorder %s33, 4
    %s35 = scalar_select %p34, 0, %s33
    %s36 = ssub.s32 %s16, %s35
    %s37 = ssub.s32 %s17, %s31
    %s38 = sor.u32 %s36, %s37
    %p39 = scmp.eq.s32.totalorder %s38, 0
    %s41 = sadd.s32 %s40, 1
    %s42 = scalar_select %p39, %s40, %s41
    %p45 = pneg %p39
    %p46 = scmp.eq.s32.totalorder %s9, 3
    %p47 = por %p45, %p46
    %p48 = scmp.ne.s32.totalorder %s40, %s43
    %p49 = scmp.eq.s32.totalorder %s9, 0
    %p50 = por %p48, %p49
    %p51 = scmp.ne.s32.totalorder %s40, %s43
    %p52 = scmp.eq.s32.totalorder %s14, 3
    %p53 = por %p51, %p52
    %p54 = scmp.ne.s32.totalorder %s43, %s44
    %p55 = scmp.eq.s32.totalorder %s14, 0
    %p56 = por %p54, %p55
    %p57 = scmp.ne.s32.totalorder %s43, %s44
    %p58 = scmp.eq.s32.totalorder %s15, 3
    %p59 = por %p57, %p58
    %p61 = scmp.ne.s32.totalorder %s44, %s60
    %p62 = scmp.eq.s32.totalorder %s15, 0
    %p63 = por %p61, %p62
    %s64 = ssub.s32 %s16, %s35
    %s65 = ssub.s32 %s18, %s27
    %s66 = sor.u32 %s64, %s65
    %p67 = scmp.eq.s32.totalorder %s66, 0
    %s69 = sadd.s32 %s68, 1
    %s70 = scalar_select %p67, %s68, %s69
    %p73 = pneg %p67
    %p74 = scmp.eq.s32.totalorder %s9, 3
    %p75 = por %p73, %p74
    %p76 = scmp.ne.s32.totalorder %s68, %s71
    %p77 = scmp.eq.s32.totalorder %s9, 0
    %p78 = por %p76, %p77
    %p79 = scmp.ne.s32.totalorder %s68, %s71
    %p80 = scmp.eq.s32.totalorder %s14, 3
    %p81 = por %p79, %p80
    %p82 = scmp.ne.s32.totalorder %s71, %s72
    %p83 = scmp.eq.s32.totalorder %s14, 0
    %p84 = por %p82, %p83
    %p85 = scmp.ne.s32.totalorder %s71, %s72
    %p86 = scmp.eq.s32.totalorder %s15, 3
    %p87 = por %p85, %p86
    %p89 = scmp.ne.s32.totalorder %s72, %s88
    %p90 = scmp.eq.s32.totalorder %s15, 0
    %p91 = por %p89, %p90
    %s92 = ssub.s32 %s18, %s27
    %p93 = scmp.eq.s32.totalorder %s92, 0
    %s95 = sadd.s32 %s94, 1
    %s96 = scalar_select %p93, %s94, %s95
    %p99 = pneg %p93
    %p100 = scmp.eq.s32.totalorder %s9, 3
    %p101 = por %p99, %p100
    %p102 = scmp.ne.s32.totalorder %s94, %s97
    %p103 = scmp.eq.s32.totalorder %s9, 0
    %p104 = por %p102, %p103
    %p105 = scmp.ne.s32.totalorder %s94, %s97
    %p106 = scmp.eq.s32.totalorder %s14, 3
    %p107 = por %p105, %p106
    %p108 = scmp.ne.s32.totalorder %s97, %s98
    %p109 = scmp.eq.s32.totalorder %s14, 0
    %p110 = por %p108, %p109
    %p111 = scmp.ne.s32.totalorder %s97, %s98
    %p112 = scmp.eq.s32.totalorder %s15, 3
    %p113 = por %p111, %p112
    %p115 = scmp.ne.s32.totalorder %s98, %s114
    %p116 = scmp.eq.s32.totalorder %s15, 0
    %p117 = por %p115, %p116
    %s118 = ssub.s32 %s16, %s35
    %s119 = ssub.s32 %s17, %s31
    %s120 = sor.u32 %s118, %s119
    %s121 = ssub.s32 %s18, %s27
    %s122 = sor.u32 %s120, %s121
    %p123 = scmp.eq.s32.totalorder %s122, 0
    %s125 = sadd.s32 %s124, 1
    %s126 = scalar_select %p123, %s124, %s125
    %p129 = pneg %p123
    %p130 = scmp.eq.s32.totalorder %s9, 3
    %p131 = por %p129, %p130
    %p132 = scmp.ne.s32.totalorder %s124, %s127
    %p133 = scmp.eq.s32.totalorder %s9, 0
    %p134 = por %p132, %p133
    %p135 = scmp.ne.s32.totalorder %s124, %s127
    %p136 = scmp.eq.s32.totalorder %s14, 3
    %p137 = por %p135, %p136
    %p138 = scmp.ne.s32.totalorder %s127, %s128
    %p139 = scmp.eq.s32.totalorder %s14, 0
    %p140 = por %p138, %p139
    %p141 = scmp.ne.s32.totalorder %s127, %s128
    %p142 = scmp.eq.s32.totalorder %s15, 3
    %p143 = por %p141, %p142
    %p145 = scmp.ne.s32.totalorder %s128, %s144
    %p146 = scmp.eq.s32.totalorder %s15, 0
    %p147 = por %p145, %p146
    %p148 = scmp.le.s32.totalorder 1, %s9
    %p149 = scmp.lt.s32.totalorder %s9, 5
    %p150 = pnand %p148, %p149
    %p151 = pneg %p150
    // Predicated region
    $region9: #{generator_forward.16} parent=5 // pred_check
      _
    $region10: #{generator_forward.16} parent=5 // pred_check_branch
      %153 = sbr.rel (%p150) target = $region12
    $region11: #{generator_forward.16} parent=5 // pred_region
      %s154 = ssub.s32 %s9, 1
      // Predicated region
      $region13: #{generator_forward.16} parent=11 // pred_check
        %p155 = pneg %p110
      $region14: #{generator_forward.16} parent=11 // pred_check_branch
        %157 = sbr.rel (%p155) target = $region16
      $region15: #{generator_forward.16} parent=11 // pred_region
        %p158 = scmp.lt.s32.totalorder %s21, 0
        %s159 = scalar_select %p158, %s21, 0
        %s160 = scalar_lea.vmem %s2, %s159
      $region16: #{generator_forward.16} parent=11 // pred_fallthru
        _
    $region12: #{generator_forward.16} parent=5 // pred_fallthru
      _
    %p161 = scmp.lt.s32.totalorder %s9, 4
    // Predicated region
    $region17: #{generator_forward.16} parent=5 // pred_check
      %p162 = pneg %p161
    $region18: #{generator_forward.16} parent=5 // pred_check_branch
      %164 = sbr.rel (%p162) target = $region20
    $region19: #{generator_forward.16} parent=5 // pred_region
      // Predicated region
      $region21: #{generator_forward.16} parent=19 // pred_check
        %p165 = pneg %p50
      $region22: #{generator_forward.16} parent=19 // pred_check_branch
        %167 = sbr.rel (%p165) target = $region24
      $region23: #{generator_forward.16} parent=19 // pred_region
        %s168 = smul.u32 16, %s17
        %p169 = scmp.lt.s32.totalorder %s16, 3
        %s170 = scalar_select %p169, %s16, 3
        %p171 = scmp.lt.s32.totalorder %s168, 15
        %s172 = scalar_select %p171, %s168, 15
        %s173 = smul.addr %s172, 2
        %s174 = smul.addr %s170, 32
        %s175 = sadd.s32 %s173, %s174
        %s176 = smul.addr %s175, 4
        %s177 = scalar_lea.vmem %s0, %s176
        %s178 = smul.u32 16, %s17
      $region24: #{generator_forward.16} parent=19 // pred_fallthru
        _
      // Predicated region
      $region25: #{generator_forward.16} parent=19 // pred_check
        %p179 = pneg %p78
      $region26: #{generator_forward.16} parent=19 // pred_check_branch
        %181 = sbr.rel (%p179) target = $region28
      $region27: #{generator_forward.16} parent=19 // pred_region
        %p182 = scmp.lt.s32.totalorder %s16, 3
        %s183 = scalar_select %p182, %s16, 3
        %p184 = scmp.lt.s32.totalorder %s18, 0
        %s185 = scalar_select %p184, %s18, 0
        %s186 = smul.addr %s183, 32
        %s187 = sadd.s32 %s185, %s186
        %s188 = smul.addr %s187, 4
        %s189 = scalar_lea.vmem %s1, %s188
      $region28: #{generator_forward.16} parent=19 // pred_fallthru
        _
    $region20: #{generator_forward.16} parent=5 // pred_fallthru
      _
    %p190 = scmp.le.s32.totalorder 1, %s9
    %p191 = scmp.lt.s32.totalorder %s9, 5
    %p192 = pnand %p190, %p191
    %p193 = pneg %p192
    // Predicated region
    $region29: #{generator_forward.16} parent=5 // pred_check
      _
    $region30: #{generator_forward.16} parent=5 // pred_check_branch
      %195 = sbr.rel (%p192) target = $region32
    $region31: #{generator_forward.16} parent=5 // pred_region
      %s196 = ssub.s32 %s9, 1
      %s197 = smul.u32 16, %s20
      %p198 = scmp.lt.s32.totalorder %s19, 3
      %s199 = scalar_select %p198, %s19, 3
      %p200 = scmp.lt.s32.totalorder %s197, 15
      %s201 = scalar_select %p200, %s197, 15
      %s202 = smul.addr %s201, 2
      %s203 = smul.addr %s199, 32
      %s204 = sadd.s32 %s202, %s203
      %s205 = smul.addr %s204, 4
      %s206 = scalar_lea.vmem %s0, %s205
      %p207 = pneg %p56
      %p208 = pneg %p53
      %p209 = scmp.lt.s32.totalorder %s19, 3
      %s210 = scalar_select %p209, %s19, 3
      %p211 = scmp.lt.s32.totalorder %s21, 0
      %s212 = scalar_select %p211, %s21, 0
      %s213 = smul.addr %s210, 32
      %s214 = sadd.s32 %s212, %s213
      %s215 = smul.addr %s214, 4
      %s216 = scalar_lea.vmem %s1, %s215
      %p217 = pneg %p84
      %p218 = pneg %p81
      %p219 = scmp.lt.s32.totalorder %s21, 0
      %s220 = scalar_select %p219, %s21, 0
      %s221 = scalar_lea.vmem %s2, %s220
      %p222 = pneg %p110
      %p223 = pneg %p107
      %p224 = pneg %p140
      %p225 = pneg %p137
      %s226 = smul.u32 16, %s20
      %p227 = scmp.lt.s32.totalorder %s19, 3
      %s228 = scalar_select %p227, %s19, 3
      %p229 = scmp.lt.s32.totalorder %s226, 15
      %s230 = scalar_select %p229, %s226, 15
      %p231 = scmp.lt.s32.totalorder %s21, 0
      %s232 = scalar_select %p231, %s21, 0
      %s233 = sadd.s32 %s232, %s230
      %s234 = smul.addr %s228, 16
      %s235 = sadd.s32 %s233, %s234
      %s236 = smul.addr %s235, 8
      %s237 = scalar_lea.vmem %s3, %s236
      %s238 = smul.u32 16, %s20
      %p239 = scmp.lt.s32.totalorder %s19, 3
      %s240 = scalar_select %p239, %s19, 3
      %p241 = scmp.lt.s32.totalorder %s238, 15
      %s242 = scalar_select %p241, %s238, 15
      %s243 = smul.addr %s242, 2
      %s244 = smul.addr %s240, 32
      %s245 = sadd.s32 %s243, %s244
      %s246 = smul.addr %s245, 4
      %s247 = scalar_lea.vmem %s0, %s246
      %s248 = smul.u32 16, %s20
      %p249 = scmp.lt.s32.totalorder %s19, 3
      %s250 = scalar_select %p249, %s19, 3
      %p251 = scmp.lt.s32.totalorder %s21, 0
      %s252 = scalar_select %p251, %s21, 0
      %s253 = smul.addr %s250, 32
      %s254 = sadd.s32 %s252, %s253
      %s255 = smul.addr %s254, 4
      %s256 = scalar_lea.vmem %s1, %s255
      %p257 = scmp.lt.s32.totalorder %s21, 0
      %s258 = scalar_select %p257, %s21, 0
      %s259 = scalar_lea.vmem %s2, %s258
      %s260 = smul.u32 16, %s20
      %p261 = scmp.lt.s32.totalorder %s19, 3
      %s262 = scalar_select %p261, %s19, 3
      %p263 = scmp.lt.s32.totalorder %s260, 15
      %s264 = scalar_select %p263, %s260, 15
      %p265 = scmp.lt.s32.totalorder %s21, 0
      %s266 = scalar_select %p265, %s21, 0
      %s267 = sadd.s32 %s266, %s264
      %s268 = smul.addr %s262, 16
      %s269 = sadd.s32 %s267, %s268
      %s270 = smul.addr %s269, 8
      %s271 = scalar_lea.vmem %s3, %s270
      %s272 = smul.u32 16, %s20
      %v274 = vld [vmem:[%s247] sm:$0xff]
      %v275 = vld [vmem:[%s247 + $0x8] sm:$0xff]
      %v276 = vld [vmem:[%s247 + $0x10] sm:$0xff]
      %v277 = vld [vmem:[%s247 + $0x18] sm:$0xff]
      %v278 = vld [vmem:[%s247 + $0x20] sm:$0xff]
      %v279 = vld [vmem:[%s247 + $0x28] sm:$0xff]
      %v280 = vld [vmem:[%s247 + $0x30] sm:$0xff]
      %v281 = vld [vmem:[%s247 + $0x38] sm:$0xff]
      %v282 = vld [vmem:[%s247 + $0x40] sm:$0xff]
      %v283 = vld [vmem:[%s247 + $0x48] sm:$0xff]
      %v284 = vld [vmem:[%s247 + $0x50] sm:$0xff]
      %v285 = vld [vmem:[%s247 + $0x58] sm:$0xff]
      %v286 = vld [vmem:[%s247 + $0x60] sm:$0xff]
      %v287 = vld [vmem:[%s247 + $0x68] sm:$0xff]
      %v288 = vld [vmem:[%s247 + $0x70] sm:$0xff]
      %v289 = vld [vmem:[%s247 + $0x78] sm:$0xff]
      %v290 = vld [vmem:[%s256] sm:$0xf]
      %v291 = vld [vmem:[%s256 + $0x4] sm:$0xf]
      %v292 = vld [vmem:[%s256 + $0x8] sm:$0xf]
      %v293 = vld [vmem:[%s256 + $0xc] sm:$0xf]
      %v294 = vld [vmem:[%s256 + $0x10] sm:$0xf]
      %v295 = vld [vmem:[%s256 + $0x14] sm:$0xf]
      %v296 = vld [vmem:[%s256 + $0x18] sm:$0xf]
      %v297 = vld [vmem:[%s256 + $0x1c] sm:$0xf]
      %v298 = vld [vmem:[%s256 + $0x20] sm:$0xf]
      %v299 = vld [vmem:[%s256 + $0x24] sm:$0xf]
      %v300 = vld [vmem:[%s256 + $0x28] sm:$0xf]
      %v301 = vld [vmem:[%s256 + $0x2c] sm:$0xf]
      %v302 = vld [vmem:[%s256 + $0x30] sm:$0xf]
      %v303 = vld [vmem:[%s256 + $0x34] sm:$0xf]
      %v304 = vld [vmem:[%s256 + $0x38] sm:$0xf]
      %v305 = vld [vmem:[%s256 + $0x3c] sm:$0xf]
      %v306 = vld [vmem:[%s256 + $0x40] sm:$0xf]
      %v307 = vld [vmem:[%s256 + $0x44] sm:$0xf]
      %v308 = vld [vmem:[%s256 + $0x48] sm:$0xf]
      %v309 = vld [vmem:[%s256 + $0x4c] sm:$0xf]
      %v310 = vld [vmem:[%s256 + $0x50] sm:$0xf]
      %v311 = vld [vmem:[%s256 + $0x54] sm:$0xf]
      %v312 = vld [vmem:[%s256 + $0x58] sm:$0xf]
      %v313 = vld [vmem:[%s256 + $0x5c] sm:$0xf]
      %v314 = vld [vmem:[%s256 + $0x60] sm:$0xf]
      %v315 = vld [vmem:[%s256 + $0x64] sm:$0xf]
      %v316 = vld [vmem:[%s256 + $0x68] sm:$0xf]
      %v317 = vld [vmem:[%s256 + $0x6c] sm:$0xf]
      %v318 = vld [vmem:[%s256 + $0x70] sm:$0xf]
      %v319 = vld [vmem:[%s256 + $0x74] sm:$0xf]
      %v320 = vld [vmem:[%s256 + $0x78] sm:$0xf]
      %v321 = vld [vmem:[%s256 + $0x7c] sm:$0xf]
      %v322 = vld [vmem:[%s259] sm:$0x1]
      %v324 = vlaneseq
      %v325 = vshrl.u32 %v324, 7
      %v326 = vsub.s32 0, %v325
      %v327 = vrot.slane %v322, %v326
      %v345 = vunpack.c.l.b16 %v274
      %v346 = vunpack.c.h.b16 %v274
      %v347 = vunpack.c.l.b16 %v275
      %v348 = vunpack.c.h.b16 %v275
      %v349 = vunpack.c.l.b16 %v276
      %v350 = vunpack.c.h.b16 %v276
      %v351 = vunpack.c.l.b16 %v277
      %v352 = vunpack.c.h.b16 %v277
      %v353 = vunpack.c.l.b16 %v278
      %v354 = vunpack.c.h.b16 %v278
      %v355 = vunpack.c.l.b16 %v279
      %v356 = vunpack.c.h.b16 %v279
      %v357 = vunpack.c.l.b16 %v280
      %v358 = vunpack.c.h.b16 %v280
      %v359 = vunpack.c.l.b16 %v281
      %v360 = vunpack.c.h.b16 %v281
      %v361 = vunpack.c.l.b16 %v282
      %v362 = vunpack.c.h.b16 %v282
      %v363 = vunpack.c.l.b16 %v283
      %v364 = vunpack.c.h.b16 %v283
      %v365 = vunpack.c.l.b16 %v284
      %v366 = vunpack.c.h.b16 %v284
      %v367 = vunpack.c.l.b16 %v285
      %v368 = vunpack.c.h.b16 %v285
      %v369 = vunpack.c.l.b16 %v286
      %v370 = vunpack.c.h.b16 %v286
      %v371 = vunpack.c.l.b16 %v287
      %v372 = vunpack.c.h.b16 %v287
      %v373 = vunpack.c.l.b16 %v288
      %v374 = vunpack.c.h.b16 %v288
      %v375 = vunpack.c.l.b16 %v289
      %v376 = vunpack.c.h.b16 %v289
      %v377 = vpack.c.b16 %v347, %v345
      %v378 = vpack.c.b16 %v348, %v346
      %v379 = vpack.c.b16 %v351, %v349
      %v380 = vpack.c.b16 %v352, %v350
      %v381 = vpack.c.b16 %v355, %v353
      %v382 = vpack.c.b16 %v356, %v354
      %v383 = vpack.c.b16 %v359, %v357
      %v384 = vpack.c.b16 %v360, %v358
      %v385 = vpack.c.b16 %v363, %v361
      %v386 = vpack.c.b16 %v364, %v362
      %v387 = vpack.c.b16 %v367, %v365
      %v388 = vpack.c.b16 %v368, %v366
      %v389 = vpack.c.b16 %v371, %v369
      %v390 = vpack.c.b16 %v372, %v370
      %v391 = vpack.c.b16 %v375, %v373
      %v392 = vpack.c.b16 %v376, %v374
      %v441 = vunpack.c.l.b16 %v290
      %v442 = vunpack.c.l.b16 %v291
      %v443 = vunpack.c.l.b16 %v292
      %v444 = vunpack.c.l.b16 %v293
      %v445 = vunpack.c.l.b16 %v294
      %v446 = vunpack.c.l.b16 %v295
      %v447 = vunpack.c.l.b16 %v296
      %v448 = vunpack.c.l.b16 %v297
      %v449 = vunpack.c.l.b16 %v298
      %v450 = vunpack.c.l.b16 %v299
      %v451 = vunpack.c.l.b16 %v300
      %v452 = vunpack.c.l.b16 %v301
      %v453 = vunpack.c.l.b16 %v302
      %v454 = vunpack.c.l.b16 %v303
      %v455 = vunpack.c.l.b16 %v304
      %v456 = vunpack.c.l.b16 %v305
      %v457 = vunpack.c.l.b16 %v306
      %v458 = vunpack.c.l.b16 %v307
      %v459 = vunpack.c.l.b16 %v308
      %v460 = vunpack.c.l.b16 %v309
      %v461 = vunpack.c.l.b16 %v310
      %v462 = vunpack.c.l.b16 %v311
      %v463 = vunpack.c.l.b16 %v312
      %v464 = vunpack.c.l.b16 %v313
      %v465 = vunpack.c.l.b16 %v314
      %v466 = vunpack.c.l.b16 %v315
      %v467 = vunpack.c.l.b16 %v316
      %v468 = vunpack.c.l.b16 %v317
      %v469 = vunpack.c.l.b16 %v318
      %v470 = vunpack.c.l.b16 %v319
      %v471 = vunpack.c.l.b16 %v320
      %v472 = vunpack.c.l.b16 %v321
      %v473 = vpack.c.b16 %v442, %v441
      %v474 = vpack.c.b16 %v444, %v443
      %v475 = vpack.c.b16 %v446, %v445
      %v476 = vpack.c.b16 %v448, %v447
      %v477 = vpack.c.b16 %v450, %v449
      %v478 = vpack.c.b16 %v452, %v451
      %v479 = vpack.c.b16 %v454, %v453
      %v480 = vpack.c.b16 %v456, %v455
      %v481 = vpack.c.b16 %v458, %v457
      %v482 = vpack.c.b16 %v460, %v459
      %v483 = vpack.c.b16 %v462, %v461
      %v484 = vpack.c.b16 %v464, %v463
      %v485 = vpack.c.b16 %v466, %v465
      %v486 = vpack.c.b16 %v468, %v467
      %v487 = vpack.c.b16 %v470, %v469
      %v488 = vpack.c.b16 %v472, %v471
      %505 = vmatprep.subr.bf16.mxu0 0
      %506 = vmatpush1.bf16.msra.mxu0 %v480
      %507 = vmatprep.subr.bf16.mxu0 0
      %508 = vmatpush1.bf16.msra.mxu0 %v479
      %509 = vmatprep.subr.bf16.mxu0 0
      %510 = vmatpush1.bf16.msra.mxu0 %v478
      %511 = vmatprep.subr.bf16.mxu0 0
      %512 = vmatpush1.bf16.msra.mxu0 %v477
      %513 = vmatprep.subr.bf16.mxu0 0
      %514 = vmatpush1.bf16.msra.mxu0 %v476
      %515 = vmatprep.subr.bf16.mxu0 0
      %516 = vmatpush1.bf16.msra.mxu0 %v475
      %517 = vmatprep.subr.bf16.mxu0 0
      %518 = vmatpush1.bf16.msra.mxu0 %v474
      %519 = vmatprep.subr.bf16.mxu0 0
      %520 = vmatpush1.bf16.msra.mxu0 %v473
      %521 = vmatprep.subr.bf16.mxu0 0
      %522 = vmatpush2.bf16.msra.mxu0 %v488
      %523 = vmatprep.subr.bf16.mxu0 0
      %524 = vmatpush2.bf16.msra.mxu0 %v487
      %525 = vmatprep.subr.bf16.mxu0 0
      %526 = vmatpush2.bf16.msra.mxu0 %v486
      %527 = vmatprep.subr.bf16.mxu0 0
      %528 = vmatpush2.bf16.msra.mxu0 %v485
      %529 = vmatprep.subr.bf16.mxu0 0
      %530 = vmatpush2.bf16.msra.mxu0 %v484
      %531 = vmatprep.subr.bf16.mxu0 0
      %532 = vmatpush2.bf16.msra.mxu0 %v483
      %533 = vmatprep.subr.bf16.mxu0 0
      %534 = vmatpush2.bf16.msra.mxu0 %v482
      %535 = vmatprep.subr.bf16.mxu0 0
      %536 = vmatpush2.bf16.msra.mxu0 %v481
      %537 = vmatprep.mubr.bf16.mxu0 %v378
      %538 = vmatmul.mubr.bf16.gmra.mxu0 %v377
      %v539 = vpop.f32.mrf.mxu0
      %v540 = vadd.f32 %v327, %v539
      %v541 = vpop.f32.mrf.mxu0
      %v542 = vpop.f32.mrf.mxu0
      %v543 = vadd.f32 %v327, %v542
      %v544 = vpop.f32.mrf.mxu0
      %545 = vmatprep.mubr.bf16.mxu0 %v380
      %546 = vmatmul.mubr.bf16.gmra.mxu0 %v379
      %v547 = vpop.f32.mrf.mxu0
      %v548 = vadd.f32 %v327, %v547
      %v549 = vpop.f32.mrf.mxu0
      %v550 = vpop.f32.mrf.mxu0
      %v551 = vadd.f32 %v327, %v550
      %v552 = vpop.f32.mrf.mxu0
      %553 = vmatprep.mubr.bf16.mxu0 %v382
      %554 = vmatmul.mubr.bf16.gmra.mxu0 %v381
      %v555 = vpop.f32.mrf.mxu0
      %v556 = vadd.f32 %v327, %v555
      %v557 = vpop.f32.mrf.mxu0
      %v558 = vpop.f32.mrf.mxu0
      %v559 = vadd.f32 %v327, %v558
      %v560 = vpop.f32.mrf.mxu0
      %561 = vmatprep.mubr.bf16.mxu0 %v384
      %562 = vmatmul.mubr.bf16.gmra.mxu0 %v383
      %v563 = vpop.f32.mrf.mxu0
      %v564 = vadd.f32 %v327, %v563
      %v565 = vpop.f32.mrf.mxu0
      %v566 = vpop.f32.mrf.mxu0
      %v567 = vadd.f32 %v327, %v566
      %v568 = vpop.f32.mrf.mxu0
      %569 = vmatprep.mubr.bf16.mxu0 %v386
      %570 = vmatmul.mubr.bf16.gmra.mxu0 %v385
      %v571 = vpop.f32.mrf.mxu0
      %v572 = vadd.f32 %v327, %v571
      %v573 = vpop.f32.mrf.mxu0
      %v574 = vpop.f32.mrf.mxu0
      %v575 = vadd.f32 %v327, %v574
      %v576 = vpop.f32.mrf.mxu0
      %577 = vmatprep.mubr.bf16.mxu0 %v388
      %578 = vmatmul.mubr.bf16.gmra.mxu0 %v387
      %v579 = vpop.f32.mrf.mxu0
      %v580 = vadd.f32 %v327, %v579
      %v581 = vpop.f32.mrf.mxu0
      %v582 = vpop.f32.mrf.mxu0
      %v583 = vadd.f32 %v327, %v582
      %v584 = vpop.f32.mrf.mxu0
      %585 = vmatprep.mubr.bf16.mxu0 %v390
      %586 = vmatmul.mubr.bf16.gmra.mxu0 %v389
      %v587 = vpop.f32.mrf.mxu0
      %v588 = vadd.f32 %v327, %v587
      %v589 = vpop.f32.mrf.mxu0
      %v590 = vpop.f32.mrf.mxu0
      %v591 = vadd.f32 %v327, %v590
      %v592 = vpop.f32.mrf.mxu0
      %593 = vmatprep.mubr.bf16.mxu0 %v392
      %594 = vmatmul.mubr.bf16.gmra.mxu0 %v391
      %v595 = vpop.f32.mrf.mxu0
      %v596 = vadd.f32 %v327, %v595
      %v597 = vpop.f32.mrf.mxu0
      %v598 = vpop.f32.mrf.mxu0
      %v599 = vadd.f32 %v327, %v598
      %v600 = vpop.f32.mrf.mxu0
      %601 = vdwg.mxu0
      %vm602 = vcmask 261120
      %603 = vst.msk [vmem:[%s271] sm:$0xff] %vm602, %v540
      %604 = vst.msk [vmem:[%s271 + $0x8] sm:$0xff] %vm602, %v543
      %605 = vst.msk [vmem:[%s271 + $0x10] sm:$0xff] %vm602, %v548
      %606 = vst.msk [vmem:[%s271 + $0x18] sm:$0xff] %vm602, %v551
      %607 = vst.msk [vmem:[%s271 + $0x20] sm:$0xff] %vm602, %v556
      %608 = vst.msk [vmem:[%s271 + $0x28] sm:$0xff] %vm602, %v559
      %609 = vst.msk [vmem:[%s271 + $0x30] sm:$0xff] %vm602, %v564
      %610 = vst.msk [vmem:[%s271 + $0x38] sm:$0xff] %vm602, %v567
      %611 = vst.msk [vmem:[%s271 + $0x40] sm:$0xff] %vm602, %v572
      %612 = vst.msk [vmem:[%s271 + $0x48] sm:$0xff] %vm602, %v575
      %613 = vst.msk [vmem:[%s271 + $0x50] sm:$0xff] %vm602, %v580
      %614 = vst.msk [vmem:[%s271 + $0x58] sm:$0xff] %vm602, %v583
      %615 = vst.msk [vmem:[%s271 + $0x60] sm:$0xff] %vm602, %v588
      %616 = vst.msk [vmem:[%s271 + $0x68] sm:$0xff] %vm602, %v591
      %617 = vst.msk [vmem:[%s271 + $0x70] sm:$0xff] %vm602, %v596
      %618 = vst.msk [vmem:[%s271 + $0x78] sm:$0xff] %vm602, %v599
      %s619 = smul.u32 16, %s20
      %p620 = scmp.lt.s32.totalorder %s19, 3
      %s621 = scalar_select %p620, %s19, 3
      %p622 = scmp.lt.s32.totalorder %s619, 15
      %s623 = scalar_select %p622, %s619, 15
      %p624 = scmp.lt.s32.totalorder %s21, 0
      %s625 = scalar_select %p624, %s21, 0
      %s626 = sadd.s32 %s625, %s623
      %s627 = smul.addr %s621, 16
      %s628 = sadd.s32 %s626, %s627
      %s629 = smul.addr %s628, 8
      %s630 = scalar_lea.vmem %s3, %s629
      // Predicated region
      $region33: #{generator_forward.16} parent=31 // pred_check
        %p631 = pneg %p137
      $region34: #{generator_forward.16} parent=31 // pred_check_branch
        %633 = sbr.rel (%p631) target = $region36
      $region35: #{generator_forward.16} parent=31 // pred_region
        %s634 = smul.u32 16, %s20
      $region36: #{generator_forward.16} parent=31 // pred_fallthru
        _
    $region32: #{generator_forward.16} parent=5 // pred_fallthru
      _
    %p635 = scmp.le.s32.totalorder 2, %s9
    // Predicated region
    $region37: #{generator_forward.16} parent=5 // pred_check
      %p636 = pneg %p635
    $region38: #{generator_forward.16} parent=5 // pred_check_branch
      %638 = sbr.rel (%p636) target = $region40
    $region39: #{generator_forward.16} parent=5 // pred_region
      %s639 = ssub.s32 %s9, 2
      // Predicated region
      $region41: #{generator_forward.16} parent=39 // pred_check
        %p640 = pneg %p143
      $region42: #{generator_forward.16} parent=39 // pred_check_branch
        %642 = sbr.rel (%p640) target = $region44
      $region43: #{generator_forward.16} parent=39 // pred_region
        %s643 = smul.u32 16, %s23
        %p644 = scmp.lt.s32.totalorder %s22, 3
        %s645 = scalar_select %p644, %s22, 3
        %p646 = scmp.lt.s32.totalorder %s643, 15
        %s647 = scalar_select %p646, %s643, 15
        %p648 = scmp.lt.s32.totalorder %s24, 0
        %s649 = scalar_select %p648, %s24, 0
        %s650 = sadd.s32 %s649, %s647
        %s651 = smul.addr %s645, 16
        %s652 = sadd.s32 %s650, %s651
        %s653 = smul.addr %s652, 8
        %s654 = scalar_lea.vmem %s3, %s653
      $region44: #{generator_forward.16} parent=39 // pred_fallthru
        _
    $region40: #{generator_forward.16} parent=5 // pred_fallthru
      _
  $region6: #{generator_forward.16} parent=0 // loop_footer
    %s13 = sadd.s32 1, %s9
  $region7: #{generator_forward.16} parent=0 // loop_footer_branch
    %8 = sbr.rel target = $region3
  $region8: #{generator_forward.16} parent=0 // loop_exit
    _

// kernel: generator_forward.18
$region0: #{generator_forward.18}
  #allocation0 [shape = 'u32[]', space=smem, size = 0x4, offset = 0x4, fixed_abs, tag = 'smem constant byte address 0x4 - core index']
  #allocation1 [shape = 'u32[144,128]{1,0:T(1,128)}', space=vmem, size = 0x12000, scoped, tag = 'internal scratch']
  %s0 = inlined_call_operand.vmem [shape: f32[512,32], index: 0, kind: input, shape index: {}]
  %s1 = inlined_call_operand.vmem [shape: f32[1,32], index: 1, kind: input, shape index: {}]
  %s2 = inlined_call_operand.vmem [shape: f32[1,32], index: 2, kind: input, shape index: {}]
  %s3 = inlined_call_operand.vmem [shape: f32[512,32], index: 3, kind: output, shape index: {}]
  %s4 = sld [smem:[#allocation0]]
  $region45: #{generator_forward.18} parent=0
    _
  %s6 = ssub.s32 1, %s4
  %s7 = scalar_select 0, %s6, %s4
  loop: start=0, step=1, limit=4
  $region2: #{generator_forward.18} parent=0 // loop_pre_header
    _
  $region3: #{generator_forward.18} parent=0 // loop_header
    %s9 = sphi 0, %s13
    %p10 = scmp.ge.s32.totalorder %s9, 4
    %s19 = sphi 0, %s21
    %s22 = sphi 0, %s19
    %s23 = sphi 0, %s22
    %s39 = sphi 0, %s23
    %s43 = sphi 0, %s43
    %s45 = sphi 0, %s43
    %s46 = sphi 0, %s45
    %s60 = sphi 0, %s46
    %s64 = sphi 0, %s64
    %s66 = sphi 0, %s64
    %s67 = sphi 0, %s66
    %s81 = sphi 0, %s67
    %s87 = sphi 0, %s89
    %s90 = sphi 0, %s87
    %s91 = sphi 0, %s90
    %s107 = sphi 0, %s91
  $region4: #{generator_forward.18} parent=0 // loop_header_branch
    %12 = sbr.rel (%p10) target = $region8
  $region5: #{generator_forward.18} parent=0 // loop_body
    %s14 = ssub.s32 %s9, 1
    %s15 = ssub.s32 %s9, 2
    %s16 = sadd.s32 %s9, 1
    %s17 = ssub.s32 %s9, %s16
    %p18 = scmp.eq.s32.totalorder %s17, 0
    %s20 = sadd.s32 %s19, 1
    %s21 = scalar_select %p18, %s19, %s20
    %p24 = pneg %p18
    %p25 = scmp.eq.s32.totalorder %s9, 1
    %p26 = por %p24, %p25
    %p27 = scmp.ne.s32.totalorder %s19, %s22
    %p28 = scmp.eq.s32.totalorder %s9, 0
    %p29 = por %p27, %p28
    %p30 = scmp.ne.s32.totalorder %s19, %s22
    %p31 = scmp.eq.s32.totalorder %s14, 1
    %p32 = por %p30, %p31
    %p33 = scmp.ne.s32.totalorder %s22, %s23
    %p34 = scmp.eq.s32.totalorder %s14, 0
    %p35 = por %p33, %p34
    %p36 = scmp.ne.s32.totalorder %s22, %s23
    %p37 = scmp.eq.s32.totalorder %s15, 1
    %p38 = por %p36, %p37
    %p40 = scmp.ne.s32.totalorder %s23, %s39
    %p41 = scmp.eq.s32.totalorder %s15, 0
    %p42 = por %p40, %p41
    %s44 = sadd.s32 %s43, 1
    %p47 = scmp.eq.s32.totalorder %s9, 1
    %p48 = scmp.ne.s32.totalorder %s43, %s45
    %p49 = scmp.eq.s32.totalorder %s9, 0
    %p50 = por %p48, %p49
    %p51 = scmp.ne.s32.totalorder %s43, %s45
    %p52 = scmp.eq.s32.totalorder %s14, 1
    %p53 = por %p51, %p52
    %p54 = scmp.ne.s32.totalorder %s45, %s46
    %p55 = scmp.eq.s32.totalorder %s14, 0
    %p56 = por %p54, %p55
    %p57 = scmp.ne.s32.totalorder %s45, %s46
    %p58 = scmp.eq.s32.totalorder %s15, 1
    %p59 = por %p57, %p58
    %p61 = scmp.ne.s32.totalorder %s46, %s60
    %p62 = scmp.eq.s32.totalorder %s15, 0
    %p63 = por %p61, %p62
    %s65 = sadd.s32 %s64, 1
    %p68 = scmp.eq.s32.totalorder %s9, 1
    %p69 = scmp.ne.s32.totalorder %s64, %s66
    %p70 = scmp.eq.s32.totalorder %s9, 0
    %p71 = por %p69, %p70
    %p72 = scmp.ne.s32.totalorder %s64, %s66
    %p73 = scmp.eq.s32.totalorder %s14, 1
    %p74 = por %p72, %p73
    %p75 = scmp.ne.s32.totalorder %s66, %s67
    %p76 = scmp.eq.s32.totalorder %s14, 0
    %p77 = por %p75, %p76
    %p78 = scmp.ne.s32.totalorder %s66, %s67
    %p79 = scmp.eq.s32.totalorder %s15, 1
    %p80 = por %p78, %p79
    %p82 = scmp.ne.s32.totalorder %s67, %s81
    %p83 = scmp.eq.s32.totalorder %s15, 0
    %p84 = por %p82, %p83
    %s85 = ssub.s32 %s9, %s16
    %p86 = scmp.eq.s32.totalorder %s85, 0
    %s88 = sadd.s32 %s87, 1
    %s89 = scalar_select %p86, %s87, %s88
    %p92 = pneg %p86
    %p93 = scmp.eq.s32.totalorder %s9, 1
    %p94 = por %p92, %p93
    %p95 = scmp.ne.s32.totalorder %s87, %s90
    %p96 = scmp.eq.s32.totalorder %s9, 0
    %p97 = por %p95, %p96
    %p98 = scmp.ne.s32.totalorder %s87, %s90
    %p99 = scmp.eq.s32.totalorder %s14, 1
    %p100 = por %p98, %p99
    %p101 = scmp.ne.s32.totalorder %s90, %s91
    %p102 = scmp.eq.s32.totalorder %s14, 0
    %p103 = por %p101, %p102
    %p104 = scmp.ne.s32.totalorder %s90, %s91
    %p105 = scmp.eq.s32.totalorder %s15, 1
    %p106 = por %p104, %p105
    %p108 = scmp.ne.s32.totalorder %s91, %s107
    %p109 = scmp.eq.s32.totalorder %s15, 0
    %p110 = por %p108, %p109
    %p111 = scmp.le.s32.totalorder 1, %s9
    %p112 = scmp.lt.s32.totalorder %s9, 3
    %p113 = pnand %p111, %p112
    %p114 = pneg %p113
    // Predicated region
    $region9: #{generator_forward.18} parent=5 // pred_check
      _
    $region10: #{generator_forward.18} parent=5 // pred_check_branch
      %116 = sbr.rel (%p113) target = $region12
    $region11: #{generator_forward.18} parent=5 // pred_region
      %s117 = ssub.s32 %s9, 1
      // Predicated region
      $region13: #{generator_forward.18} parent=11 // pred_check
        %p118 = pneg %p56
      $region14: #{generator_forward.18} parent=11 // pred_check_branch
        %120 = sbr.rel (%p118) target = $region16
      $region15: #{generator_forward.18} parent=11 // pred_region
        _
      $region16: #{generator_forward.18} parent=11 // pred_fallthru
        _
      // Predicated region
      $region17: #{generator_forward.18} parent=11 // pred_check
        %p121 = pneg %p77
      $region18: #{generator_forward.18} parent=11 // pred_check_branch
        %123 = sbr.rel (%p121) target = $region20
      $region19: #{generator_forward.18} parent=11 // pred_region
        _
      $region20: #{generator_forward.18} parent=11 // pred_fallthru
        _
    $region12: #{generator_forward.18} parent=5 // pred_fallthru
      _
    %p124 = scmp.lt.s32.totalorder %s9, 2
    // Predicated region
    $region21: #{generator_forward.18} parent=5 // pred_check
      %p125 = pneg %p124
    $region22: #{generator_forward.18} parent=5 // pred_check_branch
      %127 = sbr.rel (%p125) target = $region24
    $region23: #{generator_forward.18} parent=5 // pred_region
      // Predicated region
      $region25: #{generator_forward.18} parent=23 // pred_check
        %p128 = pneg %p29
      $region26: #{generator_forward.18} parent=23 // pred_check_branch
        %130 = sbr.rel (%p128) target = $region28
      $region27: #{generator_forward.18} parent=23 // pred_region
        %s131 = smul.u32 32, %s9
        %p132 = scmp.lt.s32.totalorder %s131, 63
        %s133 = scalar_select %p132, %s131, 63
        %s134 = smul.addr %s133, 8
        %s135 = scalar_lea.vmem %s0, %s134
        %s136 = smul.u32 32, %s9
      $region28: #{generator_forward.18} parent=23 // pred_fallthru
        _
    $region24: #{generator_forward.18} parent=5 // pred_fallthru
      _
    %p137 = scmp.le.s32.totalorder 1, %s9
    %p138 = scmp.lt.s32.totalorder %s9, 3
    %p139 = pnand %p137, %p138
    %p140 = pneg %p139
    // Predicated region
    $region29: #{generator_forward.18} parent=5 // pred_check
      _
    $region30: #{generator_forward.18} parent=5 // pred_check_branch
      %142 = sbr.rel (%p139) target = $region32
    $region31: #{generator_forward.18} parent=5 // pred_region
      %s143 = ssub.s32 %s9, 1
      %s144 = smul.u32 32, %s14
      %p145 = scmp.lt.s32.totalorder %s144, 63
      %s146 = scalar_select %p145, %s144, 63
      %s147 = smul.addr %s146, 8
      %s148 = scalar_lea.vmem %s0, %s147
      %p149 = pneg %p35
      %p150 = pneg %p32
      %p151 = pneg %p56
      %p152 = pneg %p53
      %p153 = pneg %p77
      %p154 = pneg %p74
      %p155 = pneg %p103
      %p156 = pneg %p100
      %s157 = smul.u32 32, %s14
      %p158 = scmp.lt.s32.totalorder %s157, 63
      %s159 = scalar_select %p158, %s157, 63
      %s160 = smul.addr %s159, 8
      %s161 = scalar_lea.vmem %s3, %s160
      %s162 = smul.u32 32, %s14
      %p163 = scmp.lt.s32.totalorder %s162, 63
      %s164 = scalar_select %p163, %s162, 63
      %s165 = smul.addr %s164, 8
      %s166 = scalar_lea.vmem %s0, %s165
      %s167 = smul.u32 32, %s14
      %s168 = smul.u32 32, %s14
      %p169 = scmp.lt.s32.totalorder %s168, 63
      %s170 = scalar_select %p169, %s168, 63
      %s171 = smul.addr %s170, 8
      %s172 = scalar_lea.vmem %s3, %s171
      %s173 = smul.u32 32, %s14
      %v174 = vld [vmem:[%s166] sm:$0xff]
      %v175 = vld [vmem:[%s166 + $0x8] sm:$0xff]
      %v176 = vld [vmem:[%s166 + $0x10] sm:$0xff]
      %v177 = vld [vmem:[%s166 + $0x18] sm:$0xff]
      %v178 = vld [vmem:[%s166 + $0x20] sm:$0xff]
      %v179 = vld [vmem:[%s166 + $0x28] sm:$0xff]
      %v180 = vld [vmem:[%s166 + $0x30] sm:$0xff]
      %v181 = vld [vmem:[%s166 + $0x38] sm:$0xff]
      %v182 = vld [vmem:[%s166 + $0x40] sm:$0xff]
      %v183 = vld [vmem:[%s166 + $0x48] sm:$0xff]
      %v184 = vld [vmem:[%s166 + $0x50] sm:$0xff]
      %v185 = vld [vmem:[%s166 + $0x58] sm:$0xff]
      %v186 = vld [vmem:[%s166 + $0x60] sm:$0xff]
      %v187 = vld [vmem:[%s166 + $0x68] sm:$0xff]
      %v188 = vld [vmem:[%s166 + $0x70] sm:$0xff]
      %v189 = vld [vmem:[%s166 + $0x78] sm:$0xff]
      %v190 = vld [vmem:[%s166 + $0x80] sm:$0xff]
      %v191 = vld [vmem:[%s166 + $0x88] sm:$0xff]
      %v192 = vld [vmem:[%s166 + $0x90] sm:$0xff]
      %v193 = vld [vmem:[%s166 + $0x98] sm:$0xff]
      %v194 = vld [vmem:[%s166 + $0xa0] sm:$0xff]
      %v195 = vld [vmem:[%s166 + $0xa8] sm:$0xff]
      %v196 = vld [vmem:[%s166 + $0xb0] sm:$0xff]
      %v197 = vld [vmem:[%s166 + $0xb8] sm:$0xff]
      %v198 = vld [vmem:[%s166 + $0xc0] sm:$0xff]
      %v199 = vld [vmem:[%s166 + $0xc8] sm:$0xff]
      %v200 = vld [vmem:[%s166 + $0xd0] sm:$0xff]
      %v201 = vld [vmem:[%s166 + $0xd8] sm:$0xff]
      %v202 = vld [vmem:[%s166 + $0xe0] sm:$0xff]
      %v203 = vld [vmem:[%s166 + $0xe8] sm:$0xff]
      %v204 = vld [vmem:[%s166 + $0xf0] sm:$0xff]
      %v205 = vld [vmem:[%s166 + $0xf8] sm:$0xff]
      %v206 = vld [vmem:[%s1] sm:$0x1]
      %v208 = vlaneseq
      %v209 = vshrl.u32 %v208, 7
      %v210 = vsub.s32 0, %v209
      %v211 = vrot.slane %v206, %v210
      %v213 = vmul.f32 %v174, %v211
      %v214 = vmul.f32 %v175, %v211
      %v215 = vmul.f32 %v176, %v211
      %v216 = vmul.f32 %v177, %v211
      %v217 = vmul.f32 %v178, %v211
      %v218 = vmul.f32 %v179, %v211
      %v219 = vmul.f32 %v180, %v211
      %v220 = vmul.f32 %v181, %v211
      %v221 = vmul.f32 %v182, %v211
      %v222 = vmul.f32 %v183, %v211
      %v223 = vmul.f32 %v184, %v211
      %v224 = vmul.f32 %v185, %v211
      %v225 = vmul.f32 %v186, %v211
      %v226 = vmul.f32 %v187, %v211
      %v227 = vmul.f32 %v188, %v211
      %v228 = vmul.f32 %v189, %v211
      %v229 = vmul.f32 %v190, %v211
      %v230 = vmul.f32 %v191, %v211
      %v231 = vmul.f32 %v192, %v211
      %v232 = vmul.f32 %v193, %v211
      %v233 = vmul.f32 %v194, %v211
      %v234 = vmul.f32 %v195, %v211
      %v235 = vmul.f32 %v196, %v211
      %v236 = vmul.f32 %v197, %v211
      %v237 = vmul.f32 %v198, %v211
      %v238 = vmul.f32 %v199, %v211
      %v239 = vmul.f32 %v200, %v211
      %v240 = vmul.f32 %v201, %v211
      %v241 = vmul.f32 %v202, %v211
      %v242 = vmul.f32 %v203, %v211
      %v243 = vmul.f32 %v204, %v211
      %v244 = vmul.f32 %v205, %v211
      %v245 = vld [vmem:[%s2] sm:$0x1]
      %v247 = vlaneseq
      %v248 = vshrl.u32 %v247, 7
      %v249 = vsub.s32 0, %v248
      %v250 = vrot.slane %v245, %v249
      %v252 = vadd.f32 %v213, %v250
      %v253 = vadd.f32 %v214, %v250
      %v254 = vadd.f32 %v215, %v250
      %v255 = vadd.f32 %v216, %v250
      %v256 = vadd.f32 %v217, %v250
      %v257 = vadd.f32 %v218, %v250
      %v258 = vadd.f32 %v219, %v250
      %v259 = vadd.f32 %v220, %v250
      %v260 = vadd.f32 %v221, %v250
      %v261 = vadd.f32 %v222, %v250
      %v262 = vadd.f32 %v223, %v250
      %v263 = vadd.f32 %v224, %v250
      %v264 = vadd.f32 %v225, %v250
      %v265 = vadd.f32 %v226, %v250
      %v266 = vadd.f32 %v227, %v250
      %v267 = vadd.f32 %v228, %v250
      %v268 = vadd.f32 %v229, %v250
      %v269 = vadd.f32 %v230, %v250
      %v270 = vadd.f32 %v231, %v250
      %v271 = vadd.f32 %v232, %v250
      %v272 = vadd.f32 %v233, %v250
      %v273 = vadd.f32 %v234, %v250
      %v274 = vadd.f32 %v235, %v250
      %v275 = vadd.f32 %v236, %v250
      %v276 = vadd.f32 %v237, %v250
      %v277 = vadd.f32 %v238, %v250
      %v278 = vadd.f32 %v239, %v250
      %v279 = vadd.f32 %v240, %v250
      %v280 = vadd.f32 %v241, %v250
      %v281 = vadd.f32 %v242, %v250
      %v282 = vadd.f32 %v243, %v250
      %v283 = vadd.f32 %v244, %v250
      %v284 = vmax.f32 %v252, 0.0
      %v285 = vmax.f32 %v253, 0.0
      %v286 = vmax.f32 %v254, 0.0
      %v287 = vmax.f32 %v255, 0.0
      %v288 = vmax.f32 %v256, 0.0
      %v289 = vmax.f32 %v257, 0.0
      %v290 = vmax.f32 %v258, 0.0
      %v291 = vmax.f32 %v259, 0.0
      %v292 = vmax.f32 %v260, 0.0
      %v293 = vmax.f32 %v261, 0.0
      %v294 = vmax.f32 %v262, 0.0
      %v295 = vmax.f32 %v263, 0.0
      %v296 = vmax.f32 %v264, 0.0
      %v297 = vmax.f32 %v265, 0.0
      %v298 = vmax.f32 %v266, 0.0
      %v299 = vmax.f32 %v267, 0.0
      %v300 = vmax.f32 %v268, 0.0
      %v301 = vmax.f32 %v269, 0.0
      %v302 = vmax.f32 %v270, 0.0
      %v303 = vmax.f32 %v271, 0.0
      %v304 = vmax.f32 %v272, 0.0
      %v305 = vmax.f32 %v273, 0.0
      %v306 = vmax.f32 %v274, 0.0
      %v307 = vmax.f32 %v275, 0.0
      %v308 = vmax.f32 %v276, 0.0
      %v309 = vmax.f32 %v277, 0.0
      %v310 = vmax.f32 %v278, 0.0
      %v311 = vmax.f32 %v279, 0.0
      %v312 = vmax.f32 %v280, 0.0
      %v313 = vmax.f32 %v281, 0.0
      %v314 = vmax.f32 %v282, 0.0
      %v315 = vmax.f32 %v283, 0.0
      %vm316 = vcmask 261120
      %317 = vst.msk [vmem:[%s172] sm:$0xff] %vm316, %v284
      %318 = vst.msk [vmem:[%s172 + $0x8] sm:$0xff] %vm316, %v285
      %319 = vst.msk [vmem:[%s172 + $0x10] sm:$0xff] %vm316, %v286
      %320 = vst.msk [vmem:[%s172 + $0x18] sm:$0xff] %vm316, %v287
      %321 = vst.msk [vmem:[%s172 + $0x20] sm:$0xff] %vm316, %v288
      %322 = vst.msk [vmem:[%s172 + $0x28] sm:$0xff] %vm316, %v289
      %323 = vst.msk [vmem:[%s172 + $0x30] sm:$0xff] %vm316, %v290
      %324 = vst.msk [vmem:[%s172 + $0x38] sm:$0xff] %vm316, %v291
      %325 = vst.msk [vmem:[%s172 + $0x40] sm:$0xff] %vm316, %v292
      %326 = vst.msk [vmem:[%s172 + $0x48] sm:$0xff] %vm316, %v293
      %327 = vst.msk [vmem:[%s172 + $0x50] sm:$0xff] %vm316, %v294
      %328 = vst.msk [vmem:[%s172 + $0x58] sm:$0xff] %vm316, %v295
      %329 = vst.msk [vmem:[%s172 + $0x60] sm:$0xff] %vm316, %v296
      %330 = vst.msk [vmem:[%s172 + $0x68] sm:$0xff] %vm316, %v297
      %331 = vst.msk [vmem:[%s172 + $0x70] sm:$0xff] %vm316, %v298
      %332 = vst.msk [vmem:[%s172 + $0x78] sm:$0xff] %vm316, %v299
      %333 = vst.msk [vmem:[%s172 + $0x80] sm:$0xff] %vm316, %v300
      %334 = vst.msk [vmem:[%s172 + $0x88] sm:$0xff] %vm316, %v301
      %335 = vst.msk [vmem:[%s172 + $0x90] sm:$0xff] %vm316, %v302
      %336 = vst.msk [vmem:[%s172 + $0x98] sm:$0xff] %vm316, %v303
      %337 = vst.msk [vmem:[%s172 + $0xa0] sm:$0xff] %vm316, %v304
      %338 = vst.msk [vmem:[%s172 + $0xa8] sm:$0xff] %vm316, %v305
      %339 = vst.msk [vmem:[%s172 + $0xb0] sm:$0xff] %vm316, %v306
      %340 = vst.msk [vmem:[%s172 + $0xb8] sm:$0xff] %vm316, %v307
      %341 = vst.msk [vmem:[%s172 + $0xc0] sm:$0xff] %vm316, %v308
      %342 = vst.msk [vmem:[%s172 + $0xc8] sm:$0xff] %vm316, %v309
      %343 = vst.msk [vmem:[%s172 + $0xd0] sm:$0xff] %vm316, %v310
      %344 = vst.msk [vmem:[%s172 + $0xd8] sm:$0xff] %vm316, %v311
      %345 = vst.msk [vmem:[%s172 + $0xe0] sm:$0xff] %vm316, %v312
      %346 = vst.msk [vmem:[%s172 + $0xe8] sm:$0xff] %vm316, %v313
      %347 = vst.msk [vmem:[%s172 + $0xf0] sm:$0xff] %vm316, %v314
      %348 = vst.msk [vmem:[%s172 + $0xf8] sm:$0xff] %vm316, %v315
      %s349 = smul.u32 32, %s14
      %p350 = scmp.lt.s32.totalorder %s349, 63
      %s351 = scalar_select %p350, %s349, 63
      %s352 = smul.addr %s351, 8
      %s353 = scalar_lea.vmem %s3, %s352
      // Predicated region
      $region33: #{generator_forward.18} parent=31 // pred_check
        %p354 = pneg %p100
      $region34: #{generator_forward.18} parent=31 // pred_check_branch
        %356 = sbr.rel (%p354) target = $region36
      $region35: #{generator_forward.18} parent=31 // pred_region
        %s357 = smul.u32 32, %s14
      $region36: #{generator_forward.18} parent=31 // pred_fallthru
        _
    $region32: #{generator_forward.18} parent=5 // pred_fallthru
      _
    %p358 = scmp.le.s32.totalorder 2, %s9
    // Predicated region
    $region37: #{generator_forward.18} parent=5 // pred_check
      %p359 = pneg %p358
    $region38: #{generator_forward.18} parent=5 // pred_check_branch
      %361 = sbr.rel (%p359) target = $region40
    $region39: #{generator_forward.18} parent=5 // pred_region
      %s362 = ssub.s32 %s9, 2
      // Predicated region
      $region41: #{generator_forward.18} parent=39 // pred_check
        %p363 = pneg %p106
      $region42: #{generator_forward.18} parent=39 // pred_check_branch
        %365 = sbr.rel (%p363) target = $region44
      $region43: #{generator_forward.18} parent=39 // pred_region
        %s366 = smul.u32 32, %s15
        %p367 = scmp.lt.s32.totalorder %s366, 63
        %s368 = scalar_select %p367, %s366, 63
        %s369 = smul.addr %s368, 8
        %s370 = scalar_lea.vmem %s3, %s369
      $region44: #{generator_forward.18} parent=39 // pred_fallthru
        _
    $region40: #{generator_forward.18} parent=5 // pred_fallthru
      _
  $region6: #{generator_forward.18} parent=0 // loop_footer
    %s13 = sadd.s32 1, %s9
  $region7: #{generator_forward.18} parent=0 // loop_footer_branch
    %8 = sbr.rel target = $region3
  $region8: #{generator_forward.18} parent=0 // loop_exit
    _

// kernel: generator_forward.19
$region0: #{generator_forward.19}
  #allocation0 [shape = 'u32[]', space=smem, size = 0x4, offset = 0x4, fixed_abs, tag = 'smem constant byte address 0x4 - core index']
  #allocation1 [shape = 'u32[144,128]{1,0:T(1,128)}', space=vmem, size = 0x12000, scoped, tag = 'internal scratch']
  %s0 = inlined_call_operand.vmem [shape: bf16[4,512,128], index: 0, kind: input, shape index: {}]
  %s1 = inlined_call_operand.vmem [shape: bf16[4,128,3], index: 1, kind: input, shape index: {}]
  %s2 = inlined_call_operand.vmem [shape: f32[1,3], index: 2, kind: input, shape index: {}]
  %s3 = inlined_call_operand.vmem [shape: f32[4,512,3], index: 3, kind: output, shape index: {}]
  %s4 = sld [smem:[#allocation0]]
  $region45: #{generator_forward.19} parent=0
    _
  %s6 = ssub.s32 1, %s4
  %s7 = scalar_select 0, %s6, %s4
  loop: start=0, step=1, limit=10
  $region2: #{generator_forward.19} parent=0 // loop_pre_header
    _
  $region3: #{generator_forward.19} parent=0 // loop_header
    %s9 = sphi 0, %s13
    %p10 = scmp.ge.s32.totalorder %s9, 10
    %s16 = sphi 0, %s35
    %s17 = sphi 0, %s31
    %s18 = sphi 0, %s27
    %s19 = sphi 0, %s16
    %s20 = sphi 0, %s17
    %s21 = sphi 0, %s18
    %s22 = sphi 0, %s19
    %s23 = sphi 0, %s20
    %s24 = sphi 0, %s21
    %s40 = sphi 0, %s42
    %s43 = sphi 0, %s40
    %s44 = sphi 0, %s43
    %s60 = sphi 0, %s44
    %s68 = sphi 0, %s70
    %s71 = sphi 0, %s68
    %s72 = sphi 0, %s71
    %s88 = sphi 0, %s72
    %s94 = sphi 0, %s96
    %s97 = sphi 0, %s94
    %s98 = sphi 0, %s97
    %s114 = sphi 0, %s98
    %s124 = sphi 0, %s126
    %s127 = sphi 0, %s124
    %s128 = sphi 0, %s127
    %s144 = sphi 0, %s128
  $region4: #{generator_forward.19} parent=0 // loop_header_branch
    %12 = sbr.rel (%p10) target = $region8
  $region5: #{generator_forward.19} parent=0 // loop_body
    %s14 = ssub.s32 %s9, 1
    %s15 = ssub.s32 %s9, 2
    %s25 = sadd.s32 1, %s18
    %p26 = scmp.ge.s32.totalorder %s25, 1
    %s27 = scalar_select %p26, 0, %s25
    %s28 = sadd.s32 1, %s17
    %s29 = scalar_select %p26, %s28, %s17
    %p30 = scmp.ge.s32.totalorder %s29, 2
    %s31 = scalar_select %p30, 0, %s29
    %s32 = sadd.s32 1, %s16
    %s33 = scalar_select %p30, %s32, %s16
    %p34 = scmp.ge.s32.totalorder %s33, 4
    %s35 = scalar_select %p34, 0, %s33
    %s36 = ssub.s32 %s16, %s35
    %s37 = ssub.s32 %s17, %s31
    %s38 = sor.u32 %s36, %s37
    %p39 = scmp.eq.s32.totalorder %s38, 0
    %s41 = sadd.s32 %s40, 1
    %s42 = scalar_select %p39, %s40, %s41
    %p45 = pneg %p39
    %p46 = scmp.eq.s32.totalorder %s9, 7
    %p47 = por %p45, %p46
    %p48 = scmp.ne.s32.totalorder %s40, %s43
    %p49 = scmp.eq.s32.totalorder %s9, 0
    %p50 = por %p48, %p49
    %p51 = scmp.ne.s32.totalorder %s40, %s43
    %p52 = scmp.eq.s32.totalorder %s14, 7
    %p53 = por %p51, %p52
    %p54 = scmp.ne.s32.totalorder %s43, %s44
    %p55 = scmp.eq.s32.totalorder %s14, 0
    %p56 = por %p54, %p55
    %p57 = scmp.ne.s32.totalorder %s43, %s44
    %p58 = scmp.eq.s32.totalorder %s15, 7
    %p59 = por %p57, %p58
    %p61 = scmp.ne.s32.totalorder %s44, %s60
    %p62 = scmp.eq.s32.totalorder %s15, 0
    %p63 = por %p61, %p62
    %s64 = ssub.s32 %s16, %s35
    %s65 = ssub.s32 %s18, %s27
    %s66 = sor.u32 %s64, %s65
    %p67 = scmp.eq.s32.totalorder %s66, 0
    %s69 = sadd.s32 %s68, 1
    %s70 = scalar_select %p67, %s68, %s69
    %p73 = pneg %p67
    %p74 = scmp.eq.s32.totalorder %s9, 7
    %p75 = por %p73, %p74
    %p76 = scmp.ne.s32.totalorder %s68, %s71
    %p77 = scmp.eq.s32.totalorder %s9, 0
    %p78 = por %p76, %p77
    %p79 = scmp.ne.s32.totalorder %s68, %s71
    %p80 = scmp.eq.s32.totalorder %s14, 7
    %p81 = por %p79, %p80
    %p82 = scmp.ne.s32.totalorder %s71, %s72
    %p83 = scmp.eq.s32.totalorder %s14, 0
    %p84 = por %p82, %p83
    %p85 = scmp.ne.s32.totalorder %s71, %s72
    %p86 = scmp.eq.s32.totalorder %s15, 7
    %p87 = por %p85, %p86
    %p89 = scmp.ne.s32.totalorder %s72, %s88
    %p90 = scmp.eq.s32.totalorder %s15, 0
    %p91 = por %p89, %p90
    %s92 = ssub.s32 %s18, %s27
    %p93 = scmp.eq.s32.totalorder %s92, 0
    %s95 = sadd.s32 %s94, 1
    %s96 = scalar_select %p93, %s94, %s95
    %p99 = pneg %p93
    %p100 = scmp.eq.s32.totalorder %s9, 7
    %p101 = por %p99, %p100
    %p102 = scmp.ne.s32.totalorder %s94, %s97
    %p103 = scmp.eq.s32.totalorder %s9, 0
    %p104 = por %p102, %p103
    %p105 = scmp.ne.s32.totalorder %s94, %s97
    %p106 = scmp.eq.s32.totalorder %s14, 7
    %p107 = por %p105, %p106
    %p108 = scmp.ne.s32.totalorder %s97, %s98
    %p109 = scmp.eq.s32.totalorder %s14, 0
    %p110 = por %p108, %p109
    %p111 = scmp.ne.s32.totalorder %s97, %s98
    %p112 = scmp.eq.s32.totalorder %s15, 7
    %p113 = por %p111, %p112
    %p115 = scmp.ne.s32.totalorder %s98, %s114
    %p116 = scmp.eq.s32.totalorder %s15, 0
    %p117 = por %p115, %p116
    %s118 = ssub.s32 %s16, %s35
    %s119 = ssub.s32 %s17, %s31
    %s120 = sor.u32 %s118, %s119
    %s121 = ssub.s32 %s18, %s27
    %s122 = sor.u32 %s120, %s121
    %p123 = scmp.eq.s32.totalorder %s122, 0
    %s125 = sadd.s32 %s124, 1
    %s126 = scalar_select %p123, %s124, %s125
    %p129 = pneg %p123
    %p130 = scmp.eq.s32.totalorder %s9, 7
    %p131 = por %p129, %p130
    %p132 = scmp.ne.s32.totalorder %s124, %s127
    %p133 = scmp.eq.s32.totalorder %s9, 0
    %p134 = por %p132, %p133
    %p135 = scmp.ne.s32.totalorder %s124, %s127
    %p136 = scmp.eq.s32.totalorder %s14, 7
    %p137 = por %p135, %p136
    %p138 = scmp.ne.s32.totalorder %s127, %s128
    %p139 = scmp.eq.s32.totalorder %s14, 0
    %p140 = por %p138, %p139
    %p141 = scmp.ne.s32.totalorder %s127, %s128
    %p142 = scmp.eq.s32.totalorder %s15, 7
    %p143 = por %p141, %p142
    %p145 = scmp.ne.s32.totalorder %s128, %s144
    %p146 = scmp.eq.s32.totalorder %s15, 0
    %p147 = por %p145, %p146
    %p148 = scmp.le.s32.totalorder 1, %s9
    %p149 = scmp.lt.s32.totalorder %s9, 9
    %p150 = pnand %p148, %p149
    %p151 = pneg %p150
    // Predicated region
    $region9: #{generator_forward.19} parent=5 // pred_check
      _
    $region10: #{generator_forward.19} parent=5 // pred_check_branch
      %153 = sbr.rel (%p150) target = $region12
    $region11: #{generator_forward.19} parent=5 // pred_region
      %s154 = ssub.s32 %s9, 1
      // Predicated region
      $region13: #{generator_forward.19} parent=11 // pred_check
        %p155 = pneg %p110
      $region14: #{generator_forward.19} parent=11 // pred_check_branch
        %157 = sbr.rel (%p155) target = $region16
      $region15: #{generator_forward.19} parent=11 // pred_region
        %p158 = scmp.lt.s32.totalorder %s21, 0
        %s159 = scalar_select %p158, %s21, 0
        %s160 = scalar_lea.vmem %s2, %s159
      $region16: #{generator_forward.19} parent=11 // pred_fallthru
        _
    $region12: #{generator_forward.19} parent=5 // pred_fallthru
      _
    %p161 = scmp.lt.s32.totalorder %s9, 8
    // Predicated region
    $region17: #{generator_forward.19} parent=5 // pred_check
      %p162 = pneg %p161
    $region18: #{generator_forward.19} parent=5 // pred_check_branch
      %164 = sbr.rel (%p162) target = $region20
    $region19: #{generator_forward.19} parent=5 // pred_region
      // Predicated region
      $region21: #{generator_forward.19} parent=19 // pred_check
        %p165 = pneg %p50
      $region22: #{generator_forward.19} parent=19 // pred_check_branch
        %167 = sbr.rel (%p165) target = $region24
      $region23: #{generator_forward.19} parent=19 // pred_region
        %s168 = smul.u32 32, %s17
        %p169 = scmp.lt.s32.totalorder %s16, 3
        %s170 = scalar_select %p169, %s16, 3
        %p171 = scmp.lt.s32.totalorder %s168, 63
        %s172 = scalar_select %p171, %s168, 63
        %s173 = smul.addr %s170, 64
        %s174 = sadd.s32 %s172, %s173
        %s175 = smul.addr %s174, 4
        %s176 = scalar_lea.vmem %s0, %s175
        %s177 = smul.u32 32, %s17
      $region24: #{generator_forward.19} parent=19 // pred_fallthru
        _
      // Predicated region
      $region25: #{generator_forward.19} parent=19 // pred_check
        %p178 = pneg %p78
      $region26: #{generator_forward.19} parent=19 // pred_check_branch
        %180 = sbr.rel (%p178) target = $region28
      $region27: #{generator_forward.19} parent=19 // pred_region
        %p181 = scmp.lt.s32.totalorder %s16, 3
        %s182 = scalar_select %p181, %s16, 3
        %p183 = scmp.lt.s32.totalorder %s18, 0
        %s184 = scalar_select %p183, %s18, 0
        %s185 = smul.addr %s182, 16
        %s186 = sadd.s32 %s184, %s185
        %s187 = smul.addr %s186, 4
        %s188 = scalar_lea.vmem %s1, %s187
      $region28: #{generator_forward.19} parent=19 // pred_fallthru
        _
    $region20: #{generator_forward.19} parent=5 // pred_fallthru
      _
    %p189 = scmp.le.s32.totalorder 1, %s9
    %p190 = scmp.lt.s32.totalorder %s9, 9
    %p191 = pnand %p189, %p190
    %p192 = pneg %p191
    // Predicated region
    $region29: #{generator_forward.19} parent=5 // pred_check
      _
    $region30: #{generator_forward.19} parent=5 // pred_check_branch
      %194 = sbr.rel (%p191) target = $region32
    $region31: #{generator_forward.19} parent=5 // pred_region
      %s195 = ssub.s32 %s9, 1
      %s196 = smul.u32 32, %s20
      %p197 = scmp.lt.s32.totalorder %s19, 3
      %s198 = scalar_select %p197, %s19, 3
      %p199 = scmp.lt.s32.totalorder %s196, 63
      %s200 = scalar_select %p199, %s196, 63
      %s201 = smul.addr %s198, 64
      %s202 = sadd.s32 %s200, %s201
      %s203 = smul.addr %s202, 4
      %s204 = scalar_lea.vmem %s0, %s203
      %p205 = pneg %p56
      %p206 = pneg %p53
      %p207 = scmp.lt.s32.totalorder %s19, 3
      %s208 = scalar_select %p207, %s19, 3
      %p209 = scmp.lt.s32.totalorder %s21, 0
      %s210 = scalar_select %p209, %s21, 0
      %s211 = smul.addr %s208, 16
      %s212 = sadd.s32 %s210, %s211
      %s213 = smul.addr %s212, 4
      %s214 = scalar_lea.vmem %s1, %s213
      %p215 = pneg %p84
      %p216 = pneg %p81
      %p217 = scmp.lt.s32.totalorder %s21, 0
      %s218 = scalar_select %p217, %s21, 0
      %s219 = scalar_lea.vmem %s2, %s218
      %p220 = pneg %p110
      %p221 = pneg %p107
      %p222 = pneg %p140
      %p223 = pneg %p137
      %s224 = smul.u32 32, %s20
      %p225 = scmp.lt.s32.totalorder %s19, 3
      %s226 = scalar_select %p225, %s19, 3
      %p227 = scmp.lt.s32.totalorder %s224, 63
      %s228 = scalar_select %p227, %s224, 63
      %p229 = scmp.lt.s32.totalorder %s21, 0
      %s230 = scalar_select %p229, %s21, 0
      %s231 = sadd.s32 %s230, %s228
      %s232 = smul.addr %s226, 64
      %s233 = sadd.s32 %s231, %s232
      %s234 = smul.addr %s233, 8
      %s235 = scalar_lea.vmem %s3, %s234
      %s236 = smul.u32 32, %s20
      %p237 = scmp.lt.s32.totalorder %s19, 3
      %s238 = scalar_select %p237, %s19, 3
      %p239 = scmp.lt.s32.totalorder %s236, 63
      %s240 = scalar_select %p239, %s236, 63
      %s241 = smul.addr %s238, 64
      %s242 = sadd.s32 %s240, %s241
      %s243 = smul.addr %s242, 4
      %s244 = scalar_lea.vmem %s0, %s243
      %s245 = smul.u32 32, %s20
      %p246 = scmp.lt.s32.totalorder %s19, 3
      %s247 = scalar_select %p246, %s19, 3
      %p248 = scmp.lt.s32.totalorder %s21, 0
      %s249 = scalar_select %p248, %s21, 0
      %s250 = smul.addr %s247, 16
      %s251 = sadd.s32 %s249, %s250
      %s252 = smul.addr %s251, 4
      %s253 = scalar_lea.vmem %s1, %s252
      %p254 = scmp.lt.s32.totalorder %s21, 0
      %s255 = scalar_select %p254, %s21, 0
      %s256 = scalar_lea.vmem %s2, %s255
      %s257 = smul.u32 32, %s20
      %p258 = scmp.lt.s32.totalorder %s19, 3
      %s259 = scalar_select %p258, %s19, 3
      %p260 = scmp.lt.s32.totalorder %s257, 63
      %s261 = scalar_select %p260, %s257, 63
      %p262 = scmp.lt.s32.totalorder %s21, 0
      %s263 = scalar_select %p262, %s21, 0
      %s264 = sadd.s32 %s263, %s261
      %s265 = smul.addr %s259, 64
      %s266 = sadd.s32 %s264, %s265
      %s267 = smul.addr %s266, 8
      %s268 = scalar_lea.vmem %s3, %s267
      %s269 = smul.u32 32, %s20
      %v271 = vld [vmem:[%s244] sm:$0xf]
      %v272 = vld [vmem:[%s244 + $0x4] sm:$0xf]
      %v273 = vld [vmem:[%s244 + $0x8] sm:$0xf]
      %v274 = vld [vmem:[%s244 + $0xc] sm:$0xf]
      %v275 = vld [vmem:[%s244 + $0x10] sm:$0xf]
      %v276 = vld [vmem:[%s244 + $0x14] sm:$0xf]
      %v277 = vld [vmem:[%s244 + $0x18] sm:$0xf]
      %v278 = vld [vmem:[%s244 + $0x1c] sm:$0xf]
      %v279 = vld [vmem:[%s244 + $0x20] sm:$0xf]
      %v280 = vld [vmem:[%s244 + $0x24] sm:$0xf]
      %v281 = vld [vmem:[%s244 + $0x28] sm:$0xf]
      %v282 = vld [vmem:[%s244 + $0x2c] sm:$0xf]
      %v283 = vld [vmem:[%s244 + $0x30] sm:$0xf]
      %v284 = vld [vmem:[%s244 + $0x34] sm:$0xf]
      %v285 = vld [vmem:[%s244 + $0x38] sm:$0xf]
      %v286 = vld [vmem:[%s244 + $0x3c] sm:$0xf]
      %v287 = vld [vmem:[%s244 + $0x40] sm:$0xf]
      %v288 = vld [vmem:[%s244 + $0x44] sm:$0xf]
      %v289 = vld [vmem:[%s244 + $0x48] sm:$0xf]
      %v290 = vld [vmem:[%s244 + $0x4c] sm:$0xf]
      %v291 = vld [vmem:[%s244 + $0x50] sm:$0xf]
      %v292 = vld [vmem:[%s244 + $0x54] sm:$0xf]
      %v293 = vld [vmem:[%s244 + $0x58] sm:$0xf]
      %v294 = vld [vmem:[%s244 + $0x5c] sm:$0xf]
      %v295 = vld [vmem:[%s244 + $0x60] sm:$0xf]
      %v296 = vld [vmem:[%s244 + $0x64] sm:$0xf]
      %v297 = vld [vmem:[%s244 + $0x68] sm:$0xf]
      %v298 = vld [vmem:[%s244 + $0x6c] sm:$0xf]
      %v299 = vld [vmem:[%s244 + $0x70] sm:$0xf]
      %v300 = vld [vmem:[%s244 + $0x74] sm:$0xf]
      %v301 = vld [vmem:[%s244 + $0x78] sm:$0xf]
      %v302 = vld [vmem:[%s244 + $0x7c] sm:$0xf]
      %v303 = vld [vmem:[%s253] sm:$0xf]
      %v304 = vld [vmem:[%s253 + $0x4] sm:$0xf]
      %v305 = vld [vmem:[%s253 + $0x8] sm:$0xf]
      %v306 = vld [vmem:[%s253 + $0xc] sm:$0xf]
      %v307 = vld [vmem:[%s253 + $0x10] sm:$0xf]
      %v308 = vld [vmem:[%s253 + $0x14] sm:$0xf]
      %v309 = vld [vmem:[%s253 + $0x18] sm:$0xf]
      %v310 = vld [vmem:[%s253 + $0x1c] sm:$0xf]
      %v311 = vld [vmem:[%s253 + $0x20] sm:$0xf]
      %v312 = vld [vmem:[%s253 + $0x24] sm:$0xf]
      %v313 = vld [vmem:[%s253 + $0x28] sm:$0xf]
      %v314 = vld [vmem:[%s253 + $0x2c] sm:$0xf]
      %v315 = vld [vmem:[%s253 + $0x30] sm:$0xf]
      %v316 = vld [vmem:[%s253 + $0x34] sm:$0xf]
      %v317 = vld [vmem:[%s253 + $0x38] sm:$0xf]
      %v318 = vld [vmem:[%s253 + $0x3c] sm:$0xf]
      %v319 = vld [vmem:[%s256] sm:$0x1]
      %v321 = vlaneseq
      %v322 = vshrl.u32 %v321, 7
      %v323 = vsub.s32 0, %v322
      %v324 = vrot.slane %v319, %v323
      %v358 = vunpack.c.l.b16 %v271
      %v359 = vunpack.c.l.b16 %v272
      %v360 = vunpack.c.l.b16 %v273
      %v361 = vunpack.c.l.b16 %v274
      %v362 = vunpack.c.l.b16 %v275
      %v363 = vunpack.c.l.b16 %v276
      %v364 = vunpack.c.l.b16 %v277
      %v365 = vunpack.c.l.b16 %v278
      %v366 = vunpack.c.l.b16 %v279
      %v367 = vunpack.c.l.b16 %v280
      %v368 = vunpack.c.l.b16 %v281
      %v369 = vunpack.c.l.b16 %v282
      %v370 = vunpack.c.l.b16 %v283
      %v371 = vunpack.c.l.b16 %v284
      %v372 = vunpack.c.l.b16 %v285
      %v373 = vunpack.c.l.b16 %v286
      %v374 = vunpack.c.l.b16 %v287
      %v375 = vunpack.c.l.b16 %v288
      %v376 = vunpack.c.l.b16 %v289
      %v377 = vunpack.c.l.b16 %v290
      %v378 = vunpack.c.l.b16 %v291
      %v379 = vunpack.c.l.b16 %v292
      %v380 = vunpack.c.l.b16 %v293
      %v381 = vunpack.c.l.b16 %v294
      %v382 = vunpack.c.l.b16 %v295
      %v383 = vunpack.c.l.b16 %v296
      %v384 = vunpack.c.l.b16 %v297
      %v385 = vunpack.c.l.b16 %v298
      %v386 = vunpack.c.l.b16 %v299
      %v387 = vunpack.c.l.b16 %v300
      %v388 = vunpack.c.l.b16 %v301
      %v389 = vunpack.c.l.b16 %v302
      %v390 = vpack.c.b16 %v359, %v358
      %v391 = vpack.c.b16 %v361, %v360
      %v392 = vpack.c.b16 %v363, %v362
      %v393 = vpack.c.b16 %v365, %v364
      %v394 = vpack.c.b16 %v367, %v366
      %v395 = vpack.c.b16 %v369, %v368
      %v396 = vpack.c.b16 %v371, %v370
      %v397 = vpack.c.b16 %v373, %v372
      %v398 = vpack.c.b16 %v375, %v374
      %v399 = vpack.c.b16 %v377, %v376
      %v400 = vpack.c.b16 %v379, %v378
      %v401 = vpack.c.b16 %v381, %v380
      %v402 = vpack.c.b16 %v383, %v382
      %v403 = vpack.c.b16 %v385, %v384
      %v404 = vpack.c.b16 %v387, %v386
      %v405 = vpack.c.b16 %v389, %v388
      %v438 = vunpack.c.l.b16 %v303
      %v439 = vunpack.c.l.b16 %v304
      %v440 = vunpack.c.l.b16 %v305
      %v441 = vunpack.c.l.b16 %v306
      %v442 = vunpack.c.l.b16 %v307
      %v443 = vunpack.c.l.b16 %v308
      %v444 = vunpack.c.l.b16 %v309
      %v445 = vunpack.c.l.b16 %v310
      %v446 = vunpack.c.l.b16 %v311
      %v447 = vunpack.c.l.b16 %v312
      %v448 = vunpack.c.l.b16 %v313
      %v449 = vunpack.c.l.b16 %v314
      %v450 = vunpack.c.l.b16 %v315
      %v451 = vunpack.c.l.b16 %v316
      %v452 = vunpack.c.l.b16 %v317
      %v453 = vunpack.c.l.b16 %v318
      %v454 = vpack.c.b16 %v439, %v438
      %v455 = vpack.c.b16 %v441, %v440
      %v456 = vpack.c.b16 %v443, %v442
      %v457 = vpack.c.b16 %v445, %v444
      %v458 = vpack.c.b16 %v447, %v446
      %v459 = vpack.c.b16 %v449, %v448
      %v460 = vpack.c.b16 %v451, %v450
      %v461 = vpack.c.b16 %v453, %v452
      %470 = vmatprep.subr.bf16.mxu0 0
      %471 = vmatpush1.bf16.msra.mxu0 %v461
      %472 = vmatprep.subr.bf16.mxu0 0
      %473 = vmatpush1.bf16.msra.mxu0 %v460
      %474 = vmatprep.subr.bf16.mxu0 0
      %475 = vmatpush1.bf16.msra.mxu0 %v459
      %476 = vmatprep.subr.bf16.mxu0 0
      %477 = vmatpush1.bf16.msra.mxu0 %v458
      %478 = vmatprep.subr.bf16.mxu0 0
      %479 = vmatpush1.bf16.msra.mxu0 %v457
      %480 = vmatprep.subr.bf16.mxu0 0
      %481 = vmatpush1.bf16.msra.mxu0 %v456
      %482 = vmatprep.subr.bf16.mxu0 0
      %483 = vmatpush1.bf16.msra.mxu0 %v455
      %484 = vmatprep.subr.bf16.mxu0 0
      %485 = vmatpush1.bf16.msra.mxu0 %v454
      %486 = vmatprep.subr.bf16.mxu0 0
      %487 = vmatpush2.bf16.msra.mxu0 0
      %488 = vmatprep.subr.bf16.mxu0 0
      %489 = vmatpush2.bf16.msra.mxu0 0
      %490 = vmatprep.subr.bf16.mxu0 0
      %491 = vmatpush2.bf16.msra.mxu0 0
      %492 = vmatprep.subr.bf16.mxu0 0
      %493 = vmatpush2.bf16.msra.mxu0 0
      %494 = vmatprep.subr.bf16.mxu0 0
      %495 = vmatpush2.bf16.msra.mxu0 0
      %496 = vmatprep.subr.bf16.mxu0 0
      %497 = vmatpush2.bf16.msra.mxu0 0
      %498 = vmatprep.subr.bf16.mxu0 0
      %499 = vmatpush2.bf16.msra.mxu0 0
      %500 = vmatprep.subr.bf16.mxu0 0
      %501 = vmatpush2.bf16.msra.mxu0 0
      %502 = vmatprep.mubr.bf16.mxu0 0
      %503 = vmatmul.mubr.bf16.gmra.mxu0 %v390
      %v504 = vpop.f32.mrf.mxu0
      %v505 = vadd.f32 %v324, %v504
      %v506 = vpop.f32.mrf.mxu0
      %v507 = vpop.f32.mrf.mxu0
      %v508 = vadd.f32 %v324, %v507
      %v509 = vpop.f32.mrf.mxu0
      %510 = vmatprep.mubr.bf16.mxu0 0
      %511 = vmatmul.mubr.bf16.gmra.mxu0 %v391
      %v512 = vpop.f32.mrf.mxu0
      %v513 = vadd.f32 %v324, %v512
      %v514 = vpop.f32.mrf.mxu0
      %v515 = vpop.f32.mrf.mxu0
      %v516 = vadd.f32 %v324, %v515
      %v517 = vpop.f32.mrf.mxu0
      %518 = vmatprep.mubr.bf16.mxu0 0
      %519 = vmatmul.mubr.bf16.gmra.mxu0 %v392
      %v520 = vpop.f32.mrf.mxu0
      %v521 = vadd.f32 %v324, %v520
      %v522 = vpop.f32.mrf.mxu0
      %v523 = vpop.f32.mrf.mxu0
      %v524 = vadd.f32 %v324, %v523
      %v525 = vpop.f32.mrf.mxu0
      %526 = vmatprep.mubr.bf16.mxu0 0
      %527 = vmatmul.mubr.bf16.gmra.mxu0 %v393
      %v528 = vpop.f32.mrf.mxu0
      %v529 = vadd.f32 %v324, %v528
      %v530 = vpop.f32.mrf.mxu0
      %v531 = vpop.f32.mrf.mxu0
      %v532 = vadd.f32 %v324, %v531
      %v533 = vpop.f32.mrf.mxu0
      %534 = vmatprep.mubr.bf16.mxu0 0
      %535 = vmatmul.mubr.bf16.gmra.mxu0 %v394
      %v536 = vpop.f32.mrf.mxu0
      %v537 = vadd.f32 %v324, %v536
      %v538 = vpop.f32.mrf.mxu0
      %v539 = vpop.f32.mrf.mxu0
      %v540 = vadd.f32 %v324, %v539
      %v541 = vpop.f32.mrf.mxu0
      %542 = vmatprep.mubr.bf16.mxu0 0
      %543 = vmatmul.mubr.bf16.gmra.mxu0 %v395
      %v544 = vpop.f32.mrf.mxu0
      %v545 = vadd.f32 %v324, %v544
      %v546 = vpop.f32.mrf.mxu0
      %v547 = vpop.f32.mrf.mxu0
      %v548 = vadd.f32 %v324, %v547
      %v549 = vpop.f32.mrf.mxu0
      %550 = vmatprep.mubr.bf16.mxu0 0
      %551 = vmatmul.mubr.bf16.gmra.mxu0 %v396
      %v552 = vpop.f32.mrf.mxu0
      %v553 = vadd.f32 %v324, %v552
      %v554 = vpop.f32.mrf.mxu0
      %v555 = vpop.f32.mrf.mxu0
      %v556 = vadd.f32 %v324, %v555
      %v557 = vpop.f32.mrf.mxu0
      %558 = vmatprep.mubr.bf16.mxu0 0
      %559 = vmatmul.mubr.bf16.gmra.mxu0 %v397
      %v560 = vpop.f32.mrf.mxu0
      %v561 = vadd.f32 %v324, %v560
      %v562 = vpop.f32.mrf.mxu0
      %v563 = vpop.f32.mrf.mxu0
      %v564 = vadd.f32 %v324, %v563
      %v565 = vpop.f32.mrf.mxu0
      %566 = vmatprep.mubr.bf16.mxu0 0
      %567 = vmatmul.mubr.bf16.gmra.mxu0 %v398
      %v568 = vpop.f32.mrf.mxu0
      %v569 = vadd.f32 %v324, %v568
      %v570 = vpop.f32.mrf.mxu0
      %v571 = vpop.f32.mrf.mxu0
      %v572 = vadd.f32 %v324, %v571
      %v573 = vpop.f32.mrf.mxu0
      %574 = vmatprep.mubr.bf16.mxu0 0
      %575 = vmatmul.mubr.bf16.gmra.mxu0 %v399
      %v576 = vpop.f32.mrf.mxu0
      %v577 = vadd.f32 %v324, %v576
      %v578 = vpop.f32.mrf.mxu0
      %v579 = vpop.f32.mrf.mxu0
      %v580 = vadd.f32 %v324, %v579
      %v581 = vpop.f32.mrf.mxu0
      %582 = vmatprep.mubr.bf16.mxu0 0
      %583 = vmatmul.mubr.bf16.gmra.mxu0 %v400
      %v584 = vpop.f32.mrf.mxu0
      %v585 = vadd.f32 %v324, %v584
      %v586 = vpop.f32.mrf.mxu0
      %v587 = vpop.f32.mrf.mxu0
      %v588 = vadd.f32 %v324, %v587
      %v589 = vpop.f32.mrf.mxu0
      %590 = vmatprep.mubr.bf16.mxu0 0
      %591 = vmatmul.mubr.bf16.gmra.mxu0 %v401
      %v592 = vpop.f32.mrf.mxu0
      %v593 = vadd.f32 %v324, %v592
      %v594 = vpop.f32.mrf.mxu0
      %v595 = vpop.f32.mrf.mxu0
      %v596 = vadd.f32 %v324, %v595
      %v597 = vpop.f32.mrf.mxu0
      %598 = vmatprep.mubr.bf16.mxu0 0
      %599 = vmatmul.mubr.bf16.gmra.mxu0 %v402
      %v600 = vpop.f32.mrf.mxu0
      %v601 = vadd.f32 %v324, %v600
      %v602 = vpop.f32.mrf.mxu0
      %v603 = vpop.f32.mrf.mxu0
      %v604 = vadd.f32 %v324, %v603
      %v605 = vpop.f32.mrf.mxu0
      %606 = vmatprep.mubr.bf16.mxu0 0
      %607 = vmatmul.mubr.bf16.gmra.mxu0 %v403
      %v608 = vpop.f32.mrf.mxu0
      %v609 = vadd.f32 %v324, %v608
      %v610 = vpop.f32.mrf.mxu0
      %v611 = vpop.f32.mrf.mxu0
      %v612 = vadd.f32 %v324, %v611
      %v613 = vpop.f32.mrf.mxu0
      %614 = vmatprep.mubr.bf16.mxu0 0
      %615 = vmatmul.mubr.bf16.gmra.mxu0 %v404
      %v616 = vpop.f32.mrf.mxu0
      %v617 = vadd.f32 %v324, %v616
      %v618 = vpop.f32.mrf.mxu0
      %v619 = vpop.f32.mrf.mxu0
      %v620 = vadd.f32 %v324, %v619
      %v621 = vpop.f32.mrf.mxu0
      %622 = vmatprep.mubr.bf16.mxu0 0
      %623 = vmatmul.mubr.bf16.gmra.mxu0 %v405
      %v624 = vpop.f32.mrf.mxu0
      %v625 = vadd.f32 %v324, %v624
      %v626 = vpop.f32.mrf.mxu0
      %v627 = vpop.f32.mrf.mxu0
      %v628 = vadd.f32 %v324, %v627
      %v629 = vpop.f32.mrf.mxu0
      %630 = vdwg.mxu0
      %v631 = vtanh.pop %v505
      %v632 = vtanh.pop %v508
      %v633 = vtanh.pop %v513
      %v634 = vtanh.pop %v516
      %v635 = vtanh.pop %v521
      %v636 = vtanh.pop %v524
      %v637 = vtanh.pop %v529
      %v638 = vtanh.pop %v532
      %v639 = vtanh.pop %v537
      %v640 = vtanh.pop %v540
      %v641 = vtanh.pop %v545
      %v642 = vtanh.pop %v548
      %v643 = vtanh.pop %v553
      %v644 = vtanh.pop %v556
      %v645 = vtanh.pop %v561
      %v646 = vtanh.pop %v564
      %v647 = vtanh.pop %v569
      %v648 = vtanh.pop %v572
      %v649 = vtanh.pop %v577
      %v650 = vtanh.pop %v580
      %v651 = vtanh.pop %v585
      %v652 = vtanh.pop %v588
      %v653 = vtanh.pop %v593
      %v654 = vtanh.pop %v596
      %v655 = vtanh.pop %v601
      %v656 = vtanh.pop %v604
      %v657 = vtanh.pop %v609
      %v658 = vtanh.pop %v612
      %v659 = vtanh.pop %v617
      %v660 = vtanh.pop %v620
      %v661 = vtanh.pop %v625
      %v662 = vtanh.pop %v628
      %vm663 = vcmask 23552
      %664 = vst.msk [vmem:[%s268] sm:$0xff] %vm663, %v631
      %665 = vst.msk [vmem:[%s268 + $0x8] sm:$0xff] %vm663, %v632
      %666 = vst.msk [vmem:[%s268 + $0x10] sm:$0xff] %vm663, %v633
      %667 = vst.msk [vmem:[%s268 + $0x18] sm:$0xff] %vm663, %v634
      %668 = vst.msk [vmem:[%s268 + $0x20] sm:$0xff] %vm663, %v635
      %669 = vst.msk [vmem:[%s268 + $0x28] sm:$0xff] %vm663, %v636
      %670 = vst.msk [vmem:[%s268 + $0x30] sm:$0xff] %vm663, %v637
      %671 = vst.msk [vmem:[%s268 + $0x38] sm:$0xff] %vm663, %v638
      %672 = vst.msk [vmem:[%s268 + $0x40] sm:$0xff] %vm663, %v639
      %673 = vst.msk [vmem:[%s268 + $0x48] sm:$0xff] %vm663, %v640
      %674 = vst.msk [vmem:[%s268 + $0x50] sm:$0xff] %vm663, %v641
      %675 = vst.msk [vmem:[%s268 + $0x58] sm:$0xff] %vm663, %v642
      %676 = vst.msk [vmem:[%s268 + $0x60] sm:$0xff] %vm663, %v643
      %677 = vst.msk [vmem:[%s268 + $0x68] sm:$0xff] %vm663, %v644
      %678 = vst.msk [vmem:[%s268 + $0x70] sm:$0xff] %vm663, %v645
      %679 = vst.msk [vmem:[%s268 + $0x78] sm:$0xff] %vm663, %v646
      %680 = vst.msk [vmem:[%s268 + $0x80] sm:$0xff] %vm663, %v647
      %681 = vst.msk [vmem:[%s268 + $0x88] sm:$0xff] %vm663, %v648
      %682 = vst.msk [vmem:[%s268 + $0x90] sm:$0xff] %vm663, %v649
      %683 = vst.msk [vmem:[%s268 + $0x98] sm:$0xff] %vm663, %v650
      %684 = vst.msk [vmem:[%s268 + $0xa0] sm:$0xff] %vm663, %v651
      %685 = vst.msk [vmem:[%s268 + $0xa8] sm:$0xff] %vm663, %v652
      %686 = vst.msk [vmem:[%s268 + $0xb0] sm:$0xff] %vm663, %v653
      %687 = vst.msk [vmem:[%s268 + $0xb8] sm:$0xff] %vm663, %v654
      %688 = vst.msk [vmem:[%s268 + $0xc0] sm:$0xff] %vm663, %v655
      %689 = vst.msk [vmem:[%s268 + $0xc8] sm:$0xff] %vm663, %v656
      %690 = vst.msk [vmem:[%s268 + $0xd0] sm:$0xff] %vm663, %v657
      %691 = vst.msk [vmem:[%s268 + $0xd8] sm:$0xff] %vm663, %v658
      %692 = vst.msk [vmem:[%s268 + $0xe0] sm:$0xff] %vm663, %v659
      %693 = vst.msk [vmem:[%s268 + $0xe8] sm:$0xff] %vm663, %v660
      %694 = vst.msk [vmem:[%s268 + $0xf0] sm:$0xff] %vm663, %v661
      %695 = vst.msk [vmem:[%s268 + $0xf8] sm:$0xff] %vm663, %v662
      %s696 = smul.u32 32, %s20
      %p697 = scmp.lt.s32.totalorder %s19, 3
      %s698 = scalar_select %p697, %s19, 3
      %p699 = scmp.lt.s32.totalorder %s696, 63
      %s700 = scalar_select %p699, %s696, 63
      %p701 = scmp.lt.s32.totalorder %s21, 0
      %s702 = scalar_select %p701, %s21, 0
      %s703 = sadd.s32 %s702, %s700
      %s704 = smul.addr %s698, 64
      %s705 = sadd.s32 %s703, %s704
      %s706 = smul.addr %s705, 8
      %s707 = scalar_lea.vmem %s3, %s706
      // Predicated region
      $region33: #{generator_forward.19} parent=31 // pred_check
        %p708 = pneg %p137
      $region34: #{generator_forward.19} parent=31 // pred_check_branch
        %710 = sbr.rel (%p708) target = $region36
      $region35: #{generator_forward.19} parent=31 // pred_region
        %s711 = smul.u32 32, %s20
      $region36: #{generator_forward.19} parent=31 // pred_fallthru
        _
    $region32: #{generator_forward.19} parent=5 // pred_fallthru
      _
    %p712 = scmp.le.s32.totalorder 2, %s9
    // Predicated region
    $region37: #{generator_forward.19} parent=5 // pred_check
      %p713 = pneg %p712
    $region38: #{generator_forward.19} parent=5 // pred_check_branch
      %715 = sbr.rel (%p713) target = $region40
    $region39: #{generator_forward.19} parent=5 // pred_region
      %s716 = ssub.s32 %s9, 2
      // Predicated region
      $region41: #{generator_forward.19} parent=39 // pred_check
        %p717 = pneg %p143
      $region42: #{generator_forward.19} parent=39 // pred_check_branch
        %719 = sbr.rel (%p717) target = $region44
      $region43: #{generator_forward.19} parent=39 // pred_region
        %s720 = smul.u32 32, %s23
        %p721 = scmp.lt.s32.totalorder %s22, 3
        %s722 = scalar_select %p721, %s22, 3
        %p723 = scmp.lt.s32.totalorder %s720, 63
        %s724 = scalar_select %p723, %s720, 63
        %p725 = scmp.lt.s32.totalorder %s24, 0
        %s726 = scalar_select %p725, %s24, 0
        %s727 = sadd.s32 %s726, %s724
        %s728 = smul.addr %s722, 64
        %s729 = sadd.s32 %s727, %s728
        %s730 = smul.addr %s729, 8
        %s731 = scalar_lea.vmem %s3, %s730
      $region44: #{generator_forward.19} parent=39 // pred_fallthru
        _
    $region40: #{generator_forward.19} parent=5 // pred_fallthru
      _
  $region6: #{generator_forward.19} parent=0 // loop_footer
    %s13 = sadd.s32 1, %s9
  $region7: #{generator_forward.19} parent=0 // loop_footer_branch
    %8 = sbr.rel target = $region3
  $region8: #{generator_forward.19} parent=0 // loop_exit
    _

</llo_original>
